<compile_context>
chip_gen: v6e
topology: v6e:2x2x1
jax: 0.10.0
libtpu: 0.0.40
codegen_flags: <defaults>
</compile_context>

<pallas_src>
import functools

import jax
import jax.numpy as jnp
from jax import lax
from jax.experimental import pallas as pl
from jax.experimental.pallas import tpu as pltpu

EPS = 1e-5                    # nn.InstanceNorm2d default (affine=False, biased var)
COMPUTE_DTYPE = jnp.bfloat16  # MXU operand dtype; stats/accumulation stay float32


# ----------------------------------------------------------------------------
# In-kernel helpers
# ----------------------------------------------------------------------------
def _instance_norm(v):
    """Two-pass InstanceNorm over axis 0 of an [L, C] float32 tile (biased var)."""
    mean = jnp.mean(v, axis=0, keepdims=True)
    var = jnp.mean(jnp.square(v - mean), axis=0, keepdims=True)
    return (v - mean) * lax.rsqrt(var + EPS)


# ----------------------------------------------------------------------------
# Fused residual-block kernel (one batch element per grid step)
# ----------------------------------------------------------------------------
def _resblock_kernel(*refs, stride, has_sc):
    idx = 0
    x_ref = refs[idx]; idx += 1        # (1, P, Hp, Wp, Cin)  bf16 (f32 if identity sc)
    w1_ref = refs[idx]; idx += 1       # (9*Cin, Cout)        bf16
    w2_ref = refs[idx]; idx += 1       # (9*Cout, Cout)       bf16
    ws_ref = None
    if has_sc:
        ws_ref = refs[idx]; idx += 1   # (Cin, Cout)          bf16
    o_ref = refs[idx]; idx += 1        # (1, Cout, L)         f32 (lane-dense store)
    pad_ref = refs[idx]; idx += 1      # (Ho+2, Wo+2, Cout)   bf16 VMEM scratch

    s = stride
    xph = x_ref[0]                     # (P, Hp, Wp, Cin)
    cin = xph.shape[-1]
    ho, wo, cout = pad_ref.shape[0] - 2, pad_ref.shape[1] - 2, pad_ref.shape[2]
    L = ho * wo

    x_mx = xph.astype(COMPUTE_DTYPE)   # MXU operand view (no-op when already bf16)

    # ---- conv1 (3x3, stride) as ONE [L, 9*Cin] @ [9*Cin, Cout] MXU dot ----------
    # Tap (di, dj) lives in phase plane (di % s, dj % s) at offset (di//s, dj//s).
    taps1 = []
    for di in range(3):
        for dj in range(3):
            p = (di % s) * s + (dj % s)
            oi, oj = di // s, dj // s
            taps1.append(x_mx[p, oi:oi + ho, oj:oj + wo, :])
    col1 = jnp.concatenate(taps1, axis=-1).reshape(L, 9 * cin)          # bf16
    s1 = jnp.dot(col1, w1_ref[...], preferred_element_type=jnp.float32)  # [L, Cout] f32
    y1 = jnp.maximum(_instance_norm(s1), 0.0)

    # ---- conv2 (3x3, stride 1) on a bf16 VMEM-padded tile ------------------------
    # Zero only the 1-wide border (interior is fully rewritten every step).
    zrow = jnp.zeros((1, wo + 2, cout), COMPUTE_DTYPE)
    zcol = jnp.zeros((ho + 2, 1, cout), COMPUTE_DTYPE)
    pad_ref[0:1, :, :] = zrow
    pad_ref[ho + 1:ho + 2, :, :] = zrow
    pad_ref[:, 0:1, :] = zcol
    pad_ref[:, wo + 1:wo + 2, :] = zcol
    pad_ref[1:ho + 1, 1:wo + 1, :] = y1.reshape(ho, wo, cout).astype(COMPUTE_DTYPE)

    yp = pad_ref[...]
    taps2 = [yp[di:di + ho, dj:dj + wo, :] for di in range(3) for dj in range(3)]
    col2 = jnp.concatenate(taps2, axis=-1).reshape(L, 9 * cout)         # bf16
    s2 = jnp.dot(col2, w2_ref[...], preferred_element_type=jnp.float32)  # [L, Cout] f32
    y2 = _instance_norm(s2)

    # ---- shortcut -----------------------------------------------------------------
    # Centre tap (1,1) of the padded input == x at the stride-s output positions.
    pc = (1 % s) * s + (1 % s)
    oc = 1 // s
    x_c = xph[pc, oc:oc + ho, oc:oc + wo, :].reshape(L, cin)
    if has_sc:
        sc = jnp.dot(x_c.astype(COMPUTE_DTYPE), ws_ref[...],
                     preferred_element_type=jnp.float32)                 # fused 1x1 conv
        res = _instance_norm(sc)
    else:
        res = x_c.astype(jnp.float32)                                    # identity, f32

    out = jnp.maximum(y2 + res, 0.0)                                     # [L, Cout] f32
    o_ref[0] = out.T.astype(o_ref.dtype)                                 # [Cout, L] lane-dense


# ----------------------------------------------------------------------------
# Wrapper: NCHW in / NCHW out (matches the PyTorch module interface)
# ----------------------------------------------------------------------------
def residual_block_instance(x, w1, w2, ws=None, *, stride=1):
    """x: [N, Cin, H, W] f32; w1: [Cout, Cin, 3, 3]; w2: [Cout, Cout, 3, 3];
    ws: [Cout, Cin, 1, 1] or None. Returns [N, Cout, Ho, Wo] f32 (NCHW)."""
    n, cin, h, w = x.shape
    cout = w1.shape[0]
    has_sc = (stride != 1) or (cin != cout)
    if stride not in (1, 2):
        raise ValueError("only stride 1 or 2 supported")
    if has_sc and ws is None:
        raise ValueError("shortcut conv weight required when stride!=1 or Cin!=Cout")
    if stride == 2 and (h % 2 or w % 2):
        raise ValueError("stride 2 requires even spatial dims")
    ho, wo = (h, w) if stride == 1 else (h // 2, w // 2)
    L = ho * wo

    # Channels-last + 1-px spatial pad once at the module boundary.
    # TODO(synk): add an NHWC-in entry point so chained blocks skip this transpose.
    x_pad = jnp.pad(jnp.transpose(x, (0, 2, 3, 1)),
                    ((0, 0), (1, 1), (1, 1), (0, 0)))          # [N, H+2, W+2, Cin]

    # Stride-2: split into the 4 spatial phase planes once (pure XLA layout op) so
    # the kernel's 3x3 taps are static contiguous slices (no strided reads, no
    # selection matmul).  Plane (a, b) holds x_pad[:, a::2, b::2, :].
    if stride == 1:
        P, Hp, Wp = 1, h + 2, w + 2
        x_ph = x_pad[:, None]                                   # [N, 1, H+2, W+2, Cin]
    else:
        P, Hp, Wp = 4, ho + 1, wo + 1
        x_ph = (x_pad.reshape(n, Hp, 2, Wp, 2, cin)
                .transpose(0, 2, 4, 1, 3, 5)
                .reshape(n, P, Hp, Wp, cin))                    # [N, 4, Ho+1, Wo+1, Cin]

    # bf16 DMA when both consumers (conv1 / 1x1 shortcut conv) cast to bf16 anyway;
    # keep f32 only when the identity shortcut adds x at full precision.
    x_ph = x_ph.astype(COMPUTE_DTYPE if has_sc else jnp.float32)

    # Tap-major, channel-inner weight rows: row t*Cin + c = weight[:, c, di, dj].T
    w1_t = jnp.transpose(w1, (2, 3, 1, 0)).reshape(9 * cin, cout).astype(COMPUTE_DTYPE)
    w2_t = jnp.transpose(w2, (2, 3, 1, 0)).reshape(9 * cout, cout).astype(COMPUTE_DTYPE)

    args = [x_ph, w1_t, w2_t]
    in_specs = [
        pl.BlockSpec((1, P, Hp, Wp, cin), lambda i: (i, 0, 0, 0, 0)),
        pl.BlockSpec((9 * cin, cout), lambda i: (0, 0)),
        pl.BlockSpec((9 * cout, cout), lambda i: (0, 0)),
    ]
    if has_sc:
        ws_t = ws.reshape(cout, cin).T.astype(COMPUTE_DTYPE)    # [Cin, Cout]
        args.append(ws_t)
        in_specs.append(pl.BlockSpec((cin, cout), lambda i: (0, 0)))

    # VMEM budget from the actual tiles (double-buffered ins/outs + scratch + im2col
    # working set), with headroom, clamped to v7x's 64 MiB physical VMEM.
    bpe_x = 2 if has_sc else 4
    x_bytes = P * Hp * Wp * cin * bpe_x
    w_bytes = (9 * cin * cout + 9 * cout * cout + (cin * cout if has_sc else 0)) * 2
    o_bytes = cout * L * 4
    pad_bytes = (ho + 2) * (wo + 2) * cout * 2
    work_bytes = L * 9 * cin * 2 + L * 9 * cout * 2 + 8 * L * cout * 4
    vmem_limit = int(min(max(2 * (2 * (x_bytes + w_bytes + o_bytes)
                                  + pad_bytes + work_bytes), 16 << 20), 64 << 20))

    kernel = functools.partial(_resblock_kernel, stride=stride, has_sc=has_sc)
    out = pl.pallas_call(
        kernel,
        out_shape=jax.ShapeDtypeStruct((n, cout, L), jnp.float32),
        grid=(n,),
        in_specs=in_specs,
        out_specs=pl.BlockSpec((1, cout, L), lambda i: (i, 0, 0)),
        scratch_shapes=[pltpu.VMEM((ho + 2, wo + 2, cout), COMPUTE_DTYPE)],
        compiler_params=pltpu.CompilerParams(
            dimension_semantics=("parallel",),       # batch shards across TCs
            vmem_limit_bytes=vmem_limit,
        ),
    )(*args)                                                     # [N, Cout, L]

    # TODO(synk): for v7x with N=1, add a second parallel grid axis (Cout tiles or
    # spatial row-blocks with a cross-tile InstanceNorm reduction) so both
    # TensorCores stay busy; batch-only parallelism idles one TC when N == 1.
    return out.reshape(n, cout, ho, wo)                          # NCHW, no transpose


# ----------------------------------------------------------------------------
# Pure-JAX reference (same bf16 conv operands / f32 stats) for self-check
# ----------------------------------------------------------------------------
def _conv_ref(x, w, stride, pad):
    return lax.conv_general_dilated(
        x.astype(COMPUTE_DTYPE), w.astype(COMPUTE_DTYPE),
        window_strides=(stride, stride),
        padding=((pad, pad), (pad, pad)),
        dimension_numbers=("NCHW", "OIHW", "NCHW"),
        preferred_element_type=jnp.float32)


def _instance_norm_ref(v):
    m = jnp.mean(v, axis=(2, 3), keepdims=True)
    var = jnp.mean(jnp.square(v - m), axis=(2, 3), keepdims=True)
    return (v - m) * lax.rsqrt(var + EPS)


def residual_block_ref(x, w1, w2, ws=None, *, stride=1):
    out = jax.nn.relu(_instance_norm_ref(_conv_ref(x, w1, stride, 1)))
    out = _instance_norm_ref(_conv_ref(out, w2, 1, 1))
    sc = x if ws is None else _instance_norm_ref(_conv_ref(x, ws, stride, 0))
    return jax.nn.relu(out + sc)


# ----------------------------------------------------------------------------
if __name__ == "__main__":
    key = jax.random.PRNGKey(0)
    kx, k1, k2, k3, k4, k5 = jax.random.split(key, 6)

    N, CIN, H, W = 2, 4, 16, 16
    x = jax.random.normal(kx, (N, CIN, H, W), jnp.float32)

    def conv_w(k, cout, cin, ksz):
        fan_in = cin * ksz * ksz
        return jax.random.normal(k, (cout, cin, ksz, ksz), jnp.float32) / jnp.sqrt(fan_in)

    # Block A: inchannel == outchannel, stride 1  -> identity shortcut
    w1a = conv_w(k1, 4, 4, 3)
    w2a = conv_w(k2, 4, 4, 3)
    # Block B: 4 -> 8 channels, stride 2          -> Conv1x1 + InstanceNorm shortcut
    w1b = conv_w(k3, 8, 4, 3)
    w2b = conv_w(k4, 8, 8, 3)
    wsb = conv_w(k5, 8, 4, 1)

    ya = residual_block_instance(x, w1a, w2a, stride=1)
    yb = residual_block_instance(ya, w1b, w2b, wsb, stride=2)
    jax.block_until_ready((ya, yb))

    assert ya.shape == (N, 4, 16, 16)
    assert yb.shape == (N, 8, 8, 8)
    assert bool(jnp.all(jnp.isfinite(ya))) and bool(jnp.all(jnp.isfinite(yb)))

    # Cross-check each block against a pure-JAX reference that uses the same bf16
    # conv operands (tolerance covers f32 accumulation-order differences).
    ya_ref = residual_block_ref(x, w1a, w2a, stride=1)
    yb_ref = residual_block_ref(ya, w1b, w2b, wsb, stride=2)
    assert bool(jnp.allclose(ya, ya_ref, atol=1e-2, rtol=1e-2)), "block A mismatch"
    assert bool(jnp.allclose(yb, yb_ref, atol=1e-2, rtol=1e-2)), "block B mismatch"

    print("KERNEL_OK")
</pallas_src>

<mosaic_0001>
module attributes {stable_mosaic.version = 11 : i64} {
  func.func @_resblock_kernel(%arg0: i32, %arg1: memref<1x1x18x18x4xf32, #tpu.memory_space<vmem>>, %arg2: memref<36x4xbf16, #tpu.memory_space<vmem>>, %arg3: memref<36x4xbf16, #tpu.memory_space<vmem>>, %arg4: memref<1x4x256xf32, #tpu.memory_space<vmem>>, %arg5: memref<18x18x4xbf16, #tpu.memory_space<vmem>>) attributes {dimension_semantics = [#tpu.dimension_semantics<parallel>], iteration_bounds = array<i64: 2>, scalar_prefetch = 0 : i64, scratch_operands = 1 : i64, tpu.core_type = #tpu.core_type<tc>, window_params = [{transform_indices = @transform_0, window_bounds = array<i64: 1, 1, 18, 18, 4>}, {pipeline_mode = #tpu.pipeline_mode<synchronous>, transform_indices = @transform_1, window_bounds = array<i64: 36, 4>}, {pipeline_mode = #tpu.pipeline_mode<synchronous>, transform_indices = @transform_2, window_bounds = array<i64: 36, 4>}, {transform_indices = @transform_3, window_bounds = array<i64: 1, 4, 256>}]} {
    %c0 = arith.constant 0 : index
    %c0_0 = arith.constant 0 : index
    %c0_1 = arith.constant 0 : index
    %c0_2 = arith.constant 0 : index
    %c0_3 = arith.constant 0 : index
    %0 = vector.load %arg1[%c0, %c0_0, %c0_1, %c0_2, %c0_3] : memref<1x1x18x18x4xf32, #tpu.memory_space<vmem>>, vector<1x1x18x18x4xf32>
    %1 = vector.shape_cast %0 : vector<1x1x18x18x4xf32> to vector<1x18x18x4xf32>
    %2 = arith.truncf %1 : vector<1x18x18x4xf32> to vector<1x18x18x4xbf16>
    %3 = vector.extract_strided_slice %2 {offsets = [0, 0, 0, 0], sizes = [1, 16, 16, 4], strides = [1, 1, 1, 1]} : vector<1x18x18x4xbf16> to vector<1x16x16x4xbf16>
    %4 = vector.shape_cast %3 : vector<1x16x16x4xbf16> to vector<16x16x4xbf16>
    %5 = vector.extract_strided_slice %2 {offsets = [0, 0, 1, 0], sizes = [1, 16, 16, 4], strides = [1, 1, 1, 1]} : vector<1x18x18x4xbf16> to vector<1x16x16x4xbf16>
    %6 = vector.shape_cast %5 : vector<1x16x16x4xbf16> to vector<16x16x4xbf16>
    %7 = vector.extract_strided_slice %2 {offsets = [0, 0, 2, 0], sizes = [1, 16, 16, 4], strides = [1, 1, 1, 1]} : vector<1x18x18x4xbf16> to vector<1x16x16x4xbf16>
    %8 = vector.shape_cast %7 : vector<1x16x16x4xbf16> to vector<16x16x4xbf16>
    %9 = vector.extract_strided_slice %2 {offsets = [0, 1, 0, 0], sizes = [1, 16, 16, 4], strides = [1, 1, 1, 1]} : vector<1x18x18x4xbf16> to vector<1x16x16x4xbf16>
    %10 = vector.shape_cast %9 : vector<1x16x16x4xbf16> to vector<16x16x4xbf16>
    %11 = vector.extract_strided_slice %2 {offsets = [0, 1, 1, 0], sizes = [1, 16, 16, 4], strides = [1, 1, 1, 1]} : vector<1x18x18x4xbf16> to vector<1x16x16x4xbf16>
    %12 = vector.shape_cast %11 : vector<1x16x16x4xbf16> to vector<16x16x4xbf16>
    %13 = vector.extract_strided_slice %2 {offsets = [0, 1, 2, 0], sizes = [1, 16, 16, 4], strides = [1, 1, 1, 1]} : vector<1x18x18x4xbf16> to vector<1x16x16x4xbf16>
    %14 = vector.shape_cast %13 : vector<1x16x16x4xbf16> to vector<16x16x4xbf16>
    %15 = vector.extract_strided_slice %2 {offsets = [0, 2, 0, 0], sizes = [1, 16, 16, 4], strides = [1, 1, 1, 1]} : vector<1x18x18x4xbf16> to vector<1x16x16x4xbf16>
    %16 = vector.shape_cast %15 : vector<1x16x16x4xbf16> to vector<16x16x4xbf16>
    %17 = vector.extract_strided_slice %2 {offsets = [0, 2, 1, 0], sizes = [1, 16, 16, 4], strides = [1, 1, 1, 1]} : vector<1x18x18x4xbf16> to vector<1x16x16x4xbf16>
    %18 = vector.shape_cast %17 : vector<1x16x16x4xbf16> to vector<16x16x4xbf16>
    %19 = vector.extract_strided_slice %2 {offsets = [0, 2, 2, 0], sizes = [1, 16, 16, 4], strides = [1, 1, 1, 1]} : vector<1x18x18x4xbf16> to vector<1x16x16x4xbf16>
    %20 = vector.shape_cast %19 : vector<1x16x16x4xbf16> to vector<16x16x4xbf16>
    %21 = tpu.concatenate %4, %6, %8, %10, %12, %14, %16, %18, %20 in 2 : vector<16x16x4xbf16>, vector<16x16x4xbf16>, vector<16x16x4xbf16>, vector<16x16x4xbf16>, vector<16x16x4xbf16>, vector<16x16x4xbf16>, vector<16x16x4xbf16>, vector<16x16x4xbf16>, vector<16x16x4xbf16> -> vector<16x16x36xbf16>
    %22 = vector.shape_cast %21 : vector<16x16x36xbf16> to vector<256x36xbf16>
    %c0_4 = arith.constant 0 : index
    %c0_5 = arith.constant 0 : index
    %23 = vector.load %arg2[%c0_4, %c0_5] : memref<36x4xbf16, #tpu.memory_space<vmem>>, vector<36x4xbf16>
    %cst = arith.constant dense<0.000000e+00> : vector<256x4xf32>
    %24 = tpu.matmul %22, %23, %cst {dimension_numbers = #tpu.dot_dimension_numbers<[1], [0], [0], [1], [0, 0, 1, 1], [], []>} : vector<256x36xbf16>, vector<36x4xbf16>, vector<256x4xf32> -> vector<256x4xf32>
    %cst_6 = arith.constant dense<0.000000e+00> : vector<4xf32>
    %25 = vector.multi_reduction <add>, %24, %cst_6 [0] : vector<256x4xf32> to vector<4xf32>
    %26 = vector.shape_cast %25 : vector<4xf32> to vector<1x4xf32>
    %cst_7 = arith.constant 2.560000e+02 : f32
    %27 = vector.broadcast %cst_7 : f32 to vector<1x4xf32>
    %28 = arith.divf %26, %27 : vector<1x4xf32>
    %29 = vector.broadcast %28 : vector<1x4xf32> to vector<256x4xf32>
    %30 = arith.subf %24, %29 : vector<256x4xf32>
    %31 = arith.mulf %30, %30 : vector<256x4xf32>
    %cst_8 = arith.constant dense<0.000000e+00> : vector<4xf32>
    %32 = vector.multi_reduction <add>, %31, %cst_8 [0] : vector<256x4xf32> to vector<4xf32>
    %33 = vector.shape_cast %32 : vector<4xf32> to vector<1x4xf32>
    %cst_9 = arith.constant 2.560000e+02 : f32
    %34 = vector.broadcast %cst_9 : f32 to vector<1x4xf32>
    %35 = arith.divf %33, %34 : vector<1x4xf32>
    %36 = vector.broadcast %28 : vector<1x4xf32> to vector<256x4xf32>
    %37 = arith.subf %24, %36 : vector<256x4xf32>
    %cst_10 = arith.constant 9.99999974E-6 : f32
    %38 = vector.broadcast %cst_10 : f32 to vector<1x4xf32>
    %39 = arith.addf %35, %38 : vector<1x4xf32>
    %40 = math.rsqrt %39 : vector<1x4xf32>
    %41 = vector.broadcast %40 : vector<1x4xf32> to vector<256x4xf32>
    %42 = arith.mulf %37, %41 : vector<256x4xf32>
    %cst_11 = arith.constant 0.000000e+00 : f32
    %43 = vector.broadcast %cst_11 : f32 to vector<256x4xf32>
    %44 = arith.maximumf %42, %43 : vector<256x4xf32>
    %cst_12 = arith.constant 0.000000e+00 : bf16
    %45 = vector.broadcast %cst_12 : bf16 to vector<1x18x4xbf16>
    %cst_13 = arith.constant 0.000000e+00 : bf16
    %46 = vector.broadcast %cst_13 : bf16 to vector<18x1x4xbf16>
    %c0_14 = arith.constant 0 : index
    %c0_15 = arith.constant 0 : index
    %c0_16 = arith.constant 0 : index
    %47 = vector.load %arg5[%c0_14, %c0_15, %c0_16] : memref<18x18x4xbf16, #tpu.memory_space<vmem>>, vector<1x18x4xbf16>
    tpu.vector_store %arg5[%c0_14, %c0_15, %c0_16], %45 {strides = array<i32>} : memref<18x18x4xbf16, #tpu.memory_space<vmem>>, vector<1x18x4xbf16>,
    %c17 = arith.constant 17 : index
    %c0_17 = arith.constant 0 : index
    %c0_18 = arith.constant 0 : index
    %48 = vector.load %arg5[%c17, %c0_17, %c0_18] : memref<18x18x4xbf16, #tpu.memory_space<vmem>>, vector<1x18x4xbf16>
    tpu.vector_store %arg5[%c17, %c0_17, %c0_18], %45 {strides = array<i32>} : memref<18x18x4xbf16, #tpu.memory_space<vmem>>, vector<1x18x4xbf16>,
    %c0_19 = arith.constant 0 : index
    %c0_20 = arith.constant 0 : index
    %c0_21 = arith.constant 0 : index
    %49 = vector.load %arg5[%c0_19, %c0_20, %c0_21] : memref<18x18x4xbf16, #tpu.memory_space<vmem>>, vector<18x1x4xbf16>
    tpu.vector_store %arg5[%c0_19, %c0_20, %c0_21], %46 {strides = array<i32>} : memref<18x18x4xbf16, #tpu.memory_space<vmem>>, vector<18x1x4xbf16>,
    %c0_22 = arith.constant 0 : index
    %c17_23 = arith.constant 17 : index
    %c0_24 = arith.constant 0 : index
    %50 = vector.load %arg5[%c0_22, %c17_23, %c0_24] : memref<18x18x4xbf16, #tpu.memory_space<vmem>>, vector<18x1x4xbf16>
    tpu.vector_store %arg5[%c0_22, %c17_23, %c0_24], %46 {strides = array<i32>} : memref<18x18x4xbf16, #tpu.memory_space<vmem>>, vector<18x1x4xbf16>,
    %51 = vector.shape_cast %44 : vector<256x4xf32> to vector<16x16x4xf32>
    %52 = arith.truncf %51 : vector<16x16x4xf32> to vector<16x16x4xbf16>
    %c1 = arith.constant 1 : index
    %c1_25 = arith.constant 1 : index
    %c0_26 = arith.constant 0 : index
    %53 = vector.load %arg5[%c1, %c1_25, %c0_26] : memref<18x18x4xbf16, #tpu.memory_space<vmem>>, vector<16x16x4xbf16>
    tpu.vector_store %arg5[%c1, %c1_25, %c0_26], %52 {strides = array<i32>} : memref<18x18x4xbf16, #tpu.memory_space<vmem>>, vector<16x16x4xbf16>,
    %c0_27 = arith.constant 0 : index
    %c0_28 = arith.constant 0 : index
    %c0_29 = arith.constant 0 : index
    %54 = vector.load %arg5[%c0_27, %c0_28, %c0_29] : memref<18x18x4xbf16, #tpu.memory_space<vmem>>, vector<18x18x4xbf16>
    %55 = vector.extract_strided_slice %54 {offsets = [0, 0, 0], sizes = [16, 16, 4], strides = [1, 1, 1]} : vector<18x18x4xbf16> to vector<16x16x4xbf16>
    %56 = vector.extract_strided_slice %54 {offsets = [0, 1, 0], sizes = [16, 16, 4], strides = [1, 1, 1]} : vector<18x18x4xbf16> to vector<16x16x4xbf16>
    %57 = vector.extract_strided_slice %54 {offsets = [0, 2, 0], sizes = [16, 16, 4], strides = [1, 1, 1]} : vector<18x18x4xbf16> to vector<16x16x4xbf16>
    %58 = vector.extract_strided_slice %54 {offsets = [1, 0, 0], sizes = [16, 16, 4], strides = [1, 1, 1]} : vector<18x18x4xbf16> to vector<16x16x4xbf16>
    %59 = vector.extract_strided_slice %54 {offsets = [1, 1, 0], sizes = [16, 16, 4], strides = [1, 1, 1]} : vector<18x18x4xbf16> to vector<16x16x4xbf16>
    %60 = vector.extract_strided_slice %54 {offsets = [1, 2, 0], sizes = [16, 16, 4], strides = [1, 1, 1]} : vector<18x18x4xbf16> to vector<16x16x4xbf16>
    %61 = vector.extract_strided_slice %54 {offsets = [2, 0, 0], sizes = [16, 16, 4], strides = [1, 1, 1]} : vector<18x18x4xbf16> to vector<16x16x4xbf16>
    %62 = vector.extract_strided_slice %54 {offsets = [2, 1, 0], sizes = [16, 16, 4], strides = [1, 1, 1]} : vector<18x18x4xbf16> to vector<16x16x4xbf16>
    %63 = vector.extract_strided_slice %54 {offsets = [2, 2, 0], sizes = [16, 16, 4], strides = [1, 1, 1]} : vector<18x18x4xbf16> to vector<16x16x4xbf16>
    %64 = tpu.concatenate %55, %56, %57, %58, %59, %60, %61, %62, %63 in 2 : vector<16x16x4xbf16>, vector<16x16x4xbf16>, vector<16x16x4xbf16>, vector<16x16x4xbf16>, vector<16x16x4xbf16>, vector<16x16x4xbf16>, vector<16x16x4xbf16>, vector<16x16x4xbf16>, vector<16x16x4xbf16> -> vector<16x16x36xbf16>
    %65 = vector.shape_cast %64 : vector<16x16x36xbf16> to vector<256x36xbf16>
    %c0_30 = arith.constant 0 : index
    %c0_31 = arith.constant 0 : index
    %66 = vector.load %arg3[%c0_30, %c0_31] : memref<36x4xbf16, #tpu.memory_space<vmem>>, vector<36x4xbf16>
    %cst_32 = arith.constant dense<0.000000e+00> : vector<256x4xf32>
    %67 = tpu.matmul %65, %66, %cst_32 {dimension_numbers = #tpu.dot_dimension_numbers<[1], [0], [0], [1], [0, 0, 1, 1], [], []>} : vector<256x36xbf16>, vector<36x4xbf16>, vector<256x4xf32> -> vector<256x4xf32>
    %cst_33 = arith.constant dense<0.000000e+00> : vector<4xf32>
    %68 = vector.multi_reduction <add>, %67, %cst_33 [0] : vector<256x4xf32> to vector<4xf32>
    %69 = vector.shape_cast %68 : vector<4xf32> to vector<1x4xf32>
    %cst_34 = arith.constant 2.560000e+02 : f32
    %70 = vector.broadcast %cst_34 : f32 to vector<1x4xf32>
    %71 = arith.divf %69, %70 : vector<1x4xf32>
    %72 = vector.broadcast %71 : vector<1x4xf32> to vector<256x4xf32>
    %73 = arith.subf %67, %72 : vector<256x4xf32>
    %74 = arith.mulf %73, %73 : vector<256x4xf32>
    %cst_35 = arith.constant dense<0.000000e+00> : vector<4xf32>
    %75 = vector.multi_reduction <add>, %74, %cst_35 [0] : vector<256x4xf32> to vector<4xf32>
    %76 = vector.shape_cast %75 : vector<4xf32> to vector<1x4xf32>
    %cst_36 = arith.constant 2.560000e+02 : f32
    %77 = vector.broadcast %cst_36 : f32 to vector<1x4xf32>
    %78 = arith.divf %76, %77 : vector<1x4xf32>
    %79 = vector.broadcast %71 : vector<1x4xf32> to vector<256x4xf32>
    %80 = arith.subf %67, %79 : vector<256x4xf32>
    %cst_37 = arith.constant 9.99999974E-6 : f32
    %81 = vector.broadcast %cst_37 : f32 to vector<1x4xf32>
    %82 = arith.addf %78, %81 : vector<1x4xf32>
    %83 = math.rsqrt %82 : vector<1x4xf32>
    %84 = vector.broadcast %83 : vector<1x4xf32> to vector<256x4xf32>
    %85 = arith.mulf %80, %84 : vector<256x4xf32>
    %86 = vector.extract_strided_slice %1 {offsets = [0, 1, 1, 0], sizes = [1, 16, 16, 4], strides = [1, 1, 1, 1]} : vector<1x18x18x4xf32> to vector<1x16x16x4xf32>
    %87 = vector.shape_cast %86 : vector<1x16x16x4xf32> to vector<16x16x4xf32>
    %88 = vector.shape_cast %87 : vector<16x16x4xf32> to vector<256x4xf32>
    %89 = arith.addf %85, %88 : vector<256x4xf32>
    %cst_38 = arith.constant 0.000000e+00 : f32
    %90 = vector.broadcast %cst_38 : f32 to vector<256x4xf32>
    %91 = arith.maximumf %89, %90 : vector<256x4xf32>
    %92 = tpu.transpose %91, [1, 0] : vector<256x4xf32> -> vector<4x256xf32>
    %c0_39 = arith.constant 0 : index
    %c0_40 = arith.constant 0 : index
    %c0_41 = arith.constant 0 : index
    %93 = vector.load %arg4[%c0_39, %c0_40, %c0_41] : memref<1x4x256xf32, #tpu.memory_space<vmem>>, vector<1x4x256xf32>
    %94 = vector.shape_cast %93 : vector<1x4x256xf32> to vector<4x256xf32>
    %95 = vector.shape_cast %92 : vector<4x256xf32> to vector<1x4x256xf32>
    tpu.vector_store %arg4[%c0_39, %c0_40, %c0_41], %95 {strides = array<i32>} : memref<1x4x256xf32, #tpu.memory_space<vmem>>, vector<1x4x256xf32>,
    return
  }
  func.func @transform_0(%arg0: i32) -> (i32, i32, i32, i32, i32) {
    %c0_i32 = arith.constant 0 : i32
    %c0_i32_0 = arith.constant 0 : i32
    %c0_i32_1 = arith.constant 0 : i32
    %c0_i32_2 = arith.constant 0 : i32
    %c0_i32_3 = arith.constant 0 : i32
    return %arg0, %c0_i32, %c0_i32_0, %c0_i32_1, %c0_i32_2 : i32, i32, i32, i32, i32
  }
  func.func @transform_1(%arg0: i32) -> (i32, i32) {
    %c0_i32 = arith.constant 0 : i32
    %c0_i32_0 = arith.constant 0 : i32
    %c0_i32_1 = arith.constant 0 : i32
    return %c0_i32, %c0_i32_0 : i32, i32
  }
  func.func @transform_2(%arg0: i32) -> (i32, i32) {
    %c0_i32 = arith.constant 0 : i32
    %c0_i32_0 = arith.constant 0 : i32
    %c0_i32_1 = arith.constant 0 : i32
    return %c0_i32, %c0_i32_0 : i32, i32
  }
  func.func @transform_3(%arg0: i32) -> (i32, i32, i32) {
    %c0_i32 = arith.constant 0 : i32
    %c0_i32_0 = arith.constant 0 : i32
    %c0_i32_1 = arith.constant 0 : i32
    return %arg0, %c0_i32, %c0_i32_0 : i32, i32, i32
  }
}

</mosaic_0001>

<llo_original>
// kernel: tpu_custom_call.1
$region0: #{tpu_custom_call.1}
  #allocation0 [shape = 'u32[]', space=smem, size = 0x4, offset = 0x4, fixed_abs, tag = 'smem constant byte address 0x4 - core index']
  #allocation1 [shape = 'u32[144,128]{1,0:T(1,128)}', space=vmem, size = 0x12000, scoped, tag = 'internal scratch']
  #allocation2 [shape = 'bf16[18,18,4]{2,1,0:T(8,128)(2,1)}', space=vmem, size = 0x1b000, scoped, tag = 'scratch operand']
  %s0 = inlined_call_operand.vmem [shape: f32[2,1,18,18,4], index: 0, kind: input, shape index: {}]
  %s1 = inlined_call_operand.vmem [shape: bf16[36,4], index: 1, kind: input, shape index: {}]
  %s2 = inlined_call_operand.vmem [shape: bf16[36,4], index: 2, kind: input, shape index: {}]
  %s3 = inlined_call_operand.hbm [shape: f32[2,4,256], index: 3, kind: output, shape index: {}]
  %s4 = sld [smem:[#allocation0]]
  $region45: #{tpu_custom_call.1} parent=0
    _
  %s6 = ssub.s32 1, %s4
  %s7 = scalar_select 0, %s6, %s4
  $region1: #{tpu_custom_call.1} parent=0
    #allocation3 [shape = 'u8[8192]{0}', space=vmem, size = 0x2000, scoped, tag = 'output window, operand 0']
    #allocation4 [shape = 's32[2]{0}', space=sflag, size = 0x8, scoped, tag = 'scoped memory for tpu_custom_call.1']
    %8 = vsyncpa [#allocation4], 0
    %s9 = scalar_lea.sflag [#allocation4], 1
    %10 = vsyncpa %s9, 0
    loop: start=0, step=1, limit=4
    $region2: #{tpu_custom_call.1} parent=1 // loop_pre_header
      _
    $region3: #{tpu_custom_call.1} parent=1 // loop_header
      %s12 = sphi 0, %s16
      %p13 = scmp.ge.s32.totalorder %s12, 4
      %s22 = sphi 0, %s24
      %s25 = sphi 0, %s22
      %s26 = sphi 0, %s25
      %s42 = sphi 0, %s26
      %s46 = sphi 0, %s46
      %s48 = sphi 0, %s46
      %s49 = sphi 0, %s48
      %s63 = sphi 0, %s49
      %s67 = sphi 0, %s67
      %s69 = sphi 0, %s67
      %s70 = sphi 0, %s69
      %s84 = sphi 0, %s70
      %s90 = sphi 0, %s92
      %s93 = sphi 0, %s90
      %s94 = sphi 0, %s93
      %s110 = sphi 0, %s94
    $region4: #{tpu_custom_call.1} parent=1 // loop_header_branch
      %15 = sbr.rel (%p13) target = $region8
    $region5: #{tpu_custom_call.1} parent=1 // loop_body
      %s17 = ssub.s32 %s12, 1
      %s18 = ssub.s32 %s12, 2
      %s19 = sadd.s32 %s12, 1
      %s20 = ssub.s32 %s12, %s19
      %p21 = scmp.eq.s32.totalorder %s20, 0
      %s23 = sadd.s32 %s22, 1
      %s24 = scalar_select %p21, %s22, %s23
      %p27 = pneg %p21
      %p28 = scmp.eq.s32.totalorder %s12, 1
      %p29 = por %p27, %p28
      %p30 = scmp.ne.s32.totalorder %s22, %s25
      %p31 = scmp.eq.s32.totalorder %s12, 0
      %p32 = por %p30, %p31
      %p33 = scmp.ne.s32.totalorder %s22, %s25
      %p34 = scmp.eq.s32.totalorder %s17, 1
      %p35 = por %p33, %p34
      %p36 = scmp.ne.s32.totalorder %s25, %s26
      %p37 = scmp.eq.s32.totalorder %s17, 0
      %p38 = por %p36, %p37
      %p39 = scmp.ne.s32.totalorder %s25, %s26
      %p40 = scmp.eq.s32.totalorder %s18, 1
      %p41 = por %p39, %p40
      %p43 = scmp.ne.s32.totalorder %s26, %s42
      %p44 = scmp.eq.s32.totalorder %s18, 0
      %p45 = por %p43, %p44
      %s47 = sadd.s32 %s46, 1
      %p50 = scmp.eq.s32.totalorder %s12, 1
      %p51 = scmp.ne.s32.totalorder %s46, %s48
      %p52 = scmp.eq.s32.totalorder %s12, 0
      %p53 = por %p51, %p52
      %p54 = scmp.ne.s32.totalorder %s46, %s48
      %p55 = scmp.eq.s32.totalorder %s17, 1
      %p56 = por %p54, %p55
      %p57 = scmp.ne.s32.totalorder %s48, %s49
      %p58 = scmp.eq.s32.totalorder %s17, 0
      %p59 = por %p57, %p58
      %p60 = scmp.ne.s32.totalorder %s48, %s49
      %p61 = scmp.eq.s32.totalorder %s18, 1
      %p62 = por %p60, %p61
      %p64 = scmp.ne.s32.totalorder %s49, %s63
      %p65 = scmp.eq.s32.totalorder %s18, 0
      %p66 = por %p64, %p65
      %s68 = sadd.s32 %s67, 1
      %p71 = scmp.eq.s32.totalorder %s12, 1
      %p72 = scmp.ne.s32.totalorder %s67, %s69
      %p73 = scmp.eq.s32.totalorder %s12, 0
      %p74 = por %p72, %p73
      %p75 = scmp.ne.s32.totalorder %s67, %s69
      %p76 = scmp.eq.s32.totalorder %s17, 1
      %p77 = por %p75, %p76
      %p78 = scmp.ne.s32.totalorder %s69, %s70
      %p79 = scmp.eq.s32.totalorder %s17, 0
      %p80 = por %p78, %p79
      %p81 = scmp.ne.s32.totalorder %s69, %s70
      %p82 = scmp.eq.s32.totalorder %s18, 1
      %p83 = por %p81, %p82
      %p85 = scmp.ne.s32.totalorder %s70, %s84
      %p86 = scmp.eq.s32.totalorder %s18, 0
      %p87 = por %p85, %p86
      %s88 = ssub.s32 %s12, %s19
      %p89 = scmp.eq.s32.totalorder %s88, 0
      %s91 = sadd.s32 %s90, 1
      %s92 = scalar_select %p89, %s90, %s91
      %p95 = pneg %p89
      %p96 = scmp.eq.s32.totalorder %s12, 1
      %p97 = por %p95, %p96
      %p98 = scmp.ne.s32.totalorder %s90, %s93
      %p99 = scmp.eq.s32.totalorder %s12, 0
      %p100 = por %p98, %p99
      %p101 = scmp.ne.s32.totalorder %s90, %s93
      %p102 = scmp.eq.s32.totalorder %s17, 1
      %p103 = por %p101, %p102
      %p104 = scmp.ne.s32.totalorder %s93, %s94
      %p105 = scmp.eq.s32.totalorder %s17, 0
      %p106 = por %p104, %p105
      %p107 = scmp.ne.s32.totalorder %s93, %s94
      %p108 = scmp.eq.s32.totalorder %s18, 1
      %p109 = por %p107, %p108
      %p111 = scmp.ne.s32.totalorder %s94, %s110
      %p112 = scmp.eq.s32.totalorder %s18, 0
      %p113 = por %p111, %p112
      %p114 = scmp.le.s32.totalorder 1, %s12
      %p115 = scmp.lt.s32.totalorder %s12, 3
      %p116 = pnand %p114, %p115
      %p117 = pneg %p116
      // Predicated region
      $region9: #{tpu_custom_call.1} parent=5 // pred_check
        _
      $region10: #{tpu_custom_call.1} parent=5 // pred_check_branch
        %119 = sbr.rel (%p116) target = $region12
      $region11: #{tpu_custom_call.1} parent=5 // pred_region
        %s120 = ssub.s32 %s12, 1
        // Predicated region
        $region13: #{tpu_custom_call.1} parent=11 // pred_check
          %p121 = pneg %p59
        $region14: #{tpu_custom_call.1} parent=11 // pred_check_branch
          %123 = sbr.rel (%p121) target = $region16
        $region15: #{tpu_custom_call.1} parent=11 // pred_region
          _
        $region16: #{tpu_custom_call.1} parent=11 // pred_fallthru
          _
        // Predicated region
        $region17: #{tpu_custom_call.1} parent=11 // pred_check
          %p124 = pneg %p80
        $region18: #{tpu_custom_call.1} parent=11 // pred_check_branch
          %126 = sbr.rel (%p124) target = $region20
        $region19: #{tpu_custom_call.1} parent=11 // pred_region
          _
        $region20: #{tpu_custom_call.1} parent=11 // pred_fallthru
          _
      $region12: #{tpu_custom_call.1} parent=5 // pred_fallthru
        _
      %p127 = scmp.lt.s32.totalorder %s12, 2
      // Predicated region
      $region21: #{tpu_custom_call.1} parent=5 // pred_check
        %p128 = pneg %p127
      $region22: #{tpu_custom_call.1} parent=5 // pred_check_branch
        %130 = sbr.rel (%p128) target = $region24
      $region23: #{tpu_custom_call.1} parent=5 // pred_region
        // Predicated region
        $region25: #{tpu_custom_call.1} parent=23 // pred_check
          %p131 = pneg %p32
        $region26: #{tpu_custom_call.1} parent=23 // pred_check_branch
          %133 = sbr.rel (%p131) target = $region28
        $region27: #{tpu_custom_call.1} parent=23 // pred_region
          %p134 = scmp.lt.s32.totalorder %s12, 1
          %s135 = scalar_select %p134, %s12, 1
          %s136 = smul.addr %s135, 54
          %s137 = smul.addr %s136, 8
          %s138 = scalar_lea.vmem %s0, %s137
        $region28: #{tpu_custom_call.1} parent=23 // pred_fallthru
          _
      $region24: #{tpu_custom_call.1} parent=5 // pred_fallthru
        _
      %p139 = scmp.le.s32.totalorder 1, %s12
      %p140 = scmp.lt.s32.totalorder %s12, 3
      %p141 = pnand %p139, %p140
      %p142 = pneg %p141
      // Predicated region
      $region29: #{tpu_custom_call.1} parent=5 // pred_check
        _
      $region30: #{tpu_custom_call.1} parent=5 // pred_check_branch
        %144 = sbr.rel (%p141) target = $region32
      $region31: #{tpu_custom_call.1} parent=5 // pred_region
        %s145 = ssub.s32 %s12, 1
        %p146 = scmp.lt.s32.totalorder %s17, 1
        %s147 = scalar_select %p146, %s17, 1
        %s148 = smul.addr %s147, 54
        %s149 = smul.addr %s148, 8
        %s150 = scalar_lea.vmem %s0, %s149
        %p151 = pneg %p38
        %p152 = pneg %p35
        %p153 = pneg %p59
        %p154 = pneg %p56
        %p155 = pneg %p80
        %p156 = pneg %p77
        %p157 = pneg %p106
        %p158 = pneg %p103
        %s159 = sand.u32 %s93, 1
        %s160 = scalar_lea.sflag [#allocation4], %s159
        %s161 = sand.u32 %s93, 1
        %s162 = smul.addr %s161, 8
        %s163 = scalar_lea.vmem [#allocation3], %s162
        %p164 = scmp.lt.s32.totalorder %s17, 1
        %s165 = scalar_select %p164, %s17, 1
        %s166 = smul.addr %s165, 54
        %s167 = smul.addr %s166, 8
        %s168 = scalar_lea.vmem %s0, %s167
        %v170 = vld [vmem:[%s168] sm:$0xff]
        %v171 = vld [vmem:[%s168 + $0x8] sm:$0xff]
        %v172 = vld [vmem:[%s168 + $0x10] sm:$0x3]
        %v173 = vld [vmem:[%s168 + $0x18] sm:$0xff]
        %v174 = vld [vmem:[%s168 + $0x20] sm:$0xff]
        %v175 = vld [vmem:[%s168 + $0x28] sm:$0x3]
        %v176 = vld [vmem:[%s168 + $0x30] sm:$0xff]
        %v177 = vld [vmem:[%s168 + $0x38] sm:$0xff]
        %v178 = vld [vmem:[%s168 + $0x40] sm:$0x3]
        %v179 = vld [vmem:[%s168 + $0x48] sm:$0xff]
        %v180 = vld [vmem:[%s168 + $0x50] sm:$0xff]
        %v181 = vld [vmem:[%s168 + $0x58] sm:$0x3]
        %v182 = vld [vmem:[%s168 + $0x60] sm:$0xff]
        %v183 = vld [vmem:[%s168 + $0x68] sm:$0xff]
        %v184 = vld [vmem:[%s168 + $0x70] sm:$0x3]
        %v185 = vld [vmem:[%s168 + $0x78] sm:$0xff]
        %v186 = vld [vmem:[%s168 + $0x80] sm:$0xff]
        %v187 = vld [vmem:[%s168 + $0x88] sm:$0x3]
        %v188 = vld [vmem:[%s168 + $0x90] sm:$0xff]
        %v189 = vld [vmem:[%s168 + $0x98] sm:$0xff]
        %v190 = vld [vmem:[%s168 + $0xa0] sm:$0x3]
        %v191 = vld [vmem:[%s168 + $0xa8] sm:$0xff]
        %v192 = vld [vmem:[%s168 + $0xb0] sm:$0xff]
        %v193 = vld [vmem:[%s168 + $0xb8] sm:$0x3]
        %v194 = vld [vmem:[%s168 + $0xc0] sm:$0xff]
        %v195 = vld [vmem:[%s168 + $0xc8] sm:$0xff]
        %v196 = vld [vmem:[%s168 + $0xd0] sm:$0x3]
        %v197 = vld [vmem:[%s168 + $0xd8] sm:$0xff]
        %v198 = vld [vmem:[%s168 + $0xe0] sm:$0xff]
        %v199 = vld [vmem:[%s168 + $0xe8] sm:$0x3]
        %v200 = vld [vmem:[%s168 + $0xf0] sm:$0xff]
        %v201 = vld [vmem:[%s168 + $0xf8] sm:$0xff]
        %v202 = vld [vmem:[%s168 + $0x100] sm:$0x3]
        %v203 = vld [vmem:[%s168 + $0x108] sm:$0xff]
        %v204 = vld [vmem:[%s168 + $0x110] sm:$0xff]
        %v205 = vld [vmem:[%s168 + $0x118] sm:$0x3]
        %v206 = vld [vmem:[%s168 + $0x120] sm:$0xff]
        %v207 = vld [vmem:[%s168 + $0x128] sm:$0xff]
        %v208 = vld [vmem:[%s168 + $0x130] sm:$0x3]
        %v209 = vld [vmem:[%s168 + $0x138] sm:$0xff]
        %v210 = vld [vmem:[%s168 + $0x140] sm:$0xff]
        %v211 = vld [vmem:[%s168 + $0x148] sm:$0x3]
        %v212 = vld [vmem:[%s168 + $0x150] sm:$0xff]
        %v213 = vld [vmem:[%s168 + $0x158] sm:$0xff]
        %v214 = vld [vmem:[%s168 + $0x160] sm:$0x3]
        %v215 = vld [vmem:[%s168 + $0x168] sm:$0xff]
        %v216 = vld [vmem:[%s168 + $0x170] sm:$0xff]
        %v217 = vld [vmem:[%s168 + $0x178] sm:$0x3]
        %v218 = vld [vmem:[%s168 + $0x180] sm:$0xff]
        %v219 = vld [vmem:[%s168 + $0x188] sm:$0xff]
        %v220 = vld [vmem:[%s168 + $0x190] sm:$0x3]
        %v221 = vld [vmem:[%s168 + $0x198] sm:$0xff]
        %v222 = vld [vmem:[%s168 + $0x1a0] sm:$0xff]
        %v223 = vld [vmem:[%s168 + $0x1a8] sm:$0x3]
        %v224 = vpack.c.bf16 %v171, %v170
        %v225 = vpack.c.bf16 %v172, %v172
        %v226 = vpack.c.bf16 %v174, %v173
        %v227 = vpack.c.bf16 %v175, %v175
        %v228 = vpack.c.bf16 %v177, %v176
        %v229 = vpack.c.bf16 %v178, %v178
        %v230 = vpack.c.bf16 %v180, %v179
        %v231 = vpack.c.bf16 %v181, %v181
        %v232 = vpack.c.bf16 %v183, %v182
        %v233 = vpack.c.bf16 %v184, %v184
        %v234 = vpack.c.bf16 %v186, %v185
        %v235 = vpack.c.bf16 %v187, %v187
        %v236 = vpack.c.bf16 %v189, %v188
        %v237 = vpack.c.bf16 %v190, %v190
        %v238 = vpack.c.bf16 %v192, %v191
        %v239 = vpack.c.bf16 %v193, %v193
        %v240 = vpack.c.bf16 %v195, %v194
        %v241 = vpack.c.bf16 %v196, %v196
        %v242 = vpack.c.bf16 %v198, %v197
        %v243 = vpack.c.bf16 %v199, %v199
        %v244 = vpack.c.bf16 %v201, %v200
        %v245 = vpack.c.bf16 %v202, %v202
        %v246 = vpack.c.bf16 %v204, %v203
        %v247 = vpack.c.bf16 %v205, %v205
        %v248 = vpack.c.bf16 %v207, %v206
        %v249 = vpack.c.bf16 %v208, %v208
        %v250 = vpack.c.bf16 %v210, %v209
        %v251 = vpack.c.bf16 %v211, %v211
        %v252 = vpack.c.bf16 %v213, %v212
        %v253 = vpack.c.bf16 %v214, %v214
        %v254 = vpack.c.bf16 %v216, %v215
        %v255 = vpack.c.bf16 %v217, %v217
        %v256 = vpack.c.bf16 %v219, %v218
        %v257 = vpack.c.bf16 %v220, %v220
        %v258 = vpack.c.bf16 %v222, %v221
        %v259 = vpack.c.bf16 %v223, %v223
        %vm260 = vsmask.f32 7424
        %v262 = vshrl.u32 %v224, 16
        %v264 = vshll.u32 %v224, 16
        %v266 = vrot.slane %v264, 1
        %v267 = vor.u32 %v262, %v266
        %v269 = vshll.u32 %v225, 16
        %v271 = vrot.slane %v269, 1
        %v272 = vsel %vm260, %v267, %v271
        %v274 = vshrl.u32 %v226, 16
        %v276 = vshll.u32 %v226, 16
        %v278 = vrot.slane %v276, 1
        %v279 = vor.u32 %v274, %v278
        %v281 = vshll.u32 %v227, 16
        %v283 = vrot.slane %v281, 1
        %v284 = vsel %vm260, %v279, %v283
        %v286 = vshrl.u32 %v228, 16
        %v288 = vshll.u32 %v228, 16
        %v290 = vrot.slane %v288, 1
        %v291 = vor.u32 %v286, %v290
        %v293 = vshll.u32 %v229, 16
        %v295 = vrot.slane %v293, 1
        %v296 = vsel %vm260, %v291, %v295
        %v298 = vshrl.u32 %v230, 16
        %v300 = vshll.u32 %v230, 16
        %v302 = vrot.slane %v300, 1
        %v303 = vor.u32 %v298, %v302
        %v305 = vshll.u32 %v231, 16
        %v307 = vrot.slane %v305, 1
        %v308 = vsel %vm260, %v303, %v307
        %v310 = vshrl.u32 %v232, 16
        %v312 = vshll.u32 %v232, 16
        %v314 = vrot.slane %v312, 1
        %v315 = vor.u32 %v310, %v314
        %v317 = vshll.u32 %v233, 16
        %v319 = vrot.slane %v317, 1
        %v320 = vsel %vm260, %v315, %v319
        %v322 = vshrl.u32 %v234, 16
        %v324 = vshll.u32 %v234, 16
        %v326 = vrot.slane %v324, 1
        %v327 = vor.u32 %v322, %v326
        %v329 = vshll.u32 %v235, 16
        %v331 = vrot.slane %v329, 1
        %v332 = vsel %vm260, %v327, %v331
        %v334 = vshrl.u32 %v236, 16
        %v336 = vshll.u32 %v236, 16
        %v338 = vrot.slane %v336, 1
        %v339 = vor.u32 %v334, %v338
        %v341 = vshll.u32 %v237, 16
        %v343 = vrot.slane %v341, 1
        %v344 = vsel %vm260, %v339, %v343
        %v346 = vshrl.u32 %v238, 16
        %v348 = vshll.u32 %v238, 16
        %v350 = vrot.slane %v348, 1
        %v351 = vor.u32 %v346, %v350
        %v353 = vshll.u32 %v239, 16
        %v355 = vrot.slane %v353, 1
        %v356 = vsel %vm260, %v351, %v355
        %v358 = vshrl.u32 %v240, 16
        %v360 = vshll.u32 %v240, 16
        %v362 = vrot.slane %v360, 1
        %v363 = vor.u32 %v358, %v362
        %v365 = vshll.u32 %v241, 16
        %v367 = vrot.slane %v365, 1
        %v368 = vsel %vm260, %v363, %v367
        %v370 = vshrl.u32 %v242, 16
        %v372 = vshll.u32 %v242, 16
        %v374 = vrot.slane %v372, 1
        %v375 = vor.u32 %v370, %v374
        %v377 = vshll.u32 %v243, 16
        %v379 = vrot.slane %v377, 1
        %v380 = vsel %vm260, %v375, %v379
        %v382 = vshrl.u32 %v244, 16
        %v384 = vshll.u32 %v244, 16
        %v386 = vrot.slane %v384, 1
        %v387 = vor.u32 %v382, %v386
        %v389 = vshll.u32 %v245, 16
        %v391 = vrot.slane %v389, 1
        %v392 = vsel %vm260, %v387, %v391
        %v394 = vshrl.u32 %v246, 16
        %v396 = vshll.u32 %v246, 16
        %v398 = vrot.slane %v396, 1
        %v399 = vor.u32 %v394, %v398
        %v401 = vshll.u32 %v247, 16
        %v403 = vrot.slane %v401, 1
        %v404 = vsel %vm260, %v399, %v403
        %v406 = vshrl.u32 %v248, 16
        %v408 = vshll.u32 %v248, 16
        %v410 = vrot.slane %v408, 1
        %v411 = vor.u32 %v406, %v410
        %v413 = vshll.u32 %v249, 16
        %v415 = vrot.slane %v413, 1
        %v416 = vsel %vm260, %v411, %v415
        %v418 = vshrl.u32 %v250, 16
        %v420 = vshll.u32 %v250, 16
        %v422 = vrot.slane %v420, 1
        %v423 = vor.u32 %v418, %v422
        %v425 = vshll.u32 %v251, 16
        %v427 = vrot.slane %v425, 1
        %v428 = vsel %vm260, %v423, %v427
        %v430 = vshrl.u32 %v252, 16
        %v432 = vshll.u32 %v252, 16
        %v434 = vrot.slane %v432, 1
        %v435 = vor.u32 %v430, %v434
        %v437 = vshll.u32 %v253, 16
        %v439 = vrot.slane %v437, 1
        %v440 = vsel %vm260, %v435, %v439
        %v442 = vshrl.u32 %v254, 16
        %v444 = vshll.u32 %v254, 16
        %v446 = vrot.slane %v444, 1
        %v447 = vor.u32 %v442, %v446
        %v449 = vshll.u32 %v255, 16
        %v451 = vrot.slane %v449, 1
        %v452 = vsel %vm260, %v447, %v451
        %453 = vrot.lane.b32.xlu0 %v272, 4
        %v454 = vpop.permute.xlu0 %453
        %455 = vrot.lane.b32.xlu0 %v284, 4
        %v456 = vpop.permute.xlu0 %455
        %457 = vrot.lane.b32.xlu0 %v296, 4
        %v458 = vpop.permute.xlu0 %457
        %459 = vrot.lane.b32.xlu0 %v308, 4
        %v460 = vpop.permute.xlu0 %459
        %461 = vrot.lane.b32.xlu0 %v320, 4
        %v462 = vpop.permute.xlu0 %461
        %463 = vrot.lane.b32.xlu0 %v332, 4
        %v464 = vpop.permute.xlu0 %463
        %465 = vrot.lane.b32.xlu0 %v344, 4
        %v466 = vpop.permute.xlu0 %465
        %467 = vrot.lane.b32.xlu0 %v356, 4
        %v468 = vpop.permute.xlu0 %467
        %469 = vrot.lane.b32.xlu0 %v368, 4
        %v470 = vpop.permute.xlu0 %469
        %471 = vrot.lane.b32.xlu0 %v380, 4
        %v472 = vpop.permute.xlu0 %471
        %473 = vrot.lane.b32.xlu0 %v392, 4
        %v474 = vpop.permute.xlu0 %473
        %475 = vrot.lane.b32.xlu0 %v404, 4
        %v476 = vpop.permute.xlu0 %475
        %477 = vrot.lane.b32.xlu0 %v416, 4
        %v478 = vpop.permute.xlu0 %477
        %479 = vrot.lane.b32.xlu0 %v428, 4
        %v480 = vpop.permute.xlu0 %479
        %481 = vrot.lane.b32.xlu0 %v440, 4
        %v482 = vpop.permute.xlu0 %481
        %483 = vrot.lane.b32.xlu0 %v452, 4
        %v484 = vpop.permute.xlu0 %483
        %vm517 = vcmask 1046528
        %v518 = vrot.slane %v224, 1
        %v519 = vrot.slane %v225, 1
        %v520 = vsel %vm517, %v518, %v519
        %v521 = vrot.slane %v226, 1
        %v522 = vrot.slane %v227, 1
        %v523 = vsel %vm517, %v521, %v522
        %v524 = vrot.slane %v228, 1
        %v525 = vrot.slane %v229, 1
        %v526 = vsel %vm517, %v524, %v525
        %v527 = vrot.slane %v230, 1
        %v528 = vrot.slane %v231, 1
        %v529 = vsel %vm517, %v527, %v528
        %v530 = vrot.slane %v232, 1
        %v531 = vrot.slane %v233, 1
        %v532 = vsel %vm517, %v530, %v531
        %v533 = vrot.slane %v234, 1
        %v534 = vrot.slane %v235, 1
        %v535 = vsel %vm517, %v533, %v534
        %v536 = vrot.slane %v236, 1
        %v537 = vrot.slane %v237, 1
        %v538 = vsel %vm517, %v536, %v537
        %v539 = vrot.slane %v238, 1
        %v540 = vrot.slane %v239, 1
        %v541 = vsel %vm517, %v539, %v540
        %v542 = vrot.slane %v240, 1
        %v543 = vrot.slane %v241, 1
        %v544 = vsel %vm517, %v542, %v543
        %v545 = vrot.slane %v242, 1
        %v546 = vrot.slane %v243, 1
        %v547 = vsel %vm517, %v545, %v546
        %v548 = vrot.slane %v244, 1
        %v549 = vrot.slane %v245, 1
        %v550 = vsel %vm517, %v548, %v549
        %v551 = vrot.slane %v246, 1
        %v552 = vrot.slane %v247, 1
        %v553 = vsel %vm517, %v551, %v552
        %v554 = vrot.slane %v248, 1
        %v555 = vrot.slane %v249, 1
        %v556 = vsel %vm517, %v554, %v555
        %v557 = vrot.slane %v250, 1
        %v558 = vrot.slane %v251, 1
        %v559 = vsel %vm517, %v557, %v558
        %v560 = vrot.slane %v252, 1
        %v561 = vrot.slane %v253, 1
        %v562 = vsel %vm517, %v560, %v561
        %v563 = vrot.slane %v254, 1
        %v564 = vrot.slane %v255, 1
        %v565 = vsel %vm517, %v563, %v564
        %566 = vrot.lane.b32.xlu0 %v520, 8
        %v567 = vpop.permute.xlu0 %566
        %568 = vrot.lane.b32.xlu0 %v523, 8
        %v569 = vpop.permute.xlu0 %568
        %570 = vrot.lane.b32.xlu0 %v526, 8
        %v571 = vpop.permute.xlu0 %570
        %572 = vrot.lane.b32.xlu0 %v529, 8
        %v573 = vpop.permute.xlu0 %572
        %574 = vrot.lane.b32.xlu0 %v532, 8
        %v575 = vpop.permute.xlu0 %574
        %576 = vrot.lane.b32.xlu0 %v535, 8
        %v577 = vpop.permute.xlu0 %576
        %578 = vrot.lane.b32.xlu0 %v538, 8
        %v579 = vpop.permute.xlu0 %578
        %580 = vrot.lane.b32.xlu0 %v541, 8
        %v581 = vpop.permute.xlu0 %580
        %582 = vrot.lane.b32.xlu0 %v544, 8
        %v583 = vpop.permute.xlu0 %582
        %584 = vrot.lane.b32.xlu0 %v547, 8
        %v585 = vpop.permute.xlu0 %584
        %586 = vrot.lane.b32.xlu0 %v550, 8
        %v587 = vpop.permute.xlu0 %586
        %588 = vrot.lane.b32.xlu0 %v553, 8
        %v589 = vpop.permute.xlu0 %588
        %590 = vrot.lane.b32.xlu0 %v556, 8
        %v591 = vpop.permute.xlu0 %590
        %592 = vrot.lane.b32.xlu0 %v559, 8
        %v593 = vpop.permute.xlu0 %592
        %594 = vrot.lane.b32.xlu0 %v562, 8
        %v595 = vpop.permute.xlu0 %594
        %596 = vrot.lane.b32.xlu0 %v565, 8
        %v597 = vpop.permute.xlu0 %596
        %599 = vrot.lane.b32.xlu0 %v226, 12
        %v600 = vpop.permute.xlu0 %599
        %601 = vrot.lane.b32.xlu0 %v228, 12
        %v602 = vpop.permute.xlu0 %601
        %603 = vrot.lane.b32.xlu0 %v230, 12
        %v604 = vpop.permute.xlu0 %603
        %605 = vrot.lane.b32.xlu0 %v232, 12
        %v606 = vpop.permute.xlu0 %605
        %607 = vrot.lane.b32.xlu0 %v234, 12
        %v608 = vpop.permute.xlu0 %607
        %609 = vrot.lane.b32.xlu0 %v236, 12
        %v610 = vpop.permute.xlu0 %609
        %611 = vrot.lane.b32.xlu0 %v238, 12
        %v612 = vpop.permute.xlu0 %611
        %613 = vrot.lane.b32.xlu0 %v240, 12
        %v614 = vpop.permute.xlu0 %613
        %615 = vrot.lane.b32.xlu0 %v242, 12
        %v616 = vpop.permute.xlu0 %615
        %617 = vrot.lane.b32.xlu0 %v244, 12
        %v618 = vpop.permute.xlu0 %617
        %619 = vrot.lane.b32.xlu0 %v246, 12
        %v620 = vpop.permute.xlu0 %619
        %621 = vrot.lane.b32.xlu0 %v248, 12
        %v622 = vpop.permute.xlu0 %621
        %623 = vrot.lane.b32.xlu0 %v250, 12
        %v624 = vpop.permute.xlu0 %623
        %625 = vrot.lane.b32.xlu0 %v252, 12
        %v626 = vpop.permute.xlu0 %625
        %627 = vrot.lane.b32.xlu0 %v254, 12
        %v628 = vpop.permute.xlu0 %627
        %629 = vrot.lane.b32.xlu0 %v256, 12
        %v630 = vpop.permute.xlu0 %629
        %v632 = vshrl.u32 %v256, 16
        %v634 = vshll.u32 %v256, 16
        %v636 = vrot.slane %v634, 1
        %v637 = vor.u32 %v632, %v636
        %v639 = vshll.u32 %v257, 16
        %v641 = vrot.slane %v639, 1
        %v642 = vsel %vm260, %v637, %v641
        %643 = vrot.lane.b32.xlu0 %v284, 16
        %v644 = vpop.permute.xlu0 %643
        %645 = vrot.lane.b32.xlu0 %v296, 16
        %v646 = vpop.permute.xlu0 %645
        %647 = vrot.lane.b32.xlu0 %v308, 16
        %v648 = vpop.permute.xlu0 %647
        %649 = vrot.lane.b32.xlu0 %v320, 16
        %v650 = vpop.permute.xlu0 %649
        %651 = vrot.lane.b32.xlu0 %v332, 16
        %v652 = vpop.permute.xlu0 %651
        %653 = vrot.lane.b32.xlu0 %v344, 16
        %v654 = vpop.permute.xlu0 %653
        %655 = vrot.lane.b32.xlu0 %v356, 16
        %v656 = vpop.permute.xlu0 %655
        %657 = vrot.lane.b32.xlu0 %v368, 16
        %v658 = vpop.permute.xlu0 %657
        %659 = vrot.lane.b32.xlu0 %v380, 16
        %v660 = vpop.permute.xlu0 %659
        %661 = vrot.lane.b32.xlu0 %v392, 16
        %v662 = vpop.permute.xlu0 %661
        %663 = vrot.lane.b32.xlu0 %v404, 16
        %v664 = vpop.permute.xlu0 %663
        %665 = vrot.lane.b32.xlu0 %v416, 16
        %v666 = vpop.permute.xlu0 %665
        %667 = vrot.lane.b32.xlu0 %v428, 16
        %v668 = vpop.permute.xlu0 %667
        %669 = vrot.lane.b32.xlu0 %v440, 16
        %v670 = vpop.permute.xlu0 %669
        %671 = vrot.lane.b32.xlu0 %v452, 16
        %v672 = vpop.permute.xlu0 %671
        %673 = vrot.lane.b32.xlu0 %v642, 16
        %v674 = vpop.permute.xlu0 %673
        %v676 = vrot.slane %v256, 1
        %v677 = vrot.slane %v257, 1
        %v678 = vsel %vm517, %v676, %v677
        %679 = vrot.lane.b32.xlu0 %v523, 20
        %v680 = vpop.permute.xlu0 %679
        %681 = vrot.lane.b32.xlu0 %v526, 20
        %v682 = vpop.permute.xlu0 %681
        %683 = vrot.lane.b32.xlu0 %v529, 20
        %v684 = vpop.permute.xlu0 %683
        %685 = vrot.lane.b32.xlu0 %v532, 20
        %v686 = vpop.permute.xlu0 %685
        %687 = vrot.lane.b32.xlu0 %v535, 20
        %v688 = vpop.permute.xlu0 %687
        %689 = vrot.lane.b32.xlu0 %v538, 20
        %v690 = vpop.permute.xlu0 %689
        %691 = vrot.lane.b32.xlu0 %v541, 20
        %v692 = vpop.permute.xlu0 %691
        %693 = vrot.lane.b32.xlu0 %v544, 20
        %v694 = vpop.permute.xlu0 %693
        %695 = vrot.lane.b32.xlu0 %v547, 20
        %v696 = vpop.permute.xlu0 %695
        %697 = vrot.lane.b32.xlu0 %v550, 20
        %v698 = vpop.permute.xlu0 %697
        %699 = vrot.lane.b32.xlu0 %v553, 20
        %v700 = vpop.permute.xlu0 %699
        %701 = vrot.lane.b32.xlu0 %v556, 20
        %v702 = vpop.permute.xlu0 %701
        %703 = vrot.lane.b32.xlu0 %v559, 20
        %v704 = vpop.permute.xlu0 %703
        %705 = vrot.lane.b32.xlu0 %v562, 20
        %v706 = vpop.permute.xlu0 %705
        %707 = vrot.lane.b32.xlu0 %v565, 20
        %v708 = vpop.permute.xlu0 %707
        %709 = vrot.lane.b32.xlu0 %v678, 20
        %v710 = vpop.permute.xlu0 %709
        %712 = vrot.lane.b32.xlu0 %v228, 24
        %v713 = vpop.permute.xlu0 %712
        %714 = vrot.lane.b32.xlu0 %v230, 24
        %v715 = vpop.permute.xlu0 %714
        %716 = vrot.lane.b32.xlu0 %v232, 24
        %v717 = vpop.permute.xlu0 %716
        %718 = vrot.lane.b32.xlu0 %v234, 24
        %v719 = vpop.permute.xlu0 %718
        %720 = vrot.lane.b32.xlu0 %v236, 24
        %v721 = vpop.permute.xlu0 %720
        %722 = vrot.lane.b32.xlu0 %v238, 24
        %v723 = vpop.permute.xlu0 %722
        %724 = vrot.lane.b32.xlu0 %v240, 24
        %v725 = vpop.permute.xlu0 %724
        %726 = vrot.lane.b32.xlu0 %v242, 24
        %v727 = vpop.permute.xlu0 %726
        %728 = vrot.lane.b32.xlu0 %v244, 24
        %v729 = vpop.permute.xlu0 %728
        %730 = vrot.lane.b32.xlu0 %v246, 24
        %v731 = vpop.permute.xlu0 %730
        %732 = vrot.lane.b32.xlu0 %v248, 24
        %v733 = vpop.permute.xlu0 %732
        %734 = vrot.lane.b32.xlu0 %v250, 24
        %v735 = vpop.permute.xlu0 %734
        %736 = vrot.lane.b32.xlu0 %v252, 24
        %v737 = vpop.permute.xlu0 %736
        %738 = vrot.lane.b32.xlu0 %v254, 24
        %v739 = vpop.permute.xlu0 %738
        %740 = vrot.lane.b32.xlu0 %v256, 24
        %v741 = vpop.permute.xlu0 %740
        %742 = vrot.lane.b32.xlu0 %v258, 24
        %v743 = vpop.permute.xlu0 %742
        %v745 = vshrl.u32 %v258, 16
        %v747 = vshll.u32 %v258, 16
        %v749 = vrot.slane %v747, 1
        %v750 = vor.u32 %v745, %v749
        %v752 = vshll.u32 %v259, 16
        %v754 = vrot.slane %v752, 1
        %v755 = vsel %vm260, %v750, %v754
        %756 = vrot.lane.b32.xlu0 %v296, 28
        %v757 = vpop.permute.xlu0 %756
        %758 = vrot.lane.b32.xlu0 %v308, 28
        %v759 = vpop.permute.xlu0 %758
        %760 = vrot.lane.b32.xlu0 %v320, 28
        %v761 = vpop.permute.xlu0 %760
        %762 = vrot.lane.b32.xlu0 %v332, 28
        %v763 = vpop.permute.xlu0 %762
        %764 = vrot.lane.b32.xlu0 %v344, 28
        %v765 = vpop.permute.xlu0 %764
        %766 = vrot.lane.b32.xlu0 %v356, 28
        %v767 = vpop.permute.xlu0 %766
        %768 = vrot.lane.b32.xlu0 %v368, 28
        %v769 = vpop.permute.xlu0 %768
        %770 = vrot.lane.b32.xlu0 %v380, 28
        %v771 = vpop.permute.xlu0 %770
        %772 = vrot.lane.b32.xlu0 %v392, 28
        %v773 = vpop.permute.xlu0 %772
        %774 = vrot.lane.b32.xlu0 %v404, 28
        %v775 = vpop.permute.xlu0 %774
        %776 = vrot.lane.b32.xlu0 %v416, 28
        %v777 = vpop.permute.xlu0 %776
        %778 = vrot.lane.b32.xlu0 %v428, 28
        %v779 = vpop.permute.xlu0 %778
        %780 = vrot.lane.b32.xlu0 %v440, 28
        %v781 = vpop.permute.xlu0 %780
        %782 = vrot.lane.b32.xlu0 %v452, 28
        %v783 = vpop.permute.xlu0 %782
        %784 = vrot.lane.b32.xlu0 %v642, 28
        %v785 = vpop.permute.xlu0 %784
        %786 = vrot.lane.b32.xlu0 %v755, 28
        %v787 = vpop.permute.xlu0 %786
        %v789 = vrot.slane %v258, 1
        %v790 = vrot.slane %v259, 1
        %v791 = vsel %vm517, %v789, %v790
        %792 = vrot.lane.b32.xlu0 %v526, 32
        %v793 = vpop.permute.xlu0 %792
        %794 = vrot.lane.b32.xlu0 %v529, 32
        %v795 = vpop.permute.xlu0 %794
        %796 = vrot.lane.b32.xlu0 %v532, 32
        %v797 = vpop.permute.xlu0 %796
        %798 = vrot.lane.b32.xlu0 %v535, 32
        %v799 = vpop.permute.xlu0 %798
        %800 = vrot.lane.b32.xlu0 %v538, 32
        %v801 = vpop.permute.xlu0 %800
        %802 = vrot.lane.b32.xlu0 %v541, 32
        %v803 = vpop.permute.xlu0 %802
        %804 = vrot.lane.b32.xlu0 %v544, 32
        %v805 = vpop.permute.xlu0 %804
        %806 = vrot.lane.b32.xlu0 %v547, 32
        %v807 = vpop.permute.xlu0 %806
        %808 = vrot.lane.b32.xlu0 %v550, 32
        %v809 = vpop.permute.xlu0 %808
        %810 = vrot.lane.b32.xlu0 %v553, 32
        %v811 = vpop.permute.xlu0 %810
        %812 = vrot.lane.b32.xlu0 %v556, 32
        %v813 = vpop.permute.xlu0 %812
        %814 = vrot.lane.b32.xlu0 %v559, 32
        %v815 = vpop.permute.xlu0 %814
        %816 = vrot.lane.b32.xlu0 %v562, 32
        %v817 = vpop.permute.xlu0 %816
        %818 = vrot.lane.b32.xlu0 %v565, 32
        %v819 = vpop.permute.xlu0 %818
        %820 = vrot.lane.b32.xlu0 %v678, 32
        %v821 = vpop.permute.xlu0 %820
        %822 = vrot.lane.b32.xlu0 %v791, 32
        %v823 = vpop.permute.xlu0 %822
        %vm824 = vcmask 31744
        %v826 = vsel %vm824, %v224, %v454
        %v828 = vsel %vm824, %v226, %v456
        %v830 = vsel %vm824, %v228, %v458
        %v832 = vsel %vm824, %v230, %v460
        %v834 = vsel %vm824, %v232, %v462
        %v836 = vsel %vm824, %v234, %v464
        %v838 = vsel %vm824, %v236, %v466
        %v840 = vsel %vm824, %v238, %v468
        %v842 = vsel %vm824, %v240, %v470
        %v844 = vsel %vm824, %v242, %v472
        %v846 = vsel %vm824, %v244, %v474
        %v848 = vsel %vm824, %v246, %v476
        %v850 = vsel %vm824, %v248, %v478
        %v852 = vsel %vm824, %v250, %v480
        %v854 = vsel %vm824, %v252, %v482
        %v856 = vsel %vm824, %v254, %v484
        %vm857 = vcmask 64512
        %v859 = vsel %vm857, %v826, %v567
        %v861 = vsel %vm857, %v828, %v569
        %v863 = vsel %vm857, %v830, %v571
        %v865 = vsel %vm857, %v832, %v573
        %v867 = vsel %vm857, %v834, %v575
        %v869 = vsel %vm857, %v836, %v577
        %v871 = vsel %vm857, %v838, %v579
        %v873 = vsel %vm857, %v840, %v581
        %v875 = vsel %vm857, %v842, %v583
        %v877 = vsel %vm857, %v844, %v585
        %v879 = vsel %vm857, %v846, %v587
        %v881 = vsel %vm857, %v848, %v589
        %v883 = vsel %vm857, %v850, %v591
        %v885 = vsel %vm857, %v852, %v593
        %v887 = vsel %vm857, %v854, %v595
        %v889 = vsel %vm857, %v856, %v597
        %vm890 = vcmask 97280
        %v892 = vsel %vm890, %v859, %v600
        %v894 = vsel %vm890, %v861, %v602
        %v896 = vsel %vm890, %v863, %v604
        %v898 = vsel %vm890, %v865, %v606
        %v900 = vsel %vm890, %v867, %v608
        %v902 = vsel %vm890, %v869, %v610
        %v904 = vsel %vm890, %v871, %v612
        %v906 = vsel %vm890, %v873, %v614
        %v908 = vsel %vm890, %v875, %v616
        %v910 = vsel %vm890, %v877, %v618
        %v912 = vsel %vm890, %v879, %v620
        %v914 = vsel %vm890, %v881, %v622
        %v916 = vsel %vm890, %v883, %v624
        %v918 = vsel %vm890, %v885, %v626
        %v920 = vsel %vm890, %v887, %v628
        %v922 = vsel %vm890, %v889, %v630
        %vm923 = vcmask 130048
        %v925 = vsel %vm923, %v892, %v644
        %v927 = vsel %vm923, %v894, %v646
        %v929 = vsel %vm923, %v896, %v648
        %v931 = vsel %vm923, %v898, %v650
        %v933 = vsel %vm923, %v900, %v652
        %v935 = vsel %vm923, %v902, %v654
        %v937 = vsel %vm923, %v904, %v656
        %v939 = vsel %vm923, %v906, %v658
        %v941 = vsel %vm923, %v908, %v660
        %v943 = vsel %vm923, %v910, %v662
        %v945 = vsel %vm923, %v912, %v664
        %v947 = vsel %vm923, %v914, %v666
        %v949 = vsel %vm923, %v916, %v668
        %v951 = vsel %vm923, %v918, %v670
        %v953 = vsel %vm923, %v920, %v672
        %v955 = vsel %vm923, %v922, %v674
        %vm956 = vcmask 162816
        %v958 = vsel %vm956, %v925, %v680
        %v960 = vsel %vm956, %v927, %v682
        %v962 = vsel %vm956, %v929, %v684
        %v964 = vsel %vm956, %v931, %v686
        %v966 = vsel %vm956, %v933, %v688
        %v968 = vsel %vm956, %v935, %v690
        %v970 = vsel %vm956, %v937, %v692
        %v972 = vsel %vm956, %v939, %v694
        %v974 = vsel %vm956, %v941, %v696
        %v976 = vsel %vm956, %v943, %v698
        %v978 = vsel %vm956, %v945, %v700
        %v980 = vsel %vm956, %v947, %v702
        %v982 = vsel %vm956, %v949, %v704
        %v984 = vsel %vm956, %v951, %v706
        %v986 = vsel %vm956, %v953, %v708
        %v988 = vsel %vm956, %v955, %v710
        %vm989 = vcmask 195584
        %v991 = vsel %vm989, %v958, %v713
        %v993 = vsel %vm989, %v960, %v715
        %v995 = vsel %vm989, %v962, %v717
        %v997 = vsel %vm989, %v964, %v719
        %v999 = vsel %vm989, %v966, %v721
        %v1001 = vsel %vm989, %v968, %v723
        %v1003 = vsel %vm989, %v970, %v725
        %v1005 = vsel %vm989, %v972, %v727
        %v1007 = vsel %vm989, %v974, %v729
        %v1009 = vsel %vm989, %v976, %v731
        %v1011 = vsel %vm989, %v978, %v733
        %v1013 = vsel %vm989, %v980, %v735
        %v1015 = vsel %vm989, %v982, %v737
        %v1017 = vsel %vm989, %v984, %v739
        %v1019 = vsel %vm989, %v986, %v741
        %v1021 = vsel %vm989, %v988, %v743
        %vm1022 = vcmask 228352
        %v1024 = vsel %vm1022, %v991, %v757
        %v1026 = vsel %vm1022, %v993, %v759
        %v1028 = vsel %vm1022, %v995, %v761
        %v1030 = vsel %vm1022, %v997, %v763
        %v1032 = vsel %vm1022, %v999, %v765
        %v1034 = vsel %vm1022, %v1001, %v767
        %v1036 = vsel %vm1022, %v1003, %v769
        %v1038 = vsel %vm1022, %v1005, %v771
        %v1040 = vsel %vm1022, %v1007, %v773
        %v1042 = vsel %vm1022, %v1009, %v775
        %v1044 = vsel %vm1022, %v1011, %v777
        %v1046 = vsel %vm1022, %v1013, %v779
        %v1048 = vsel %vm1022, %v1015, %v781
        %v1050 = vsel %vm1022, %v1017, %v783
        %v1052 = vsel %vm1022, %v1019, %v785
        %v1054 = vsel %vm1022, %v1021, %v787
        %vm1055 = vcmask 261120
        %v1057 = vsel %vm1055, %v1024, %v793
        %v1059 = vsel %vm1055, %v1026, %v795
        %v1061 = vsel %vm1055, %v1028, %v797
        %v1063 = vsel %vm1055, %v1030, %v799
        %v1065 = vsel %vm1055, %v1032, %v801
        %v1067 = vsel %vm1055, %v1034, %v803
        %v1069 = vsel %vm1055, %v1036, %v805
        %v1071 = vsel %vm1055, %v1038, %v807
        %v1073 = vsel %vm1055, %v1040, %v809
        %v1075 = vsel %vm1055, %v1042, %v811
        %v1077 = vsel %vm1055, %v1044, %v813
        %v1079 = vsel %vm1055, %v1046, %v815
        %v1081 = vsel %vm1055, %v1048, %v817
        %v1083 = vsel %vm1055, %v1050, %v819
        %v1085 = vsel %vm1055, %v1052, %v821
        %v1087 = vsel %vm1055, %v1054, %v823
        %v1088 = vld [vmem:[%s1] sm:$0xf]
        %v1089 = vld [vmem:[%s1 + $0x4] sm:$0xf]
        %v1090 = vld [vmem:[%s1 + $0x8] sm:$0xf]
        %v1091 = vld [vmem:[%s1 + $0xc] sm:$0xf]
        %v1092 = vld [vmem:[%s1 + $0x10] sm:$0x3]
        %v1098 = vunpack.c.l.b16 %v1088
        %v1099 = vunpack.c.l.b16 %v1089
        %v1100 = vunpack.c.l.b16 %v1090
        %v1101 = vunpack.c.l.b16 %v1091
        %v1102 = vunpack.c.l.b16 %v1092
        %v1103 = vpack.c.b16 %v1099, %v1098
        %v1104 = vpack.c.b16 %v1101, %v1100
        %v1105 = vpack.c.b16 %v1102, %v1102
        %vm1108 = vcmask 293888
        %v1109 = vsel %vm1108, %v1057, 0
        %v1111 = vsel %vm1108, %v1059, 0
        %v1113 = vsel %vm1108, %v1061, 0
        %v1115 = vsel %vm1108, %v1063, 0
        %v1117 = vsel %vm1108, %v1065, 0
        %v1119 = vsel %vm1108, %v1067, 0
        %v1121 = vsel %vm1108, %v1069, 0
        %v1123 = vsel %vm1108, %v1071, 0
        %v1125 = vsel %vm1108, %v1073, 0
        %v1127 = vsel %vm1108, %v1075, 0
        %v1129 = vsel %vm1108, %v1077, 0
        %v1131 = vsel %vm1108, %v1079, 0
        %v1133 = vsel %vm1108, %v1081, 0
        %v1135 = vsel %vm1108, %v1083, 0
        %v1137 = vsel %vm1108, %v1085, 0
        %v1139 = vsel %vm1108, %v1087, 0
        %vm1141 = vcmask 1041408
        %v1143 = vsel %vm1141, %v1105, 0
        %1145 = vmatprep.subr.bf16.mxu0 0
        %1146 = vmatpush1.bf16.msra.mxu0 0
        %1147 = vmatprep.subr.bf16.mxu0 0
        %1148 = vmatpush1.bf16.msra.mxu0 0
        %1149 = vmatprep.subr.bf16.mxu0 0
        %1150 = vmatpush1.bf16.msra.mxu0 0
        %1151 = vmatprep.subr.bf16.mxu0 0
        %1152 = vmatpush1.bf16.msra.mxu0 0
        %1153 = vmatprep.subr.bf16.mxu0 0
        %1154 = vmatpush1.bf16.msra.mxu0 0
        %1155 = vmatprep.subr.bf16.mxu0 0
        %1156 = vmatpush1.bf16.msra.mxu0 %v1143
        %1157 = vmatprep.subr.bf16.mxu0 0
        %1158 = vmatpush1.bf16.msra.mxu0 %v1104
        %1159 = vmatprep.subr.bf16.mxu0 0
        %1160 = vmatpush1.bf16.msra.mxu0 %v1103
        %1161 = vmatprep.subr.bf16.mxu0 0
        %1162 = vmatpush2.bf16.msra.mxu0 0
        %1163 = vmatprep.subr.bf16.mxu0 0
        %1164 = vmatpush2.bf16.msra.mxu0 0
        %1165 = vmatprep.subr.bf16.mxu0 0
        %1166 = vmatpush2.bf16.msra.mxu0 0
        %1167 = vmatprep.subr.bf16.mxu0 0
        %1168 = vmatpush2.bf16.msra.mxu0 0
        %1169 = vmatprep.subr.bf16.mxu0 0
        %1170 = vmatpush2.bf16.msra.mxu0 0
        %1171 = vmatprep.subr.bf16.mxu0 0
        %1172 = vmatpush2.bf16.msra.mxu0 0
        %1173 = vmatprep.subr.bf16.mxu0 0
        %1174 = vmatpush2.bf16.msra.mxu0 0
        %1175 = vmatprep.subr.bf16.mxu0 0
        %1176 = vmatpush2.bf16.msra.mxu0 0
        %1177 = vmatprep.mubr.bf16.mxu0 0
        %1178 = vmatmul.mubr.bf16.gmra.mxu0 %v1109
        %v1179 = vpop.f32.mrf.mxu0
        %v1180 = vadd.f32 0.0, %v1179
        %v1181 = vpop.f32.mrf.mxu0
        %v1182 = vpop.f32.mrf.mxu0
        %v1183 = vadd.f32 0.0, %v1182
        %v1184 = vpop.f32.mrf.mxu0
        %1185 = vmatprep.mubr.bf16.mxu0 0
        %1186 = vmatmul.mubr.bf16.gmra.mxu0 %v1111
        %v1187 = vpop.f32.mrf.mxu0
        %v1188 = vadd.f32 0.0, %v1187
        %v1189 = vpop.f32.mrf.mxu0
        %v1190 = vpop.f32.mrf.mxu0
        %v1191 = vadd.f32 0.0, %v1190
        %v1192 = vpop.f32.mrf.mxu0
        %1193 = vmatprep.mubr.bf16.mxu0 0
        %1194 = vmatmul.mubr.bf16.gmra.mxu0 %v1113
        %v1195 = vpop.f32.mrf.mxu0
        %v1196 = vadd.f32 0.0, %v1195
        %v1197 = vpop.f32.mrf.mxu0
        %v1198 = vpop.f32.mrf.mxu0
        %v1199 = vadd.f32 0.0, %v1198
        %v1200 = vpop.f32.mrf.mxu0
        %1201 = vmatprep.mubr.bf16.mxu0 0
        %1202 = vmatmul.mubr.bf16.gmra.mxu0 %v1115
        %v1203 = vpop.f32.mrf.mxu0
        %v1204 = vadd.f32 0.0, %v1203
        %v1205 = vpop.f32.mrf.mxu0
        %v1206 = vpop.f32.mrf.mxu0
        %v1207 = vadd.f32 0.0, %v1206
        %v1208 = vpop.f32.mrf.mxu0
        %1209 = vmatprep.mubr.bf16.mxu0 0
        %1210 = vmatmul.mubr.bf16.gmra.mxu0 %v1117
        %v1211 = vpop.f32.mrf.mxu0
        %v1212 = vadd.f32 0.0, %v1211
        %v1213 = vpop.f32.mrf.mxu0
        %v1214 = vpop.f32.mrf.mxu0
        %v1215 = vadd.f32 0.0, %v1214
        %v1216 = vpop.f32.mrf.mxu0
        %1217 = vmatprep.mubr.bf16.mxu0 0
        %1218 = vmatmul.mubr.bf16.gmra.mxu0 %v1119
        %v1219 = vpop.f32.mrf.mxu0
        %v1220 = vadd.f32 0.0, %v1219
        %v1221 = vpop.f32.mrf.mxu0
        %v1222 = vpop.f32.mrf.mxu0
        %v1223 = vadd.f32 0.0, %v1222
        %v1224 = vpop.f32.mrf.mxu0
        %1225 = vmatprep.mubr.bf16.mxu0 0
        %1226 = vmatmul.mubr.bf16.gmra.mxu0 %v1121
        %v1227 = vpop.f32.mrf.mxu0
        %v1228 = vadd.f32 0.0, %v1227
        %v1229 = vpop.f32.mrf.mxu0
        %v1230 = vpop.f32.mrf.mxu0
        %v1231 = vadd.f32 0.0, %v1230
        %v1232 = vpop.f32.mrf.mxu0
        %1233 = vmatprep.mubr.bf16.mxu0 0
        %1234 = vmatmul.mubr.bf16.gmra.mxu0 %v1123
        %v1235 = vpop.f32.mrf.mxu0
        %v1236 = vadd.f32 0.0, %v1235
        %v1237 = vpop.f32.mrf.mxu0
        %v1238 = vpop.f32.mrf.mxu0
        %v1239 = vadd.f32 0.0, %v1238
        %v1240 = vpop.f32.mrf.mxu0
        %1241 = vmatprep.mubr.bf16.mxu0 0
        %1242 = vmatmul.mubr.bf16.gmra.mxu0 %v1125
        %v1243 = vpop.f32.mrf.mxu0
        %v1244 = vadd.f32 0.0, %v1243
        %v1245 = vpop.f32.mrf.mxu0
        %v1246 = vpop.f32.mrf.mxu0
        %v1247 = vadd.f32 0.0, %v1246
        %v1248 = vpop.f32.mrf.mxu0
        %1249 = vmatprep.mubr.bf16.mxu0 0
        %1250 = vmatmul.mubr.bf16.gmra.mxu0 %v1127
        %v1251 = vpop.f32.mrf.mxu0
        %v1252 = vadd.f32 0.0, %v1251
        %v1253 = vpop.f32.mrf.mxu0
        %v1254 = vpop.f32.mrf.mxu0
        %v1255 = vadd.f32 0.0, %v1254
        %v1256 = vpop.f32.mrf.mxu0
        %1257 = vmatprep.mubr.bf16.mxu0 0
        %1258 = vmatmul.mubr.bf16.gmra.mxu0 %v1129
        %v1259 = vpop.f32.mrf.mxu0
        %v1260 = vadd.f32 0.0, %v1259
        %v1261 = vpop.f32.mrf.mxu0
        %v1262 = vpop.f32.mrf.mxu0
        %v1263 = vadd.f32 0.0, %v1262
        %v1264 = vpop.f32.mrf.mxu0
        %1265 = vmatprep.mubr.bf16.mxu0 0
        %1266 = vmatmul.mubr.bf16.gmra.mxu0 %v1131
        %v1267 = vpop.f32.mrf.mxu0
        %v1268 = vadd.f32 0.0, %v1267
        %v1269 = vpop.f32.mrf.mxu0
        %v1270 = vpop.f32.mrf.mxu0
        %v1271 = vadd.f32 0.0, %v1270
        %v1272 = vpop.f32.mrf.mxu0
        %1273 = vmatprep.mubr.bf16.mxu0 0
        %1274 = vmatmul.mubr.bf16.gmra.mxu0 %v1133
        %v1275 = vpop.f32.mrf.mxu0
        %v1276 = vadd.f32 0.0, %v1275
        %v1277 = vpop.f32.mrf.mxu0
        %v1278 = vpop.f32.mrf.mxu0
        %v1279 = vadd.f32 0.0, %v1278
        %v1280 = vpop.f32.mrf.mxu0
        %1281 = vmatprep.mubr.bf16.mxu0 0
        %1282 = vmatmul.mubr.bf16.gmra.mxu0 %v1135
        %v1283 = vpop.f32.mrf.mxu0
        %v1284 = vadd.f32 0.0, %v1283
        %v1285 = vpop.f32.mrf.mxu0
        %v1286 = vpop.f32.mrf.mxu0
        %v1287 = vadd.f32 0.0, %v1286
        %v1288 = vpop.f32.mrf.mxu0
        %1289 = vmatprep.mubr.bf16.mxu0 0
        %1290 = vmatmul.mubr.bf16.gmra.mxu0 %v1137
        %v1291 = vpop.f32.mrf.mxu0
        %v1292 = vadd.f32 0.0, %v1291
        %v1293 = vpop.f32.mrf.mxu0
        %v1294 = vpop.f32.mrf.mxu0
        %v1295 = vadd.f32 0.0, %v1294
        %v1296 = vpop.f32.mrf.mxu0
        %1297 = vmatprep.mubr.bf16.mxu0 0
        %1298 = vmatmul.mubr.bf16.gmra.mxu0 %v1139
        %v1299 = vpop.f32.mrf.mxu0
        %v1300 = vadd.f32 0.0, %v1299
        %v1301 = vpop.f32.mrf.mxu0
        %v1302 = vpop.f32.mrf.mxu0
        %v1303 = vadd.f32 0.0, %v1302
        %v1304 = vpop.f32.mrf.mxu0
        %1305 = vdwg.mxu0
        %v1306 = vsel %vm824, %v1180, 0.0
        %v1307 = vsel %vm824, %v1183, 0.0
        %v1308 = vadd.f32 %v1306, %v1307
        %v1309 = vsel %vm824, %v1188, 0.0
        %v1310 = vadd.f32 %v1308, %v1309
        %v1311 = vsel %vm824, %v1191, 0.0
        %v1312 = vadd.f32 %v1310, %v1311
        %v1313 = vsel %vm824, %v1196, 0.0
        %v1314 = vadd.f32 %v1312, %v1313
        %v1315 = vsel %vm824, %v1199, 0.0
        %v1316 = vadd.f32 %v1314, %v1315
        %v1317 = vsel %vm824, %v1204, 0.0
        %v1318 = vadd.f32 %v1316, %v1317
        %v1319 = vsel %vm824, %v1207, 0.0
        %v1320 = vadd.f32 %v1318, %v1319
        %v1321 = vsel %vm824, %v1212, 0.0
        %v1322 = vadd.f32 %v1320, %v1321
        %v1323 = vsel %vm824, %v1215, 0.0
        %v1324 = vadd.f32 %v1322, %v1323
        %v1325 = vsel %vm824, %v1220, 0.0
        %v1326 = vadd.f32 %v1324, %v1325
        %v1327 = vsel %vm824, %v1223, 0.0
        %v1328 = vadd.f32 %v1326, %v1327
        %v1329 = vsel %vm824, %v1228, 0.0
        %v1330 = vadd.f32 %v1328, %v1329
        %v1331 = vsel %vm824, %v1231, 0.0
        %v1332 = vadd.f32 %v1330, %v1331
        %v1333 = vsel %vm824, %v1236, 0.0
        %v1334 = vadd.f32 %v1332, %v1333
        %v1335 = vsel %vm824, %v1239, 0.0
        %v1336 = vadd.f32 %v1334, %v1335
        %v1337 = vsel %vm824, %v1244, 0.0
        %v1338 = vadd.f32 %v1336, %v1337
        %v1339 = vsel %vm824, %v1247, 0.0
        %v1340 = vadd.f32 %v1338, %v1339
        %v1341 = vsel %vm824, %v1252, 0.0
        %v1342 = vadd.f32 %v1340, %v1341
        %v1343 = vsel %vm824, %v1255, 0.0
        %v1344 = vadd.f32 %v1342, %v1343
        %v1345 = vsel %vm824, %v1260, 0.0
        %v1346 = vadd.f32 %v1344, %v1345
        %v1347 = vsel %vm824, %v1263, 0.0
        %v1348 = vadd.f32 %v1346, %v1347
        %v1349 = vsel %vm824, %v1268, 0.0
        %v1350 = vadd.f32 %v1348, %v1349
        %v1351 = vsel %vm824, %v1271, 0.0
        %v1352 = vadd.f32 %v1350, %v1351
        %v1353 = vsel %vm824, %v1276, 0.0
        %v1354 = vadd.f32 %v1352, %v1353
        %v1355 = vsel %vm824, %v1279, 0.0
        %v1356 = vadd.f32 %v1354, %v1355
        %v1357 = vsel %vm824, %v1284, 0.0
        %v1358 = vadd.f32 %v1356, %v1357
        %v1359 = vsel %vm824, %v1287, 0.0
        %v1360 = vadd.f32 %v1358, %v1359
        %v1361 = vsel %vm824, %v1292, 0.0
        %v1362 = vadd.f32 %v1360, %v1361
        %v1363 = vsel %vm824, %v1295, 0.0
        %v1364 = vadd.f32 %v1362, %v1363
        %v1365 = vsel %vm824, %v1300, 0.0
        %v1366 = vadd.f32 %v1364, %v1365
        %v1367 = vsel %vm824, %v1303, 0.0
        %v1368 = vadd.f32 %v1366, %v1367
        %v1369 = vrot.slane %v1368, 4
        %v1370 = vadd.f32 %v1368, %v1369
        %v1371 = vrot.slane %v1370, 2
        %v1372 = vadd.f32 %v1370, %v1371
        %v1373 = vrot.slane %v1372, 1
        %v1374 = vadd.f32 %v1372, %v1373
        %v1375 = vrcp.pop 256.0
        %v1376 = vmul.f32 %v1374, %v1375
        %v1377 = vsub.f32 %v1180, %v1376
        %v1378 = vsub.f32 %v1183, %v1376
        %v1379 = vsub.f32 %v1188, %v1376
        %v1380 = vsub.f32 %v1191, %v1376
        %v1381 = vsub.f32 %v1196, %v1376
        %v1382 = vsub.f32 %v1199, %v1376
        %v1383 = vsub.f32 %v1204, %v1376
        %v1384 = vsub.f32 %v1207, %v1376
        %v1385 = vsub.f32 %v1212, %v1376
        %v1386 = vsub.f32 %v1215, %v1376
        %v1387 = vsub.f32 %v1220, %v1376
        %v1388 = vsub.f32 %v1223, %v1376
        %v1389 = vsub.f32 %v1228, %v1376
        %v1390 = vsub.f32 %v1231, %v1376
        %v1391 = vsub.f32 %v1236, %v1376
        %v1392 = vsub.f32 %v1239, %v1376
        %v1393 = vsub.f32 %v1244, %v1376
        %v1394 = vsub.f32 %v1247, %v1376
        %v1395 = vsub.f32 %v1252, %v1376
        %v1396 = vsub.f32 %v1255, %v1376
        %v1397 = vsub.f32 %v1260, %v1376
        %v1398 = vsub.f32 %v1263, %v1376
        %v1399 = vsub.f32 %v1268, %v1376
        %v1400 = vsub.f32 %v1271, %v1376
        %v1401 = vsub.f32 %v1276, %v1376
        %v1402 = vsub.f32 %v1279, %v1376
        %v1403 = vsub.f32 %v1284, %v1376
        %v1404 = vsub.f32 %v1287, %v1376
        %v1405 = vsub.f32 %v1292, %v1376
        %v1406 = vsub.f32 %v1295, %v1376
        %v1407 = vsub.f32 %v1300, %v1376
        %v1408 = vsub.f32 %v1303, %v1376
        %v1409 = vmul.f32 %v1377, %v1377
        %v1410 = vmul.f32 %v1378, %v1378
        %v1411 = vmul.f32 %v1379, %v1379
        %v1412 = vmul.f32 %v1380, %v1380
        %v1413 = vmul.f32 %v1381, %v1381
        %v1414 = vmul.f32 %v1382, %v1382
        %v1415 = vmul.f32 %v1383, %v1383
        %v1416 = vmul.f32 %v1384, %v1384
        %v1417 = vmul.f32 %v1385, %v1385
        %v1418 = vmul.f32 %v1386, %v1386
        %v1419 = vmul.f32 %v1387, %v1387
        %v1420 = vmul.f32 %v1388, %v1388
        %v1421 = vmul.f32 %v1389, %v1389
        %v1422 = vmul.f32 %v1390, %v1390
        %v1423 = vmul.f32 %v1391, %v1391
        %v1424 = vmul.f32 %v1392, %v1392
        %v1425 = vmul.f32 %v1393, %v1393
        %v1426 = vmul.f32 %v1394, %v1394
        %v1427 = vmul.f32 %v1395, %v1395
        %v1428 = vmul.f32 %v1396, %v1396
        %v1429 = vmul.f32 %v1397, %v1397
        %v1430 = vmul.f32 %v1398, %v1398
        %v1431 = vmul.f32 %v1399, %v1399
        %v1432 = vmul.f32 %v1400, %v1400
        %v1433 = vmul.f32 %v1401, %v1401
        %v1434 = vmul.f32 %v1402, %v1402
        %v1435 = vmul.f32 %v1403, %v1403
        %v1436 = vmul.f32 %v1404, %v1404
        %v1437 = vmul.f32 %v1405, %v1405
        %v1438 = vmul.f32 %v1406, %v1406
        %v1439 = vmul.f32 %v1407, %v1407
        %v1440 = vmul.f32 %v1408, %v1408
        %v1441 = vsel %vm824, %v1409, 0.0
        %v1442 = vsel %vm824, %v1410, 0.0
        %v1443 = vadd.f32 %v1441, %v1442
        %v1444 = vsel %vm824, %v1411, 0.0
        %v1445 = vadd.f32 %v1443, %v1444
        %v1446 = vsel %vm824, %v1412, 0.0
        %v1447 = vadd.f32 %v1445, %v1446
        %v1448 = vsel %vm824, %v1413, 0.0
        %v1449 = vadd.f32 %v1447, %v1448
        %v1450 = vsel %vm824, %v1414, 0.0
        %v1451 = vadd.f32 %v1449, %v1450
        %v1452 = vsel %vm824, %v1415, 0.0
        %v1453 = vadd.f32 %v1451, %v1452
        %v1454 = vsel %vm824, %v1416, 0.0
        %v1455 = vadd.f32 %v1453, %v1454
        %v1456 = vsel %vm824, %v1417, 0.0
        %v1457 = vadd.f32 %v1455, %v1456
        %v1458 = vsel %vm824, %v1418, 0.0
        %v1459 = vadd.f32 %v1457, %v1458
        %v1460 = vsel %vm824, %v1419, 0.0
        %v1461 = vadd.f32 %v1459, %v1460
        %v1462 = vsel %vm824, %v1420, 0.0
        %v1463 = vadd.f32 %v1461, %v1462
        %v1464 = vsel %vm824, %v1421, 0.0
        %v1465 = vadd.f32 %v1463, %v1464
        %v1466 = vsel %vm824, %v1422, 0.0
        %v1467 = vadd.f32 %v1465, %v1466
        %v1468 = vsel %vm824, %v1423, 0.0
        %v1469 = vadd.f32 %v1467, %v1468
        %v1470 = vsel %vm824, %v1424, 0.0
        %v1471 = vadd.f32 %v1469, %v1470
        %v1472 = vsel %vm824, %v1425, 0.0
        %v1473 = vadd.f32 %v1471, %v1472
        %v1474 = vsel %vm824, %v1426, 0.0
        %v1475 = vadd.f32 %v1473, %v1474
        %v1476 = vsel %vm824, %v1427, 0.0
        %v1477 = vadd.f32 %v1475, %v1476
        %v1478 = vsel %vm824, %v1428, 0.0
        %v1479 = vadd.f32 %v1477, %v1478
        %v1480 = vsel %vm824, %v1429, 0.0
        %v1481 = vadd.f32 %v1479, %v1480
        %v1482 = vsel %vm824, %v1430, 0.0
        %v1483 = vadd.f32 %v1481, %v1482
        %v1484 = vsel %vm824, %v1431, 0.0
        %v1485 = vadd.f32 %v1483, %v1484
        %v1486 = vsel %vm824, %v1432, 0.0
        %v1487 = vadd.f32 %v1485, %v1486
        %v1488 = vsel %vm824, %v1433, 0.0
        %v1489 = vadd.f32 %v1487, %v1488
        %v1490 = vsel %vm824, %v1434, 0.0
        %v1491 = vadd.f32 %v1489, %v1490
        %v1492 = vsel %vm824, %v1435, 0.0
        %v1493 = vadd.f32 %v1491, %v1492
        %v1494 = vsel %vm824, %v1436, 0.0
        %v1495 = vadd.f32 %v1493, %v1494
        %v1496 = vsel %vm824, %v1437, 0.0
        %v1497 = vadd.f32 %v1495, %v1496
        %v1498 = vsel %vm824, %v1438, 0.0
        %v1499 = vadd.f32 %v1497, %v1498
        %v1500 = vsel %vm824, %v1439, 0.0
        %v1501 = vadd.f32 %v1499, %v1500
        %v1502 = vsel %vm824, %v1440, 0.0
        %v1503 = vadd.f32 %v1501, %v1502
        %v1504 = vrot.slane %v1503, 4
        %v1505 = vadd.f32 %v1503, %v1504
        %v1506 = vrot.slane %v1505, 2
        %v1507 = vadd.f32 %v1505, %v1506
        %v1508 = vrot.slane %v1507, 1
        %v1509 = vadd.f32 %v1507, %v1508
        %v1510 = vmul.f32 %v1509, %v1375
        %v1511 = vadd.f32 %v1510, 1e-05
        %v1512 = vrsqrt.pop %v1511
        %v1513 = vmul.f32 %v1377, %v1512
        %v1514 = vmul.f32 %v1378, %v1512
        %v1515 = vmul.f32 %v1379, %v1512
        %v1516 = vmul.f32 %v1380, %v1512
        %v1517 = vmul.f32 %v1381, %v1512
        %v1518 = vmul.f32 %v1382, %v1512
        %v1519 = vmul.f32 %v1383, %v1512
        %v1520 = vmul.f32 %v1384, %v1512
        %v1521 = vmul.f32 %v1385, %v1512
        %v1522 = vmul.f32 %v1386, %v1512
        %v1523 = vmul.f32 %v1387, %v1512
        %v1524 = vmul.f32 %v1388, %v1512
        %v1525 = vmul.f32 %v1389, %v1512
        %v1526 = vmul.f32 %v1390, %v1512
        %v1527 = vmul.f32 %v1391, %v1512
        %v1528 = vmul.f32 %v1392, %v1512
        %v1529 = vmul.f32 %v1393, %v1512
        %v1530 = vmul.f32 %v1394, %v1512
        %v1531 = vmul.f32 %v1395, %v1512
        %v1532 = vmul.f32 %v1396, %v1512
        %v1533 = vmul.f32 %v1397, %v1512
        %v1534 = vmul.f32 %v1398, %v1512
        %v1535 = vmul.f32 %v1399, %v1512
        %v1536 = vmul.f32 %v1400, %v1512
        %v1537 = vmul.f32 %v1401, %v1512
        %v1538 = vmul.f32 %v1402, %v1512
        %v1539 = vmul.f32 %v1403, %v1512
        %v1540 = vmul.f32 %v1404, %v1512
        %v1541 = vmul.f32 %v1405, %v1512
        %v1542 = vmul.f32 %v1406, %v1512
        %v1543 = vmul.f32 %v1407, %v1512
        %v1544 = vmul.f32 %v1408, %v1512
        %v1545 = vmax.f32 %v1513, 0.0
        %v1546 = vmax.f32 %v1514, 0.0
        %v1547 = vmax.f32 %v1515, 0.0
        %v1548 = vmax.f32 %v1516, 0.0
        %v1549 = vmax.f32 %v1517, 0.0
        %v1550 = vmax.f32 %v1518, 0.0
        %v1551 = vmax.f32 %v1519, 0.0
        %v1552 = vmax.f32 %v1520, 0.0
        %v1553 = vmax.f32 %v1521, 0.0
        %v1554 = vmax.f32 %v1522, 0.0
        %v1555 = vmax.f32 %v1523, 0.0
        %v1556 = vmax.f32 %v1524, 0.0
        %v1557 = vmax.f32 %v1525, 0.0
        %v1558 = vmax.f32 %v1526, 0.0
        %v1559 = vmax.f32 %v1527, 0.0
        %v1560 = vmax.f32 %v1528, 0.0
        %v1561 = vmax.f32 %v1529, 0.0
        %v1562 = vmax.f32 %v1530, 0.0
        %v1563 = vmax.f32 %v1531, 0.0
        %v1564 = vmax.f32 %v1532, 0.0
        %v1565 = vmax.f32 %v1533, 0.0
        %v1566 = vmax.f32 %v1534, 0.0
        %v1567 = vmax.f32 %v1535, 0.0
        %v1568 = vmax.f32 %v1536, 0.0
        %v1569 = vmax.f32 %v1537, 0.0
        %v1570 = vmax.f32 %v1538, 0.0
        %v1571 = vmax.f32 %v1539, 0.0
        %v1572 = vmax.f32 %v1540, 0.0
        %v1573 = vmax.f32 %v1541, 0.0
        %v1574 = vmax.f32 %v1542, 0.0
        %v1575 = vmax.f32 %v1543, 0.0
        %v1576 = vmax.f32 %v1544, 0.0
        %vm1577 = vcmask 27648
        %1578 = vst.msk [vmem:[#allocation2] sm:$0xf] %vm1577, 0
        %1579 = vst.msk [vmem:[#allocation2 + $0x4] sm:$0xf] %vm1577, 0
        %vm1580 = vcmask 24576
        %1581 = vst.msk [vmem:[#allocation2 + $0x8] sm:$0x1] %vm1580, 0
        %s1582 = scalar_lea.vmem [#allocation2], 204
        %1583 = vst.msk [vmem:[%s1582] sm:$0xf] %vm1577, 0
        %1584 = vst.msk [vmem:[%s1582 + $0x4] sm:$0xf] %vm1577, 0
        %1585 = vst.msk [vmem:[%s1582 + $0x8] sm:$0x1] %vm1580, 0
        %vm1586 = vcmask 24576
        %vm1587 = vsmask.f32 256
        %vm1588 = vmand %vm1586, %vm1587
        %v1589 = vld [vmem:[#allocation2] sm:$0x1]
        %v1590 = vsel %vm1588, 0, %v1589
        %1591 = vst [vmem:[#allocation2] sm:$0x1] %v1590
        %v1592 = vld [vmem:[#allocation2 + $0xc] sm:$0x1]
        %v1593 = vsel %vm1588, 0, %v1592
        %1594 = vst [vmem:[#allocation2 + $0xc] sm:$0x1] %v1593
        %v1595 = vld [vmem:[#allocation2 + $0x18] sm:$0x1]
        %v1596 = vsel %vm1588, 0, %v1595
        %1597 = vst [vmem:[#allocation2 + $0x18] sm:$0x1] %v1596
        %v1598 = vld [vmem:[#allocation2 + $0x24] sm:$0x1]
        %v1599 = vsel %vm1588, 0, %v1598
        %1600 = vst [vmem:[#allocation2 + $0x24] sm:$0x1] %v1599
        %v1601 = vld [vmem:[#allocation2 + $0x30] sm:$0x1]
        %v1602 = vsel %vm1588, 0, %v1601
        %1603 = vst [vmem:[#allocation2 + $0x30] sm:$0x1] %v1602
        %v1604 = vld [vmem:[#allocation2 + $0x3c] sm:$0x1]
        %v1605 = vsel %vm1588, 0, %v1604
        %1606 = vst [vmem:[#allocation2 + $0x3c] sm:$0x1] %v1605
        %v1607 = vld [vmem:[#allocation2 + $0x48] sm:$0x1]
        %v1608 = vsel %vm1588, 0, %v1607
        %1609 = vst [vmem:[#allocation2 + $0x48] sm:$0x1] %v1608
        %v1610 = vld [vmem:[#allocation2 + $0x54] sm:$0x1]
        %v1611 = vsel %vm1588, 0, %v1610
        %1612 = vst [vmem:[#allocation2 + $0x54] sm:$0x1] %v1611
        %v1613 = vld [vmem:[#allocation2 + $0x60] sm:$0x1]
        %v1614 = vsel %vm1588, 0, %v1613
        %1615 = vst [vmem:[#allocation2 + $0x60] sm:$0x1] %v1614
        %v1616 = vld [vmem:[#allocation2 + $0x6c] sm:$0x1]
        %v1617 = vsel %vm1588, 0, %v1616
        %1618 = vst [vmem:[#allocation2 + $0x6c] sm:$0x1] %v1617
        %v1619 = vld [vmem:[#allocation2 + $0x78] sm:$0x1]
        %v1620 = vsel %vm1588, 0, %v1619
        %1621 = vst [vmem:[#allocation2 + $0x78] sm:$0x1] %v1620
        %v1622 = vld [vmem:[#allocation2 + $0x84] sm:$0x1]
        %v1623 = vsel %vm1588, 0, %v1622
        %1624 = vst [vmem:[#allocation2 + $0x84] sm:$0x1] %v1623
        %v1625 = vld [vmem:[#allocation2 + $0x90] sm:$0x1]
        %v1626 = vsel %vm1588, 0, %v1625
        %1627 = vst [vmem:[#allocation2 + $0x90] sm:$0x1] %v1626
        %v1628 = vld [vmem:[#allocation2 + $0x9c] sm:$0x1]
        %v1629 = vsel %vm1588, 0, %v1628
        %1630 = vst [vmem:[#allocation2 + $0x9c] sm:$0x1] %v1629
        %v1631 = vld [vmem:[#allocation2 + $0xa8] sm:$0x1]
        %v1632 = vsel %vm1588, 0, %v1631
        %1633 = vst [vmem:[#allocation2 + $0xa8] sm:$0x1] %v1632
        %v1634 = vld [vmem:[#allocation2 + $0xb4] sm:$0x1]
        %v1635 = vsel %vm1588, 0, %v1634
        %1636 = vst [vmem:[#allocation2 + $0xb4] sm:$0x1] %v1635
        %v1637 = vld [vmem:[#allocation2 + $0xc0] sm:$0x1]
        %v1638 = vsel %vm1588, 0, %v1637
        %1639 = vst [vmem:[#allocation2 + $0xc0] sm:$0x1] %v1638
        %v1640 = vld [vmem:[#allocation2 + $0xcc] sm:$0x1]
        %v1641 = vsel %vm1588, 0, %v1640
        %1642 = vst [vmem:[#allocation2 + $0xcc] sm:$0x1] %v1641
        %vm1643 = vsmask.f32 7938
        %vm1644 = vmand %vm1586, %vm1643
        %v1645 = vld [vmem:[#allocation2 + $0x8] sm:$0x1]
        %v1646 = vsel %vm1644, 0, %v1645
        %1647 = vst [vmem:[#allocation2 + $0x8] sm:$0x1] %v1646
        %v1648 = vld [vmem:[#allocation2 + $0x14] sm:$0x1]
        %v1649 = vsel %vm1644, 0, %v1648
        %1650 = vst [vmem:[#allocation2 + $0x14] sm:$0x1] %v1649
        %v1651 = vld [vmem:[#allocation2 + $0x20] sm:$0x1]
        %v1652 = vsel %vm1644, 0, %v1651
        %1653 = vst [vmem:[#allocation2 + $0x20] sm:$0x1] %v1652
        %v1654 = vld [vmem:[#allocation2 + $0x2c] sm:$0x1]
        %v1655 = vsel %vm1644, 0, %v1654
        %1656 = vst [vmem:[#allocation2 + $0x2c] sm:$0x1] %v1655
        %v1657 = vld [vmem:[#allocation2 + $0x38] sm:$0x1]
        %v1658 = vsel %vm1644, 0, %v1657
        %1659 = vst [vmem:[#allocation2 + $0x38] sm:$0x1] %v1658
        %v1660 = vld [vmem:[#allocation2 + $0x44] sm:$0x1]
        %v1661 = vsel %vm1644, 0, %v1660
        %1662 = vst [vmem:[#allocation2 + $0x44] sm:$0x1] %v1661
        %v1663 = vld [vmem:[#allocation2 + $0x50] sm:$0x1]
        %v1664 = vsel %vm1644, 0, %v1663
        %1665 = vst [vmem:[#allocation2 + $0x50] sm:$0x1] %v1664
        %v1666 = vld [vmem:[#allocation2 + $0x5c] sm:$0x1]
        %v1667 = vsel %vm1644, 0, %v1666
        %1668 = vst [vmem:[#allocation2 + $0x5c] sm:$0x1] %v1667
        %v1669 = vld [vmem:[#allocation2 + $0x68] sm:$0x1]
        %v1670 = vsel %vm1644, 0, %v1669
        %1671 = vst [vmem:[#allocation2 + $0x68] sm:$0x1] %v1670
        %v1672 = vld [vmem:[#allocation2 + $0x74] sm:$0x1]
        %v1673 = vsel %vm1644, 0, %v1672
        %1674 = vst [vmem:[#allocation2 + $0x74] sm:$0x1] %v1673
        %v1675 = vld [vmem:[#allocation2 + $0x80] sm:$0x1]
        %v1676 = vsel %vm1644, 0, %v1675
        %1677 = vst [vmem:[#allocation2 + $0x80] sm:$0x1] %v1676
        %v1678 = vld [vmem:[#allocation2 + $0x8c] sm:$0x1]
        %v1679 = vsel %vm1644, 0, %v1678
        %1680 = vst [vmem:[#allocation2 + $0x8c] sm:$0x1] %v1679
        %v1681 = vld [vmem:[#allocation2 + $0x98] sm:$0x1]
        %v1682 = vsel %vm1644, 0, %v1681
        %1683 = vst [vmem:[#allocation2 + $0x98] sm:$0x1] %v1682
        %v1684 = vld [vmem:[#allocation2 + $0xa4] sm:$0x1]
        %v1685 = vsel %vm1644, 0, %v1684
        %1686 = vst [vmem:[#allocation2 + $0xa4] sm:$0x1] %v1685
        %v1687 = vld [vmem:[#allocation2 + $0xb0] sm:$0x1]
        %v1688 = vsel %vm1644, 0, %v1687
        %1689 = vst [vmem:[#allocation2 + $0xb0] sm:$0x1] %v1688
        %v1690 = vld [vmem:[#allocation2 + $0xbc] sm:$0x1]
        %v1691 = vsel %vm1644, 0, %v1690
        %1692 = vst [vmem:[#allocation2 + $0xbc] sm:$0x1] %v1691
        %v1693 = vld [vmem:[#allocation2 + $0xc8] sm:$0x1]
        %v1694 = vsel %vm1644, 0, %v1693
        %1695 = vst [vmem:[#allocation2 + $0xc8] sm:$0x1] %v1694
        %v1696 = vld [vmem:[#allocation2 + $0xd4] sm:$0x1]
        %v1697 = vsel %vm1644, 0, %v1696
        %1698 = vst [vmem:[#allocation2 + $0xd4] sm:$0x1] %v1697
        %v1699 = vpack.c.bf16 %v1546, %v1545
        %v1700 = vpack.c.bf16 %v1548, %v1547
        %v1701 = vpack.c.bf16 %v1550, %v1549
        %v1702 = vpack.c.bf16 %v1552, %v1551
        %v1703 = vpack.c.bf16 %v1554, %v1553
        %v1704 = vpack.c.bf16 %v1556, %v1555
        %v1705 = vpack.c.bf16 %v1558, %v1557
        %v1706 = vpack.c.bf16 %v1560, %v1559
        %v1707 = vpack.c.bf16 %v1562, %v1561
        %v1708 = vpack.c.bf16 %v1564, %v1563
        %v1709 = vpack.c.bf16 %v1566, %v1565
        %v1710 = vpack.c.bf16 %v1568, %v1567
        %v1711 = vpack.c.bf16 %v1570, %v1569
        %v1712 = vpack.c.bf16 %v1572, %v1571
        %v1713 = vpack.c.bf16 %v1574, %v1573
        %v1714 = vpack.c.bf16 %v1576, %v1575
        %v1731 = vunpack.c.l.b16 %v1699
        %v1732 = vunpack.c.h.b16 %v1699
        %v1733 = vunpack.c.l.b16 %v1700
        %v1734 = vunpack.c.h.b16 %v1700
        %v1735 = vunpack.c.l.b16 %v1701
        %v1736 = vunpack.c.h.b16 %v1701
        %v1737 = vunpack.c.l.b16 %v1702
        %v1738 = vunpack.c.h.b16 %v1702
        %v1739 = vunpack.c.l.b16 %v1703
        %v1740 = vunpack.c.h.b16 %v1703
        %v1741 = vunpack.c.l.b16 %v1704
        %v1742 = vunpack.c.h.b16 %v1704
        %v1743 = vunpack.c.l.b16 %v1705
        %v1744 = vunpack.c.h.b16 %v1705
        %v1745 = vunpack.c.l.b16 %v1706
        %v1746 = vunpack.c.h.b16 %v1706
        %v1747 = vunpack.c.l.b16 %v1707
        %v1748 = vunpack.c.h.b16 %v1707
        %v1749 = vunpack.c.l.b16 %v1708
        %v1750 = vunpack.c.h.b16 %v1708
        %v1751 = vunpack.c.l.b16 %v1709
        %v1752 = vunpack.c.h.b16 %v1709
        %v1753 = vunpack.c.l.b16 %v1710
        %v1754 = vunpack.c.h.b16 %v1710
        %v1755 = vunpack.c.l.b16 %v1711
        %v1756 = vunpack.c.h.b16 %v1711
        %v1757 = vunpack.c.l.b16 %v1712
        %v1758 = vunpack.c.h.b16 %v1712
        %v1759 = vunpack.c.l.b16 %v1713
        %v1760 = vunpack.c.h.b16 %v1713
        %v1761 = vunpack.c.l.b16 %v1714
        %v1762 = vunpack.c.h.b16 %v1714
        %v1763 = vpack.c.b16 %v1731, %v1731
        %v1764 = vpack.c.b16 %v1732, %v1732
        %v1765 = vpack.c.b16 %v1733, %v1733
        %v1766 = vpack.c.b16 %v1734, %v1734
        %v1767 = vpack.c.b16 %v1735, %v1735
        %v1768 = vpack.c.b16 %v1736, %v1736
        %v1769 = vpack.c.b16 %v1737, %v1737
        %v1770 = vpack.c.b16 %v1738, %v1738
        %v1771 = vpack.c.b16 %v1739, %v1739
        %v1772 = vpack.c.b16 %v1740, %v1740
        %v1773 = vpack.c.b16 %v1741, %v1741
        %v1774 = vpack.c.b16 %v1742, %v1742
        %v1775 = vpack.c.b16 %v1743, %v1743
        %v1776 = vpack.c.b16 %v1744, %v1744
        %v1777 = vpack.c.b16 %v1745, %v1745
        %v1778 = vpack.c.b16 %v1746, %v1746
        %v1779 = vpack.c.b16 %v1747, %v1747
        %v1780 = vpack.c.b16 %v1748, %v1748
        %v1781 = vpack.c.b16 %v1749, %v1749
        %v1782 = vpack.c.b16 %v1750, %v1750
        %v1783 = vpack.c.b16 %v1751, %v1751
        %v1784 = vpack.c.b16 %v1752, %v1752
        %v1785 = vpack.c.b16 %v1753, %v1753
        %v1786 = vpack.c.b16 %v1754, %v1754
        %v1787 = vpack.c.b16 %v1755, %v1755
        %v1788 = vpack.c.b16 %v1756, %v1756
        %v1789 = vpack.c.b16 %v1757, %v1757
        %v1790 = vpack.c.b16 %v1758, %v1758
        %v1791 = vpack.c.b16 %v1759, %v1759
        %v1792 = vpack.c.b16 %v1760, %v1760
        %v1793 = vpack.c.b16 %v1761, %v1761
        %v1794 = vpack.c.b16 %v1762, %v1762
        %vm1795 = vsmask.f32 4368
        %vm1796 = vmor %vm1587, %vm1795
        %v1798 = vshrl.u32 %v1763, 16
        %v1800 = vrot.slane %v1798, 7
        %v1801 = vshll.u32 %v1763, 16
        %v1803 = vor.u32 %v1800, %v1801
        %v1804 = vrot.slane %v1800, 4
        %v1806 = vshrl.u32 %v1764, 16
        %v1808 = vrot.slane %v1806, 7
        %v1809 = vshll.u32 %v1764, 16
        %v1811 = vor.u32 %v1808, %v1809
        %v1812 = vsel %vm1796, %v1804, %v1811
        %v1813 = vrot.slane %v1808, 4
        %v1815 = vshrl.u32 %v1765, 16
        %v1817 = vrot.slane %v1815, 7
        %v1818 = vshll.u32 %v1765, 16
        %v1820 = vor.u32 %v1817, %v1818
        %v1821 = vrot.slane %v1817, 4
        %v1823 = vshrl.u32 %v1766, 16
        %v1825 = vrot.slane %v1823, 7
        %v1826 = vshll.u32 %v1766, 16
        %v1828 = vor.u32 %v1825, %v1826
        %v1829 = vsel %vm1796, %v1821, %v1828
        %v1830 = vrot.slane %v1825, 4
        %v1832 = vshrl.u32 %v1767, 16
        %v1834 = vrot.slane %v1832, 7
        %v1835 = vshll.u32 %v1767, 16
        %v1837 = vor.u32 %v1834, %v1835
        %v1838 = vrot.slane %v1834, 4
        %v1840 = vshrl.u32 %v1768, 16
        %v1842 = vrot.slane %v1840, 7
        %v1843 = vshll.u32 %v1768, 16
        %v1845 = vor.u32 %v1842, %v1843
        %v1846 = vsel %vm1796, %v1838, %v1845
        %v1847 = vrot.slane %v1842, 4
        %v1849 = vshrl.u32 %v1769, 16
        %v1851 = vrot.slane %v1849, 7
        %v1852 = vshll.u32 %v1769, 16
        %v1854 = vor.u32 %v1851, %v1852
        %v1855 = vrot.slane %v1851, 4
        %v1857 = vshrl.u32 %v1770, 16
        %v1859 = vrot.slane %v1857, 7
        %v1860 = vshll.u32 %v1770, 16
        %v1862 = vor.u32 %v1859, %v1860
        %v1863 = vsel %vm1796, %v1855, %v1862
        %v1864 = vrot.slane %v1859, 4
        %v1866 = vshrl.u32 %v1771, 16
        %v1868 = vrot.slane %v1866, 7
        %v1869 = vshll.u32 %v1771, 16
        %v1871 = vor.u32 %v1868, %v1869
        %v1872 = vrot.slane %v1868, 4
        %v1874 = vshrl.u32 %v1772, 16
        %v1876 = vrot.slane %v1874, 7
        %v1877 = vshll.u32 %v1772, 16
        %v1879 = vor.u32 %v1876, %v1877
        %v1880 = vsel %vm1796, %v1872, %v1879
        %v1881 = vrot.slane %v1876, 4
        %v1883 = vshrl.u32 %v1773, 16
        %v1885 = vrot.slane %v1883, 7
        %v1886 = vshll.u32 %v1773, 16
        %v1888 = vor.u32 %v1885, %v1886
        %v1889 = vrot.slane %v1885, 4
        %v1891 = vshrl.u32 %v1774, 16
        %v1893 = vrot.slane %v1891, 7
        %v1894 = vshll.u32 %v1774, 16
        %v1896 = vor.u32 %v1893, %v1894
        %v1897 = vsel %vm1796, %v1889, %v1896
        %v1898 = vrot.slane %v1893, 4
        %v1900 = vshrl.u32 %v1775, 16
        %v1902 = vrot.slane %v1900, 7
        %v1903 = vshll.u32 %v1775, 16
        %v1905 = vor.u32 %v1902, %v1903
        %v1906 = vrot.slane %v1902, 4
        %v1908 = vshrl.u32 %v1776, 16
        %v1910 = vrot.slane %v1908, 7
        %v1911 = vshll.u32 %v1776, 16
        %v1913 = vor.u32 %v1910, %v1911
        %v1914 = vsel %vm1796, %v1906, %v1913
        %v1915 = vrot.slane %v1910, 4
        %v1917 = vshrl.u32 %v1777, 16
        %v1919 = vrot.slane %v1917, 7
        %v1920 = vshll.u32 %v1777, 16
        %v1922 = vor.u32 %v1919, %v1920
        %v1923 = vrot.slane %v1919, 4
        %v1925 = vshrl.u32 %v1778, 16
        %v1927 = vrot.slane %v1925, 7
        %v1928 = vshll.u32 %v1778, 16
        %v1930 = vor.u32 %v1927, %v1928
        %v1931 = vsel %vm1796, %v1923, %v1930
        %v1932 = vrot.slane %v1927, 4
        %v1934 = vshrl.u32 %v1779, 16
        %v1936 = vrot.slane %v1934, 7
        %v1937 = vshll.u32 %v1779, 16
        %v1939 = vor.u32 %v1936, %v1937
        %v1940 = vrot.slane %v1936, 4
        %v1942 = vshrl.u32 %v1780, 16
        %v1944 = vrot.slane %v1942, 7
        %v1945 = vshll.u32 %v1780, 16
        %v1947 = vor.u32 %v1944, %v1945
        %v1948 = vsel %vm1796, %v1940, %v1947
        %v1949 = vrot.slane %v1944, 4
        %v1951 = vshrl.u32 %v1781, 16
        %v1953 = vrot.slane %v1951, 7
        %v1954 = vshll.u32 %v1781, 16
        %v1956 = vor.u32 %v1953, %v1954
        %v1957 = vrot.slane %v1953, 4
        %v1959 = vshrl.u32 %v1782, 16
        %v1961 = vrot.slane %v1959, 7
        %v1962 = vshll.u32 %v1782, 16
        %v1964 = vor.u32 %v1961, %v1962
        %v1965 = vsel %vm1796, %v1957, %v1964
        %v1966 = vrot.slane %v1961, 4
        %v1968 = vshrl.u32 %v1783, 16
        %v1970 = vrot.slane %v1968, 7
        %v1971 = vshll.u32 %v1783, 16
        %v1973 = vor.u32 %v1970, %v1971
        %v1974 = vrot.slane %v1970, 4
        %v1976 = vshrl.u32 %v1784, 16
        %v1978 = vrot.slane %v1976, 7
        %v1979 = vshll.u32 %v1784, 16
        %v1981 = vor.u32 %v1978, %v1979
        %v1982 = vsel %vm1796, %v1974, %v1981
        %v1983 = vrot.slane %v1978, 4
        %v1985 = vshrl.u32 %v1785, 16
        %v1987 = vrot.slane %v1985, 7
        %v1988 = vshll.u32 %v1785, 16
        %v1990 = vor.u32 %v1987, %v1988
        %v1991 = vrot.slane %v1987, 4
        %v1993 = vshrl.u32 %v1786, 16
        %v1995 = vrot.slane %v1993, 7
        %v1996 = vshll.u32 %v1786, 16
        %v1998 = vor.u32 %v1995, %v1996
        %v1999 = vsel %vm1796, %v1991, %v1998
        %v2000 = vrot.slane %v1995, 4
        %v2002 = vshrl.u32 %v1787, 16
        %v2004 = vrot.slane %v2002, 7
        %v2005 = vshll.u32 %v1787, 16
        %v2007 = vor.u32 %v2004, %v2005
        %v2008 = vrot.slane %v2004, 4
        %v2010 = vshrl.u32 %v1788, 16
        %v2012 = vrot.slane %v2010, 7
        %v2013 = vshll.u32 %v1788, 16
        %v2015 = vor.u32 %v2012, %v2013
        %v2016 = vsel %vm1796, %v2008, %v2015
        %v2017 = vrot.slane %v2012, 4
        %v2019 = vshrl.u32 %v1789, 16
        %v2021 = vrot.slane %v2019, 7
        %v2022 = vshll.u32 %v1789, 16
        %v2024 = vor.u32 %v2021, %v2022
        %v2025 = vrot.slane %v2021, 4
        %v2027 = vshrl.u32 %v1790, 16
        %v2029 = vrot.slane %v2027, 7
        %v2030 = vshll.u32 %v1790, 16
        %v2032 = vor.u32 %v2029, %v2030
        %v2033 = vsel %vm1796, %v2025, %v2032
        %v2034 = vrot.slane %v2029, 4
        %v2036 = vshrl.u32 %v1791, 16
        %v2038 = vrot.slane %v2036, 7
        %v2039 = vshll.u32 %v1791, 16
        %v2041 = vor.u32 %v2038, %v2039
        %v2042 = vrot.slane %v2038, 4
        %v2044 = vshrl.u32 %v1792, 16
        %v2046 = vrot.slane %v2044, 7
        %v2047 = vshll.u32 %v1792, 16
        %v2049 = vor.u32 %v2046, %v2047
        %v2050 = vsel %vm1796, %v2042, %v2049
        %v2051 = vrot.slane %v2046, 4
        %v2053 = vshrl.u32 %v1793, 16
        %v2055 = vrot.slane %v2053, 7
        %v2056 = vshll.u32 %v1793, 16
        %v2058 = vor.u32 %v2055, %v2056
        %v2059 = vrot.slane %v2055, 4
        %v2061 = vshrl.u32 %v1794, 16
        %v2063 = vrot.slane %v2061, 7
        %v2064 = vshll.u32 %v1794, 16
        %v2066 = vor.u32 %v2063, %v2064
        %v2067 = vsel %vm1796, %v2059, %v2066
        %v2068 = vrot.slane %v2063, 4
        %s2117 = scalar_lea.vmem [#allocation2], 12
        %vm2118 = vcmask 27648
        %vm2119 = vmand %vm2118, %vm1643
        %v2120 = vld [vmem:[%s2117] sm:$0xf]
        %v2121 = vsel %vm2119, %v1803, %v2120
        %2122 = vst [vmem:[%s2117] sm:$0xf] %v2121
        %2123 = vst.msk [vmem:[%s2117 + $0x4] sm:$0xf] %vm1577, %v1812
        %v2124 = vld [vmem:[%s2117 + $0x8] sm:$0x1]
        %v2125 = vsel %vm1588, %v1813, %v2124
        %2126 = vst [vmem:[%s2117 + $0x8] sm:$0x1] %v2125
        %v2127 = vld [vmem:[%s2117 + $0xc] sm:$0xf]
        %v2128 = vsel %vm2119, %v1820, %v2127
        %2129 = vst [vmem:[%s2117 + $0xc] sm:$0xf] %v2128
        %2130 = vst.msk [vmem:[%s2117 + $0x10] sm:$0xf] %vm1577, %v1829
        %v2131 = vld [vmem:[%s2117 + $0x14] sm:$0x1]
        %v2132 = vsel %vm1588, %v1830, %v2131
        %2133 = vst [vmem:[%s2117 + $0x14] sm:$0x1] %v2132
        %v2134 = vld [vmem:[%s2117 + $0x18] sm:$0xf]
        %v2135 = vsel %vm2119, %v1837, %v2134
        %2136 = vst [vmem:[%s2117 + $0x18] sm:$0xf] %v2135
        %2137 = vst.msk [vmem:[%s2117 + $0x1c] sm:$0xf] %vm1577, %v1846
        %v2138 = vld [vmem:[%s2117 + $0x20] sm:$0x1]
        %v2139 = vsel %vm1588, %v1847, %v2138
        %2140 = vst [vmem:[%s2117 + $0x20] sm:$0x1] %v2139
        %v2141 = vld [vmem:[%s2117 + $0x24] sm:$0xf]
        %v2142 = vsel %vm2119, %v1854, %v2141
        %2143 = vst [vmem:[%s2117 + $0x24] sm:$0xf] %v2142
        %2144 = vst.msk [vmem:[%s2117 + $0x28] sm:$0xf] %vm1577, %v1863
        %v2145 = vld [vmem:[%s2117 + $0x2c] sm:$0x1]
        %v2146 = vsel %vm1588, %v1864, %v2145
        %2147 = vst [vmem:[%s2117 + $0x2c] sm:$0x1] %v2146
        %v2148 = vld [vmem:[%s2117 + $0x30] sm:$0xf]
        %v2149 = vsel %vm2119, %v1871, %v2148
        %2150 = vst [vmem:[%s2117 + $0x30] sm:$0xf] %v2149
        %2151 = vst.msk [vmem:[%s2117 + $0x34] sm:$0xf] %vm1577, %v1880
        %v2152 = vld [vmem:[%s2117 + $0x38] sm:$0x1]
        %v2153 = vsel %vm1588, %v1881, %v2152
        %2154 = vst [vmem:[%s2117 + $0x38] sm:$0x1] %v2153
        %v2155 = vld [vmem:[%s2117 + $0x3c] sm:$0xf]
        %v2156 = vsel %vm2119, %v1888, %v2155
        %2157 = vst [vmem:[%s2117 + $0x3c] sm:$0xf] %v2156
        %2158 = vst.msk [vmem:[%s2117 + $0x40] sm:$0xf] %vm1577, %v1897
        %v2159 = vld [vmem:[%s2117 + $0x44] sm:$0x1]
        %v2160 = vsel %vm1588, %v1898, %v2159
        %2161 = vst [vmem:[%s2117 + $0x44] sm:$0x1] %v2160
        %v2162 = vld [vmem:[%s2117 + $0x48] sm:$0xf]
        %v2163 = vsel %vm2119, %v1905, %v2162
        %2164 = vst [vmem:[%s2117 + $0x48] sm:$0xf] %v2163
        %2165 = vst.msk [vmem:[%s2117 + $0x4c] sm:$0xf] %vm1577, %v1914
        %v2166 = vld [vmem:[%s2117 + $0x50] sm:$0x1]
        %v2167 = vsel %vm1588, %v1915, %v2166
        %2168 = vst [vmem:[%s2117 + $0x50] sm:$0x1] %v2167
        %v2169 = vld [vmem:[%s2117 + $0x54] sm:$0xf]
        %v2170 = vsel %vm2119, %v1922, %v2169
        %2171 = vst [vmem:[%s2117 + $0x54] sm:$0xf] %v2170
        %2172 = vst.msk [vmem:[%s2117 + $0x58] sm:$0xf] %vm1577, %v1931
        %v2173 = vld [vmem:[%s2117 + $0x5c] sm:$0x1]
        %v2174 = vsel %vm1588, %v1932, %v2173
        %2175 = vst [vmem:[%s2117 + $0x5c] sm:$0x1] %v2174
        %v2176 = vld [vmem:[%s2117 + $0x60] sm:$0xf]
        %v2177 = vsel %vm2119, %v1939, %v2176
        %2178 = vst [vmem:[%s2117 + $0x60] sm:$0xf] %v2177
        %2179 = vst.msk [vmem:[%s2117 + $0x64] sm:$0xf] %vm1577, %v1948
        %v2180 = vld [vmem:[%s2117 + $0x68] sm:$0x1]
        %v2181 = vsel %vm1588, %v1949, %v2180
        %2182 = vst [vmem:[%s2117 + $0x68] sm:$0x1] %v2181
        %v2183 = vld [vmem:[%s2117 + $0x6c] sm:$0xf]
        %v2184 = vsel %vm2119, %v1956, %v2183
        %2185 = vst [vmem:[%s2117 + $0x6c] sm:$0xf] %v2184
        %2186 = vst.msk [vmem:[%s2117 + $0x70] sm:$0xf] %vm1577, %v1965
        %v2187 = vld [vmem:[%s2117 + $0x74] sm:$0x1]
        %v2188 = vsel %vm1588, %v1966, %v2187
        %2189 = vst [vmem:[%s2117 + $0x74] sm:$0x1] %v2188
        %v2190 = vld [vmem:[%s2117 + $0x78] sm:$0xf]
        %v2191 = vsel %vm2119, %v1973, %v2190
        %2192 = vst [vmem:[%s2117 + $0x78] sm:$0xf] %v2191
        %2193 = vst.msk [vmem:[%s2117 + $0x7c] sm:$0xf] %vm1577, %v1982
        %v2194 = vld [vmem:[%s2117 + $0x80] sm:$0x1]
        %v2195 = vsel %vm1588, %v1983, %v2194
        %2196 = vst [vmem:[%s2117 + $0x80] sm:$0x1] %v2195
        %v2197 = vld [vmem:[%s2117 + $0x84] sm:$0xf]
        %v2198 = vsel %vm2119, %v1990, %v2197
        %2199 = vst [vmem:[%s2117 + $0x84] sm:$0xf] %v2198
        %2200 = vst.msk [vmem:[%s2117 + $0x88] sm:$0xf] %vm1577, %v1999
        %v2201 = vld [vmem:[%s2117 + $0x8c] sm:$0x1]
        %v2202 = vsel %vm1588, %v2000, %v2201
        %2203 = vst [vmem:[%s2117 + $0x8c] sm:$0x1] %v2202
        %v2204 = vld [vmem:[%s2117 + $0x90] sm:$0xf]
        %v2205 = vsel %vm2119, %v2007, %v2204
        %2206 = vst [vmem:[%s2117 + $0x90] sm:$0xf] %v2205
        %2207 = vst.msk [vmem:[%s2117 + $0x94] sm:$0xf] %vm1577, %v2016
        %v2208 = vld [vmem:[%s2117 + $0x98] sm:$0x1]
        %v2209 = vsel %vm1588, %v2017, %v2208
        %2210 = vst [vmem:[%s2117 + $0x98] sm:$0x1] %v2209
        %v2211 = vld [vmem:[%s2117 + $0x9c] sm:$0xf]
        %v2212 = vsel %vm2119, %v2024, %v2211
        %2213 = vst [vmem:[%s2117 + $0x9c] sm:$0xf] %v2212
        %2214 = vst.msk [vmem:[%s2117 + $0xa0] sm:$0xf] %vm1577, %v2033
        %v2215 = vld [vmem:[%s2117 + $0xa4] sm:$0x1]
        %v2216 = vsel %vm1588, %v2034, %v2215
        %2217 = vst [vmem:[%s2117 + $0xa4] sm:$0x1] %v2216
        %v2218 = vld [vmem:[%s2117 + $0xa8] sm:$0xf]
        %v2219 = vsel %vm2119, %v2041, %v2218
        %2220 = vst [vmem:[%s2117 + $0xa8] sm:$0xf] %v2219
        %2221 = vst.msk [vmem:[%s2117 + $0xac] sm:$0xf] %vm1577, %v2050
        %v2222 = vld [vmem:[%s2117 + $0xb0] sm:$0x1]
        %v2223 = vsel %vm1588, %v2051, %v2222
        %2224 = vst [vmem:[%s2117 + $0xb0] sm:$0x1] %v2223
        %v2225 = vld [vmem:[%s2117 + $0xb4] sm:$0xf]
        %v2226 = vsel %vm2119, %v2058, %v2225
        %2227 = vst [vmem:[%s2117 + $0xb4] sm:$0xf] %v2226
        %2228 = vst.msk [vmem:[%s2117 + $0xb8] sm:$0xf] %vm1577, %v2067
        %v2229 = vld [vmem:[%s2117 + $0xbc] sm:$0x1]
        %v2230 = vsel %vm1588, %v2068, %v2229
        %2231 = vst [vmem:[%s2117 + $0xbc] sm:$0x1] %v2230
        %v2232 = vld [vmem:[#allocation2] sm:$0xf]
        %v2233 = vld [vmem:[#allocation2 + $0x4] sm:$0xf]
        %v2234 = vld [vmem:[#allocation2 + $0x8] sm:$0x1]
        %v2235 = vld [vmem:[#allocation2 + $0xc] sm:$0xf]
        %v2236 = vld [vmem:[#allocation2 + $0x10] sm:$0xf]
        %v2237 = vld [vmem:[#allocation2 + $0x14] sm:$0x1]
        %v2238 = vld [vmem:[#allocation2 + $0x18] sm:$0xf]
        %v2239 = vld [vmem:[#allocation2 + $0x1c] sm:$0xf]
        %v2240 = vld [vmem:[#allocation2 + $0x20] sm:$0x1]
        %v2241 = vld [vmem:[#allocation2 + $0x24] sm:$0xf]
        %v2242 = vld [vmem:[#allocation2 + $0x28] sm:$0xf]
        %v2243 = vld [vmem:[#allocation2 + $0x2c] sm:$0x1]
        %v2244 = vld [vmem:[#allocation2 + $0x30] sm:$0xf]
        %v2245 = vld [vmem:[#allocation2 + $0x34] sm:$0xf]
        %v2246 = vld [vmem:[#allocation2 + $0x38] sm:$0x1]
        %v2247 = vld [vmem:[#allocation2 + $0x3c] sm:$0xf]
        %v2248 = vld [vmem:[#allocation2 + $0x40] sm:$0xf]
        %v2249 = vld [vmem:[#allocation2 + $0x44] sm:$0x1]
        %v2250 = vld [vmem:[#allocation2 + $0x48] sm:$0xf]
        %v2251 = vld [vmem:[#allocation2 + $0x4c] sm:$0xf]
        %v2252 = vld [vmem:[#allocation2 + $0x50] sm:$0x1]
        %v2253 = vld [vmem:[#allocation2 + $0x54] sm:$0xf]
        %v2254 = vld [vmem:[#allocation2 + $0x58] sm:$0xf]
        %v2255 = vld [vmem:[#allocation2 + $0x5c] sm:$0x1]
        %v2256 = vld [vmem:[#allocation2 + $0x60] sm:$0xf]
        %v2257 = vld [vmem:[#allocation2 + $0x64] sm:$0xf]
        %v2258 = vld [vmem:[#allocation2 + $0x68] sm:$0x1]
        %v2259 = vld [vmem:[#allocation2 + $0x6c] sm:$0xf]
        %v2260 = vld [vmem:[#allocation2 + $0x70] sm:$0xf]
        %v2261 = vld [vmem:[#allocation2 + $0x74] sm:$0x1]
        %v2262 = vld [vmem:[#allocation2 + $0x78] sm:$0xf]
        %v2263 = vld [vmem:[#allocation2 + $0x7c] sm:$0xf]
        %v2264 = vld [vmem:[#allocation2 + $0x80] sm:$0x1]
        %v2265 = vld [vmem:[#allocation2 + $0x84] sm:$0xf]
        %v2266 = vld [vmem:[#allocation2 + $0x88] sm:$0xf]
        %v2267 = vld [vmem:[#allocation2 + $0x8c] sm:$0x1]
        %v2268 = vld [vmem:[#allocation2 + $0x90] sm:$0xf]
        %v2269 = vld [vmem:[#allocation2 + $0x94] sm:$0xf]
        %v2270 = vld [vmem:[#allocation2 + $0x98] sm:$0x1]
        %v2271 = vld [vmem:[#allocation2 + $0x9c] sm:$0xf]
        %v2272 = vld [vmem:[#allocation2 + $0xa0] sm:$0xf]
        %v2273 = vld [vmem:[#allocation2 + $0xa4] sm:$0x1]
        %v2274 = vld [vmem:[#allocation2 + $0xa8] sm:$0xf]
        %v2275 = vld [vmem:[#allocation2 + $0xac] sm:$0xf]
        %v2276 = vld [vmem:[#allocation2 + $0xb0] sm:$0x1]
        %v2277 = vld [vmem:[#allocation2 + $0xb4] sm:$0xf]
        %v2278 = vld [vmem:[#allocation2 + $0xb8] sm:$0xf]
        %v2279 = vld [vmem:[#allocation2 + $0xbc] sm:$0x1]
        %v2280 = vld [vmem:[#allocation2 + $0xc0] sm:$0xf]
        %v2281 = vld [vmem:[#allocation2 + $0xc4] sm:$0xf]
        %v2282 = vld [vmem:[#allocation2 + $0xc8] sm:$0x1]
        %v2283 = vld [vmem:[#allocation2 + $0xcc] sm:$0xf]
        %v2284 = vld [vmem:[#allocation2 + $0xd0] sm:$0xf]
        %v2285 = vld [vmem:[#allocation2 + $0xd4] sm:$0x1]
        %v2318 = vunpack.c.l.b16 %v2232
        %v2319 = vunpack.c.l.b16 %v2233
        %v2320 = vunpack.c.l.b16 %v2235
        %v2321 = vunpack.c.l.b16 %v2236
        %v2322 = vunpack.c.l.b16 %v2238
        %v2323 = vunpack.c.l.b16 %v2239
        %v2324 = vunpack.c.l.b16 %v2241
        %v2325 = vunpack.c.l.b16 %v2242
        %v2326 = vunpack.c.l.b16 %v2244
        %v2327 = vunpack.c.l.b16 %v2245
        %v2328 = vunpack.c.l.b16 %v2247
        %v2329 = vunpack.c.l.b16 %v2248
        %v2330 = vunpack.c.l.b16 %v2250
        %v2331 = vunpack.c.l.b16 %v2251
        %v2332 = vunpack.c.l.b16 %v2253
        %v2333 = vunpack.c.l.b16 %v2254
        %v2334 = vunpack.c.l.b16 %v2256
        %v2335 = vunpack.c.l.b16 %v2257
        %v2336 = vunpack.c.l.b16 %v2259
        %v2337 = vunpack.c.l.b16 %v2260
        %v2338 = vunpack.c.l.b16 %v2262
        %v2339 = vunpack.c.l.b16 %v2263
        %v2340 = vunpack.c.l.b16 %v2265
        %v2341 = vunpack.c.l.b16 %v2266
        %v2342 = vunpack.c.l.b16 %v2268
        %v2343 = vunpack.c.l.b16 %v2269
        %v2344 = vunpack.c.l.b16 %v2271
        %v2345 = vunpack.c.l.b16 %v2272
        %v2346 = vunpack.c.l.b16 %v2274
        %v2347 = vunpack.c.l.b16 %v2275
        %v2348 = vunpack.c.l.b16 %v2277
        %v2349 = vunpack.c.l.b16 %v2278
        %v2350 = vpack.c.b16 %v2319, %v2318
        %v2351 = vpack.c.b16 %v2321, %v2320
        %v2352 = vpack.c.b16 %v2323, %v2322
        %v2353 = vpack.c.b16 %v2325, %v2324
        %v2354 = vpack.c.b16 %v2327, %v2326
        %v2355 = vpack.c.b16 %v2329, %v2328
        %v2356 = vpack.c.b16 %v2331, %v2330
        %v2357 = vpack.c.b16 %v2333, %v2332
        %v2358 = vpack.c.b16 %v2335, %v2334
        %v2359 = vpack.c.b16 %v2337, %v2336
        %v2360 = vpack.c.b16 %v2339, %v2338
        %v2361 = vpack.c.b16 %v2341, %v2340
        %v2362 = vpack.c.b16 %v2343, %v2342
        %v2363 = vpack.c.b16 %v2345, %v2344
        %v2364 = vpack.c.b16 %v2347, %v2346
        %v2365 = vpack.c.b16 %v2349, %v2348
        %v2382 = vunpack.c.l.b16 %v2234
        %v2383 = vunpack.c.l.b16 %v2237
        %v2384 = vunpack.c.l.b16 %v2240
        %v2385 = vunpack.c.l.b16 %v2243
        %v2386 = vunpack.c.l.b16 %v2246
        %v2387 = vunpack.c.l.b16 %v2249
        %v2388 = vunpack.c.l.b16 %v2252
        %v2389 = vunpack.c.l.b16 %v2255
        %v2390 = vunpack.c.l.b16 %v2258
        %v2391 = vunpack.c.l.b16 %v2261
        %v2392 = vunpack.c.l.b16 %v2264
        %v2393 = vunpack.c.l.b16 %v2267
        %v2394 = vunpack.c.l.b16 %v2270
        %v2395 = vunpack.c.l.b16 %v2273
        %v2396 = vunpack.c.l.b16 %v2276
        %v2397 = vunpack.c.l.b16 %v2279
        %v2398 = vpack.c.b16 %v2382, %v2382
        %v2399 = vpack.c.b16 %v2383, %v2383
        %v2400 = vpack.c.b16 %v2384, %v2384
        %v2401 = vpack.c.b16 %v2385, %v2385
        %v2402 = vpack.c.b16 %v2386, %v2386
        %v2403 = vpack.c.b16 %v2387, %v2387
        %v2404 = vpack.c.b16 %v2388, %v2388
        %v2405 = vpack.c.b16 %v2389, %v2389
        %v2406 = vpack.c.b16 %v2390, %v2390
        %v2407 = vpack.c.b16 %v2391, %v2391
        %v2408 = vpack.c.b16 %v2392, %v2392
        %v2409 = vpack.c.b16 %v2393, %v2393
        %v2410 = vpack.c.b16 %v2394, %v2394
        %v2411 = vpack.c.b16 %v2395, %v2395
        %v2412 = vpack.c.b16 %v2396, %v2396
        %v2413 = vpack.c.b16 %v2397, %v2397
        %v2415 = vshrl.u32 %v2350, 16
        %v2417 = vshll.u32 %v2350, 16
        %v2419 = vrot.slane %v2417, 1
        %v2420 = vor.u32 %v2415, %v2419
        %v2422 = vshll.u32 %v2398, 16
        %v2424 = vrot.slane %v2422, 1
        %v2425 = vsel %vm260, %v2420, %v2424
        %v2427 = vshrl.u32 %v2351, 16
        %v2429 = vshll.u32 %v2351, 16
        %v2431 = vrot.slane %v2429, 1
        %v2432 = vor.u32 %v2427, %v2431
        %v2434 = vshll.u32 %v2399, 16
        %v2436 = vrot.slane %v2434, 1
        %v2437 = vsel %vm260, %v2432, %v2436
        %v2439 = vshrl.u32 %v2352, 16
        %v2441 = vshll.u32 %v2352, 16
        %v2443 = vrot.slane %v2441, 1
        %v2444 = vor.u32 %v2439, %v2443
        %v2446 = vshll.u32 %v2400, 16
        %v2448 = vrot.slane %v2446, 1
        %v2449 = vsel %vm260, %v2444, %v2448
        %v2451 = vshrl.u32 %v2353, 16
        %v2453 = vshll.u32 %v2353, 16
        %v2455 = vrot.slane %v2453, 1
        %v2456 = vor.u32 %v2451, %v2455
        %v2458 = vshll.u32 %v2401, 16
        %v2460 = vrot.slane %v2458, 1
        %v2461 = vsel %vm260, %v2456, %v2460
        %v2463 = vshrl.u32 %v2354, 16
        %v2465 = vshll.u32 %v2354, 16
        %v2467 = vrot.slane %v2465, 1
        %v2468 = vor.u32 %v2463, %v2467
        %v2470 = vshll.u32 %v2402, 16
        %v2472 = vrot.slane %v2470, 1
        %v2473 = vsel %vm260, %v2468, %v2472
        %v2475 = vshrl.u32 %v2355, 16
        %v2477 = vshll.u32 %v2355, 16
        %v2479 = vrot.slane %v2477, 1
        %v2480 = vor.u32 %v2475, %v2479
        %v2482 = vshll.u32 %v2403, 16
        %v2484 = vrot.slane %v2482, 1
        %v2485 = vsel %vm260, %v2480, %v2484
        %v2487 = vshrl.u32 %v2356, 16
        %v2489 = vshll.u32 %v2356, 16
        %v2491 = vrot.slane %v2489, 1
        %v2492 = vor.u32 %v2487, %v2491
        %v2494 = vshll.u32 %v2404, 16
        %v2496 = vrot.slane %v2494, 1
        %v2497 = vsel %vm260, %v2492, %v2496
        %v2499 = vshrl.u32 %v2357, 16
        %v2501 = vshll.u32 %v2357, 16
        %v2503 = vrot.slane %v2501, 1
        %v2504 = vor.u32 %v2499, %v2503
        %v2506 = vshll.u32 %v2405, 16
        %v2508 = vrot.slane %v2506, 1
        %v2509 = vsel %vm260, %v2504, %v2508
        %v2511 = vshrl.u32 %v2358, 16
        %v2513 = vshll.u32 %v2358, 16
        %v2515 = vrot.slane %v2513, 1
        %v2516 = vor.u32 %v2511, %v2515
        %v2518 = vshll.u32 %v2406, 16
        %v2520 = vrot.slane %v2518, 1
        %v2521 = vsel %vm260, %v2516, %v2520
        %v2523 = vshrl.u32 %v2359, 16
        %v2525 = vshll.u32 %v2359, 16
        %v2527 = vrot.slane %v2525, 1
        %v2528 = vor.u32 %v2523, %v2527
        %v2530 = vshll.u32 %v2407, 16
        %v2532 = vrot.slane %v2530, 1
        %v2533 = vsel %vm260, %v2528, %v2532
        %v2535 = vshrl.u32 %v2360, 16
        %v2537 = vshll.u32 %v2360, 16
        %v2539 = vrot.slane %v2537, 1
        %v2540 = vor.u32 %v2535, %v2539
        %v2542 = vshll.u32 %v2408, 16
        %v2544 = vrot.slane %v2542, 1
        %v2545 = vsel %vm260, %v2540, %v2544
        %v2547 = vshrl.u32 %v2361, 16
        %v2549 = vshll.u32 %v2361, 16
        %v2551 = vrot.slane %v2549, 1
        %v2552 = vor.u32 %v2547, %v2551
        %v2554 = vshll.u32 %v2409, 16
        %v2556 = vrot.slane %v2554, 1
        %v2557 = vsel %vm260, %v2552, %v2556
        %v2559 = vshrl.u32 %v2362, 16
        %v2561 = vshll.u32 %v2362, 16
        %v2563 = vrot.slane %v2561, 1
        %v2564 = vor.u32 %v2559, %v2563
        %v2566 = vshll.u32 %v2410, 16
        %v2568 = vrot.slane %v2566, 1
        %v2569 = vsel %vm260, %v2564, %v2568
        %v2571 = vshrl.u32 %v2363, 16
        %v2573 = vshll.u32 %v2363, 16
        %v2575 = vrot.slane %v2573, 1
        %v2576 = vor.u32 %v2571, %v2575
        %v2578 = vshll.u32 %v2411, 16
        %v2580 = vrot.slane %v2578, 1
        %v2581 = vsel %vm260, %v2576, %v2580
        %v2583 = vshrl.u32 %v2364, 16
        %v2585 = vshll.u32 %v2364, 16
        %v2587 = vrot.slane %v2585, 1
        %v2588 = vor.u32 %v2583, %v2587
        %v2590 = vshll.u32 %v2412, 16
        %v2592 = vrot.slane %v2590, 1
        %v2593 = vsel %vm260, %v2588, %v2592
        %v2595 = vshrl.u32 %v2365, 16
        %v2597 = vshll.u32 %v2365, 16
        %v2599 = vrot.slane %v2597, 1
        %v2600 = vor.u32 %v2595, %v2599
        %v2602 = vshll.u32 %v2413, 16
        %v2604 = vrot.slane %v2602, 1
        %v2605 = vsel %vm260, %v2600, %v2604
        %2606 = vrot.lane.b32.xlu0 %v2425, 4
        %v2607 = vpop.permute.xlu0 %2606
        %2608 = vrot.lane.b32.xlu0 %v2437, 4
        %v2609 = vpop.permute.xlu0 %2608
        %2610 = vrot.lane.b32.xlu0 %v2449, 4
        %v2611 = vpop.permute.xlu0 %2610
        %2612 = vrot.lane.b32.xlu0 %v2461, 4
        %v2613 = vpop.permute.xlu0 %2612
        %2614 = vrot.lane.b32.xlu0 %v2473, 4
        %v2615 = vpop.permute.xlu0 %2614
        %2616 = vrot.lane.b32.xlu0 %v2485, 4
        %v2617 = vpop.permute.xlu0 %2616
        %2618 = vrot.lane.b32.xlu0 %v2497, 4
        %v2619 = vpop.permute.xlu0 %2618
        %2620 = vrot.lane.b32.xlu0 %v2509, 4
        %v2621 = vpop.permute.xlu0 %2620
        %2622 = vrot.lane.b32.xlu0 %v2521, 4
        %v2623 = vpop.permute.xlu0 %2622
        %2624 = vrot.lane.b32.xlu0 %v2533, 4
        %v2625 = vpop.permute.xlu0 %2624
        %2626 = vrot.lane.b32.xlu0 %v2545, 4
        %v2627 = vpop.permute.xlu0 %2626
        %2628 = vrot.lane.b32.xlu0 %v2557, 4
        %v2629 = vpop.permute.xlu0 %2628
        %2630 = vrot.lane.b32.xlu0 %v2569, 4
        %v2631 = vpop.permute.xlu0 %2630
        %2632 = vrot.lane.b32.xlu0 %v2581, 4
        %v2633 = vpop.permute.xlu0 %2632
        %2634 = vrot.lane.b32.xlu0 %v2593, 4
        %v2635 = vpop.permute.xlu0 %2634
        %2636 = vrot.lane.b32.xlu0 %v2605, 4
        %v2637 = vpop.permute.xlu0 %2636
        %v2638 = vrot.slane %v2350, 1
        %v2639 = vrot.slane %v2398, 1
        %v2640 = vsel %vm517, %v2638, %v2639
        %v2641 = vrot.slane %v2351, 1
        %v2642 = vrot.slane %v2399, 1
        %v2643 = vsel %vm517, %v2641, %v2642
        %v2644 = vrot.slane %v2352, 1
        %v2645 = vrot.slane %v2400, 1
        %v2646 = vsel %vm517, %v2644, %v2645
        %v2647 = vrot.slane %v2353, 1
        %v2648 = vrot.slane %v2401, 1
        %v2649 = vsel %vm517, %v2647, %v2648
        %v2650 = vrot.slane %v2354, 1
        %v2651 = vrot.slane %v2402, 1
        %v2652 = vsel %vm517, %v2650, %v2651
        %v2653 = vrot.slane %v2355, 1
        %v2654 = vrot.slane %v2403, 1
        %v2655 = vsel %vm517, %v2653, %v2654
        %v2656 = vrot.slane %v2356, 1
        %v2657 = vrot.slane %v2404, 1
        %v2658 = vsel %vm517, %v2656, %v2657
        %v2659 = vrot.slane %v2357, 1
        %v2660 = vrot.slane %v2405, 1
        %v2661 = vsel %vm517, %v2659, %v2660
        %v2662 = vrot.slane %v2358, 1
        %v2663 = vrot.slane %v2406, 1
        %v2664 = vsel %vm517, %v2662, %v2663
        %v2665 = vrot.slane %v2359, 1
        %v2666 = vrot.slane %v2407, 1
        %v2667 = vsel %vm517, %v2665, %v2666
        %v2668 = vrot.slane %v2360, 1
        %v2669 = vrot.slane %v2408, 1
        %v2670 = vsel %vm517, %v2668, %v2669
        %v2671 = vrot.slane %v2361, 1
        %v2672 = vrot.slane %v2409, 1
        %v2673 = vsel %vm517, %v2671, %v2672
        %v2674 = vrot.slane %v2362, 1
        %v2675 = vrot.slane %v2410, 1
        %v2676 = vsel %vm517, %v2674, %v2675
        %v2677 = vrot.slane %v2363, 1
        %v2678 = vrot.slane %v2411, 1
        %v2679 = vsel %vm517, %v2677, %v2678
        %v2680 = vrot.slane %v2364, 1
        %v2681 = vrot.slane %v2412, 1
        %v2682 = vsel %vm517, %v2680, %v2681
        %v2683 = vrot.slane %v2365, 1
        %v2684 = vrot.slane %v2413, 1
        %v2685 = vsel %vm517, %v2683, %v2684
        %2686 = vrot.lane.b32.xlu0 %v2640, 8
        %v2687 = vpop.permute.xlu0 %2686
        %2688 = vrot.lane.b32.xlu0 %v2643, 8
        %v2689 = vpop.permute.xlu0 %2688
        %2690 = vrot.lane.b32.xlu0 %v2646, 8
        %v2691 = vpop.permute.xlu0 %2690
        %2692 = vrot.lane.b32.xlu0 %v2649, 8
        %v2693 = vpop.permute.xlu0 %2692
        %2694 = vrot.lane.b32.xlu0 %v2652, 8
        %v2695 = vpop.permute.xlu0 %2694
        %2696 = vrot.lane.b32.xlu0 %v2655, 8
        %v2697 = vpop.permute.xlu0 %2696
        %2698 = vrot.lane.b32.xlu0 %v2658, 8
        %v2699 = vpop.permute.xlu0 %2698
        %2700 = vrot.lane.b32.xlu0 %v2661, 8
        %v2701 = vpop.permute.xlu0 %2700
        %2702 = vrot.lane.b32.xlu0 %v2664, 8
        %v2703 = vpop.permute.xlu0 %2702
        %2704 = vrot.lane.b32.xlu0 %v2667, 8
        %v2705 = vpop.permute.xlu0 %2704
        %2706 = vrot.lane.b32.xlu0 %v2670, 8
        %v2707 = vpop.permute.xlu0 %2706
        %2708 = vrot.lane.b32.xlu0 %v2673, 8
        %v2709 = vpop.permute.xlu0 %2708
        %2710 = vrot.lane.b32.xlu0 %v2676, 8
        %v2711 = vpop.permute.xlu0 %2710
        %2712 = vrot.lane.b32.xlu0 %v2679, 8
        %v2713 = vpop.permute.xlu0 %2712
        %2714 = vrot.lane.b32.xlu0 %v2682, 8
        %v2715 = vpop.permute.xlu0 %2714
        %2716 = vrot.lane.b32.xlu0 %v2685, 8
        %v2717 = vpop.permute.xlu0 %2716
        %v2720 = vunpack.c.l.b16 %v2280
        %v2721 = vunpack.c.l.b16 %v2281
        %v2722 = vpack.c.b16 %v2721, %v2720
        %2723 = vrot.lane.b32.xlu0 %v2351, 12
        %v2724 = vpop.permute.xlu0 %2723
        %2725 = vrot.lane.b32.xlu0 %v2352, 12
        %v2726 = vpop.permute.xlu0 %2725
        %2727 = vrot.lane.b32.xlu0 %v2353, 12
        %v2728 = vpop.permute.xlu0 %2727
        %2729 = vrot.lane.b32.xlu0 %v2354, 12
        %v2730 = vpop.permute.xlu0 %2729
        %2731 = vrot.lane.b32.xlu0 %v2355, 12
        %v2732 = vpop.permute.xlu0 %2731
        %2733 = vrot.lane.b32.xlu0 %v2356, 12
        %v2734 = vpop.permute.xlu0 %2733
        %2735 = vrot.lane.b32.xlu0 %v2357, 12
        %v2736 = vpop.permute.xlu0 %2735
        %2737 = vrot.lane.b32.xlu0 %v2358, 12
        %v2738 = vpop.permute.xlu0 %2737
        %2739 = vrot.lane.b32.xlu0 %v2359, 12
        %v2740 = vpop.permute.xlu0 %2739
        %2741 = vrot.lane.b32.xlu0 %v2360, 12
        %v2742 = vpop.permute.xlu0 %2741
        %2743 = vrot.lane.b32.xlu0 %v2361, 12
        %v2744 = vpop.permute.xlu0 %2743
        %2745 = vrot.lane.b32.xlu0 %v2362, 12
        %v2746 = vpop.permute.xlu0 %2745
        %2747 = vrot.lane.b32.xlu0 %v2363, 12
        %v2748 = vpop.permute.xlu0 %2747
        %2749 = vrot.lane.b32.xlu0 %v2364, 12
        %v2750 = vpop.permute.xlu0 %2749
        %2751 = vrot.lane.b32.xlu0 %v2365, 12
        %v2752 = vpop.permute.xlu0 %2751
        %2753 = vrot.lane.b32.xlu0 %v2722, 12
        %v2754 = vpop.permute.xlu0 %2753
        %v2756 = vunpack.c.l.b16 %v2282
        %v2757 = vpack.c.b16 %v2756, %v2756
        %v2759 = vshrl.u32 %v2722, 16
        %v2761 = vshll.u32 %v2722, 16
        %v2763 = vrot.slane %v2761, 1
        %v2764 = vor.u32 %v2759, %v2763
        %v2766 = vshll.u32 %v2757, 16
        %v2768 = vrot.slane %v2766, 1
        %v2769 = vsel %vm260, %v2764, %v2768
        %2770 = vrot.lane.b32.xlu0 %v2437, 16
        %v2771 = vpop.permute.xlu0 %2770
        %2772 = vrot.lane.b32.xlu0 %v2449, 16
        %v2773 = vpop.permute.xlu0 %2772
        %2774 = vrot.lane.b32.xlu0 %v2461, 16
        %v2775 = vpop.permute.xlu0 %2774
        %2776 = vrot.lane.b32.xlu0 %v2473, 16
        %v2777 = vpop.permute.xlu0 %2776
        %2778 = vrot.lane.b32.xlu0 %v2485, 16
        %v2779 = vpop.permute.xlu0 %2778
        %2780 = vrot.lane.b32.xlu0 %v2497, 16
        %v2781 = vpop.permute.xlu0 %2780
        %2782 = vrot.lane.b32.xlu0 %v2509, 16
        %v2783 = vpop.permute.xlu0 %2782
        %2784 = vrot.lane.b32.xlu0 %v2521, 16
        %v2785 = vpop.permute.xlu0 %2784
        %2786 = vrot.lane.b32.xlu0 %v2533, 16
        %v2787 = vpop.permute.xlu0 %2786
        %2788 = vrot.lane.b32.xlu0 %v2545, 16
        %v2789 = vpop.permute.xlu0 %2788
        %2790 = vrot.lane.b32.xlu0 %v2557, 16
        %v2791 = vpop.permute.xlu0 %2790
        %2792 = vrot.lane.b32.xlu0 %v2569, 16
        %v2793 = vpop.permute.xlu0 %2792
        %2794 = vrot.lane.b32.xlu0 %v2581, 16
        %v2795 = vpop.permute.xlu0 %2794
        %2796 = vrot.lane.b32.xlu0 %v2593, 16
        %v2797 = vpop.permute.xlu0 %2796
        %2798 = vrot.lane.b32.xlu0 %v2605, 16
        %v2799 = vpop.permute.xlu0 %2798
        %2800 = vrot.lane.b32.xlu0 %v2769, 16
        %v2801 = vpop.permute.xlu0 %2800
        %v2802 = vrot.slane %v2722, 1
        %v2803 = vrot.slane %v2757, 1
        %v2804 = vsel %vm517, %v2802, %v2803
        %2805 = vrot.lane.b32.xlu0 %v2643, 20
        %v2806 = vpop.permute.xlu0 %2805
        %2807 = vrot.lane.b32.xlu0 %v2646, 20
        %v2808 = vpop.permute.xlu0 %2807
        %2809 = vrot.lane.b32.xlu0 %v2649, 20
        %v2810 = vpop.permute.xlu0 %2809
        %2811 = vrot.lane.b32.xlu0 %v2652, 20
        %v2812 = vpop.permute.xlu0 %2811
        %2813 = vrot.lane.b32.xlu0 %v2655, 20
        %v2814 = vpop.permute.xlu0 %2813
        %2815 = vrot.lane.b32.xlu0 %v2658, 20
        %v2816 = vpop.permute.xlu0 %2815
        %2817 = vrot.lane.b32.xlu0 %v2661, 20
        %v2818 = vpop.permute.xlu0 %2817
        %2819 = vrot.lane.b32.xlu0 %v2664, 20
        %v2820 = vpop.permute.xlu0 %2819
        %2821 = vrot.lane.b32.xlu0 %v2667, 20
        %v2822 = vpop.permute.xlu0 %2821
        %2823 = vrot.lane.b32.xlu0 %v2670, 20
        %v2824 = vpop.permute.xlu0 %2823
        %2825 = vrot.lane.b32.xlu0 %v2673, 20
        %v2826 = vpop.permute.xlu0 %2825
        %2827 = vrot.lane.b32.xlu0 %v2676, 20
        %v2828 = vpop.permute.xlu0 %2827
        %2829 = vrot.lane.b32.xlu0 %v2679, 20
        %v2830 = vpop.permute.xlu0 %2829
        %2831 = vrot.lane.b32.xlu0 %v2682, 20
        %v2832 = vpop.permute.xlu0 %2831
        %2833 = vrot.lane.b32.xlu0 %v2685, 20
        %v2834 = vpop.permute.xlu0 %2833
        %2835 = vrot.lane.b32.xlu0 %v2804, 20
        %v2836 = vpop.permute.xlu0 %2835
        %v2839 = vunpack.c.l.b16 %v2283
        %v2840 = vunpack.c.l.b16 %v2284
        %v2841 = vpack.c.b16 %v2840, %v2839
        %2842 = vrot.lane.b32.xlu0 %v2352, 24
        %v2843 = vpop.permute.xlu0 %2842
        %2844 = vrot.lane.b32.xlu0 %v2353, 24
        %v2845 = vpop.permute.xlu0 %2844
        %2846 = vrot.lane.b32.xlu0 %v2354, 24
        %v2847 = vpop.permute.xlu0 %2846
        %2848 = vrot.lane.b32.xlu0 %v2355, 24
        %v2849 = vpop.permute.xlu0 %2848
        %2850 = vrot.lane.b32.xlu0 %v2356, 24
        %v2851 = vpop.permute.xlu0 %2850
        %2852 = vrot.lane.b32.xlu0 %v2357, 24
        %v2853 = vpop.permute.xlu0 %2852
        %2854 = vrot.lane.b32.xlu0 %v2358, 24
        %v2855 = vpop.permute.xlu0 %2854
        %2856 = vrot.lane.b32.xlu0 %v2359, 24
        %v2857 = vpop.permute.xlu0 %2856
        %2858 = vrot.lane.b32.xlu0 %v2360, 24
        %v2859 = vpop.permute.xlu0 %2858
        %2860 = vrot.lane.b32.xlu0 %v2361, 24
        %v2861 = vpop.permute.xlu0 %2860
        %2862 = vrot.lane.b32.xlu0 %v2362, 24
        %v2863 = vpop.permute.xlu0 %2862
        %2864 = vrot.lane.b32.xlu0 %v2363, 24
        %v2865 = vpop.permute.xlu0 %2864
        %2866 = vrot.lane.b32.xlu0 %v2364, 24
        %v2867 = vpop.permute.xlu0 %2866
        %2868 = vrot.lane.b32.xlu0 %v2365, 24
        %v2869 = vpop.permute.xlu0 %2868
        %2870 = vrot.lane.b32.xlu0 %v2722, 24
        %v2871 = vpop.permute.xlu0 %2870
        %2872 = vrot.lane.b32.xlu0 %v2841, 24
        %v2873 = vpop.permute.xlu0 %2872
        %v2875 = vunpack.c.l.b16 %v2285
        %v2876 = vpack.c.b16 %v2875, %v2875
        %v2878 = vshrl.u32 %v2841, 16
        %v2880 = vshll.u32 %v2841, 16
        %v2882 = vrot.slane %v2880, 1
        %v2883 = vor.u32 %v2878, %v2882
        %v2885 = vshll.u32 %v2876, 16
        %v2887 = vrot.slane %v2885, 1
        %v2888 = vsel %vm260, %v2883, %v2887
        %2889 = vrot.lane.b32.xlu0 %v2449, 28
        %v2890 = vpop.permute.xlu0 %2889
        %2891 = vrot.lane.b32.xlu0 %v2461, 28
        %v2892 = vpop.permute.xlu0 %2891
        %2893 = vrot.lane.b32.xlu0 %v2473, 28
        %v2894 = vpop.permute.xlu0 %2893
        %2895 = vrot.lane.b32.xlu0 %v2485, 28
        %v2896 = vpop.permute.xlu0 %2895
        %2897 = vrot.lane.b32.xlu0 %v2497, 28
        %v2898 = vpop.permute.xlu0 %2897
        %2899 = vrot.lane.b32.xlu0 %v2509, 28
        %v2900 = vpop.permute.xlu0 %2899
        %2901 = vrot.lane.b32.xlu0 %v2521, 28
        %v2902 = vpop.permute.xlu0 %2901
        %2903 = vrot.lane.b32.xlu0 %v2533, 28
        %v2904 = vpop.permute.xlu0 %2903
        %2905 = vrot.lane.b32.xlu0 %v2545, 28
        %v2906 = vpop.permute.xlu0 %2905
        %2907 = vrot.lane.b32.xlu0 %v2557, 28
        %v2908 = vpop.permute.xlu0 %2907
        %2909 = vrot.lane.b32.xlu0 %v2569, 28
        %v2910 = vpop.permute.xlu0 %2909
        %2911 = vrot.lane.b32.xlu0 %v2581, 28
        %v2912 = vpop.permute.xlu0 %2911
        %2913 = vrot.lane.b32.xlu0 %v2593, 28
        %v2914 = vpop.permute.xlu0 %2913
        %2915 = vrot.lane.b32.xlu0 %v2605, 28
        %v2916 = vpop.permute.xlu0 %2915
        %2917 = vrot.lane.b32.xlu0 %v2769, 28
        %v2918 = vpop.permute.xlu0 %2917
        %2919 = vrot.lane.b32.xlu0 %v2888, 28
        %v2920 = vpop.permute.xlu0 %2919
        %v2921 = vrot.slane %v2841, 1
        %v2922 = vrot.slane %v2876, 1
        %v2923 = vsel %vm517, %v2921, %v2922
        %2924 = vrot.lane.b32.xlu0 %v2646, 32
        %v2925 = vpop.permute.xlu0 %2924
        %2926 = vrot.lane.b32.xlu0 %v2649, 32
        %v2927 = vpop.permute.xlu0 %2926
        %2928 = vrot.lane.b32.xlu0 %v2652, 32
        %v2929 = vpop.permute.xlu0 %2928
        %2930 = vrot.lane.b32.xlu0 %v2655, 32
        %v2931 = vpop.permute.xlu0 %2930
        %2932 = vrot.lane.b32.xlu0 %v2658, 32
        %v2933 = vpop.permute.xlu0 %2932
        %2934 = vrot.lane.b32.xlu0 %v2661, 32
        %v2935 = vpop.permute.xlu0 %2934
        %2936 = vrot.lane.b32.xlu0 %v2664, 32
        %v2937 = vpop.permute.xlu0 %2936
        %2938 = vrot.lane.b32.xlu0 %v2667, 32
        %v2939 = vpop.permute.xlu0 %2938
        %2940 = vrot.lane.b32.xlu0 %v2670, 32
        %v2941 = vpop.permute.xlu0 %2940
        %2942 = vrot.lane.b32.xlu0 %v2673, 32
        %v2943 = vpop.permute.xlu0 %2942
        %2944 = vrot.lane.b32.xlu0 %v2676, 32
        %v2945 = vpop.permute.xlu0 %2944
        %2946 = vrot.lane.b32.xlu0 %v2679, 32
        %v2947 = vpop.permute.xlu0 %2946
        %2948 = vrot.lane.b32.xlu0 %v2682, 32
        %v2949 = vpop.permute.xlu0 %2948
        %2950 = vrot.lane.b32.xlu0 %v2685, 32
        %v2951 = vpop.permute.xlu0 %2950
        %2952 = vrot.lane.b32.xlu0 %v2804, 32
        %v2953 = vpop.permute.xlu0 %2952
        %2954 = vrot.lane.b32.xlu0 %v2923, 32
        %v2955 = vpop.permute.xlu0 %2954
        %v2957 = vsel %vm824, %v2350, %v2607
        %v2959 = vsel %vm824, %v2351, %v2609
        %v2961 = vsel %vm824, %v2352, %v2611
        %v2963 = vsel %vm824, %v2353, %v2613
        %v2965 = vsel %vm824, %v2354, %v2615
        %v2967 = vsel %vm824, %v2355, %v2617
        %v2969 = vsel %vm824, %v2356, %v2619
        %v2971 = vsel %vm824, %v2357, %v2621
        %v2973 = vsel %vm824, %v2358, %v2623
        %v2975 = vsel %vm824, %v2359, %v2625
        %v2977 = vsel %vm824, %v2360, %v2627
        %v2979 = vsel %vm824, %v2361, %v2629
        %v2981 = vsel %vm824, %v2362, %v2631
        %v2983 = vsel %vm824, %v2363, %v2633
        %v2985 = vsel %vm824, %v2364, %v2635
        %v2987 = vsel %vm824, %v2365, %v2637
        %v2989 = vsel %vm857, %v2957, %v2687
        %v2991 = vsel %vm857, %v2959, %v2689
        %v2993 = vsel %vm857, %v2961, %v2691
        %v2995 = vsel %vm857, %v2963, %v2693
        %v2997 = vsel %vm857, %v2965, %v2695
        %v2999 = vsel %vm857, %v2967, %v2697
        %v3001 = vsel %vm857, %v2969, %v2699
        %v3003 = vsel %vm857, %v2971, %v2701
        %v3005 = vsel %vm857, %v2973, %v2703
        %v3007 = vsel %vm857, %v2975, %v2705
        %v3009 = vsel %vm857, %v2977, %v2707
        %v3011 = vsel %vm857, %v2979, %v2709
        %v3013 = vsel %vm857, %v2981, %v2711
        %v3015 = vsel %vm857, %v2983, %v2713
        %v3017 = vsel %vm857, %v2985, %v2715
        %v3019 = vsel %vm857, %v2987, %v2717
        %v3021 = vsel %vm890, %v2989, %v2724
        %v3023 = vsel %vm890, %v2991, %v2726
        %v3025 = vsel %vm890, %v2993, %v2728
        %v3027 = vsel %vm890, %v2995, %v2730
        %v3029 = vsel %vm890, %v2997, %v2732
        %v3031 = vsel %vm890, %v2999, %v2734
        %v3033 = vsel %vm890, %v3001, %v2736
        %v3035 = vsel %vm890, %v3003, %v2738
        %v3037 = vsel %vm890, %v3005, %v2740
        %v3039 = vsel %vm890, %v3007, %v2742
        %v3041 = vsel %vm890, %v3009, %v2744
        %v3043 = vsel %vm890, %v3011, %v2746
        %v3045 = vsel %vm890, %v3013, %v2748
        %v3047 = vsel %vm890, %v3015, %v2750
        %v3049 = vsel %vm890, %v3017, %v2752
        %v3051 = vsel %vm890, %v3019, %v2754
        %v3053 = vsel %vm923, %v3021, %v2771
        %v3055 = vsel %vm923, %v3023, %v2773
        %v3057 = vsel %vm923, %v3025, %v2775
        %v3059 = vsel %vm923, %v3027, %v2777
        %v3061 = vsel %vm923, %v3029, %v2779
        %v3063 = vsel %vm923, %v3031, %v2781
        %v3065 = vsel %vm923, %v3033, %v2783
        %v3067 = vsel %vm923, %v3035, %v2785
        %v3069 = vsel %vm923, %v3037, %v2787
        %v3071 = vsel %vm923, %v3039, %v2789
        %v3073 = vsel %vm923, %v3041, %v2791
        %v3075 = vsel %vm923, %v3043, %v2793
        %v3077 = vsel %vm923, %v3045, %v2795
        %v3079 = vsel %vm923, %v3047, %v2797
        %v3081 = vsel %vm923, %v3049, %v2799
        %v3083 = vsel %vm923, %v3051, %v2801
        %v3085 = vsel %vm956, %v3053, %v2806
        %v3087 = vsel %vm956, %v3055, %v2808
        %v3089 = vsel %vm956, %v3057, %v2810
        %v3091 = vsel %vm956, %v3059, %v2812
        %v3093 = vsel %vm956, %v3061, %v2814
        %v3095 = vsel %vm956, %v3063, %v2816
        %v3097 = vsel %vm956, %v3065, %v2818
        %v3099 = vsel %vm956, %v3067, %v2820
        %v3101 = vsel %vm956, %v3069, %v2822
        %v3103 = vsel %vm956, %v3071, %v2824
        %v3105 = vsel %vm956, %v3073, %v2826
        %v3107 = vsel %vm956, %v3075, %v2828
        %v3109 = vsel %vm956, %v3077, %v2830
        %v3111 = vsel %vm956, %v3079, %v2832
        %v3113 = vsel %vm956, %v3081, %v2834
        %v3115 = vsel %vm956, %v3083, %v2836
        %v3117 = vsel %vm989, %v3085, %v2843
        %v3119 = vsel %vm989, %v3087, %v2845
        %v3121 = vsel %vm989, %v3089, %v2847
        %v3123 = vsel %vm989, %v3091, %v2849
        %v3125 = vsel %vm989, %v3093, %v2851
        %v3127 = vsel %vm989, %v3095, %v2853
        %v3129 = vsel %vm989, %v3097, %v2855
        %v3131 = vsel %vm989, %v3099, %v2857
        %v3133 = vsel %vm989, %v3101, %v2859
        %v3135 = vsel %vm989, %v3103, %v2861
        %v3137 = vsel %vm989, %v3105, %v2863
        %v3139 = vsel %vm989, %v3107, %v2865
        %v3141 = vsel %vm989, %v3109, %v2867
        %v3143 = vsel %vm989, %v3111, %v2869
        %v3145 = vsel %vm989, %v3113, %v2871
        %v3147 = vsel %vm989, %v3115, %v2873
        %v3149 = vsel %vm1022, %v3117, %v2890
        %v3151 = vsel %vm1022, %v3119, %v2892
        %v3153 = vsel %vm1022, %v3121, %v2894
        %v3155 = vsel %vm1022, %v3123, %v2896
        %v3157 = vsel %vm1022, %v3125, %v2898
        %v3159 = vsel %vm1022, %v3127, %v2900
        %v3161 = vsel %vm1022, %v3129, %v2902
        %v3163 = vsel %vm1022, %v3131, %v2904
        %v3165 = vsel %vm1022, %v3133, %v2906
        %v3167 = vsel %vm1022, %v3135, %v2908
        %v3169 = vsel %vm1022, %v3137, %v2910
        %v3171 = vsel %vm1022, %v3139, %v2912
        %v3173 = vsel %vm1022, %v3141, %v2914
        %v3175 = vsel %vm1022, %v3143, %v2916
        %v3177 = vsel %vm1022, %v3145, %v2918
        %v3179 = vsel %vm1022, %v3147, %v2920
        %v3181 = vsel %vm1055, %v3149, %v2925
        %v3183 = vsel %vm1055, %v3151, %v2927
        %v3185 = vsel %vm1055, %v3153, %v2929
        %v3187 = vsel %vm1055, %v3155, %v2931
        %v3189 = vsel %vm1055, %v3157, %v2933
        %v3191 = vsel %vm1055, %v3159, %v2935
        %v3193 = vsel %vm1055, %v3161, %v2937
        %v3195 = vsel %vm1055, %v3163, %v2939
        %v3197 = vsel %vm1055, %v3165, %v2941
        %v3199 = vsel %vm1055, %v3167, %v2943
        %v3201 = vsel %vm1055, %v3169, %v2945
        %v3203 = vsel %vm1055, %v3171, %v2947
        %v3205 = vsel %vm1055, %v3173, %v2949
        %v3207 = vsel %vm1055, %v3175, %v2951
        %v3209 = vsel %vm1055, %v3177, %v2953
        %v3211 = vsel %vm1055, %v3179, %v2955
        %v3212 = vld [vmem:[%s2] sm:$0xf]
        %v3213 = vld [vmem:[%s2 + $0x4] sm:$0xf]
        %v3214 = vld [vmem:[%s2 + $0x8] sm:$0xf]
        %v3215 = vld [vmem:[%s2 + $0xc] sm:$0xf]
        %v3216 = vld [vmem:[%s2 + $0x10] sm:$0x3]
        %v3222 = vunpack.c.l.b16 %v3212
        %v3223 = vunpack.c.l.b16 %v3213
        %v3224 = vunpack.c.l.b16 %v3214
        %v3225 = vunpack.c.l.b16 %v3215
        %v3226 = vunpack.c.l.b16 %v3216
        %v3227 = vpack.c.b16 %v3223, %v3222
        %v3228 = vpack.c.b16 %v3225, %v3224
        %v3229 = vpack.c.b16 %v3226, %v3226
        %v3232 = vsel %vm1108, %v3181, 0
        %v3234 = vsel %vm1108, %v3183, 0
        %v3236 = vsel %vm1108, %v3185, 0
        %v3238 = vsel %vm1108, %v3187, 0
        %v3240 = vsel %vm1108, %v3189, 0
        %v3242 = vsel %vm1108, %v3191, 0
        %v3244 = vsel %vm1108, %v3193, 0
        %v3246 = vsel %vm1108, %v3195, 0
        %v3248 = vsel %vm1108, %v3197, 0
        %v3250 = vsel %vm1108, %v3199, 0
        %v3252 = vsel %vm1108, %v3201, 0
        %v3254 = vsel %vm1108, %v3203, 0
        %v3256 = vsel %vm1108, %v3205, 0
        %v3258 = vsel %vm1108, %v3207, 0
        %v3260 = vsel %vm1108, %v3209, 0
        %v3262 = vsel %vm1108, %v3211, 0
        %v3265 = vsel %vm1141, %v3229, 0
        %3267 = vmatprep.subr.bf16.mxu0 0
        %3268 = vmatpush1.bf16.msra.mxu0 0
        %3269 = vmatprep.subr.bf16.mxu0 0
        %3270 = vmatpush1.bf16.msra.mxu0 0
        %3271 = vmatprep.subr.bf16.mxu0 0
        %3272 = vmatpush1.bf16.msra.mxu0 0
        %3273 = vmatprep.subr.bf16.mxu0 0
        %3274 = vmatpush1.bf16.msra.mxu0 0
        %3275 = vmatprep.subr.bf16.mxu0 0
        %3276 = vmatpush1.bf16.msra.mxu0 0
        %3277 = vmatprep.subr.bf16.mxu0 0
        %3278 = vmatpush1.bf16.msra.mxu0 %v3265
        %3279 = vmatprep.subr.bf16.mxu0 0
        %3280 = vmatpush1.bf16.msra.mxu0 %v3228
        %3281 = vmatprep.subr.bf16.mxu0 0
        %3282 = vmatpush1.bf16.msra.mxu0 %v3227
        %3283 = vmatprep.subr.bf16.mxu0 0
        %3284 = vmatpush2.bf16.msra.mxu0 0
        %3285 = vmatprep.subr.bf16.mxu0 0
        %3286 = vmatpush2.bf16.msra.mxu0 0
        %3287 = vmatprep.subr.bf16.mxu0 0
        %3288 = vmatpush2.bf16.msra.mxu0 0
        %3289 = vmatprep.subr.bf16.mxu0 0
        %3290 = vmatpush2.bf16.msra.mxu0 0
        %3291 = vmatprep.subr.bf16.mxu0 0
        %3292 = vmatpush2.bf16.msra.mxu0 0
        %3293 = vmatprep.subr.bf16.mxu0 0
        %3294 = vmatpush2.bf16.msra.mxu0 0
        %3295 = vmatprep.subr.bf16.mxu0 0
        %3296 = vmatpush2.bf16.msra.mxu0 0
        %3297 = vmatprep.subr.bf16.mxu0 0
        %3298 = vmatpush2.bf16.msra.mxu0 0
        %3299 = vmatprep.mubr.bf16.mxu0 0
        %3300 = vmatmul.mubr.bf16.gmra.mxu0 %v3232
        %v3301 = vpop.f32.mrf.mxu0
        %v3302 = vadd.f32 0.0, %v3301
        %v3303 = vpop.f32.mrf.mxu0
        %v3304 = vpop.f32.mrf.mxu0
        %v3305 = vadd.f32 0.0, %v3304
        %v3306 = vpop.f32.mrf.mxu0
        %3307 = vmatprep.mubr.bf16.mxu0 0
        %3308 = vmatmul.mubr.bf16.gmra.mxu0 %v3234
        %v3309 = vpop.f32.mrf.mxu0
        %v3310 = vadd.f32 0.0, %v3309
        %v3311 = vpop.f32.mrf.mxu0
        %v3312 = vpop.f32.mrf.mxu0
        %v3313 = vadd.f32 0.0, %v3312
        %v3314 = vpop.f32.mrf.mxu0
        %3315 = vmatprep.mubr.bf16.mxu0 0
        %3316 = vmatmul.mubr.bf16.gmra.mxu0 %v3236
        %v3317 = vpop.f32.mrf.mxu0
        %v3318 = vadd.f32 0.0, %v3317
        %v3319 = vpop.f32.mrf.mxu0
        %v3320 = vpop.f32.mrf.mxu0
        %v3321 = vadd.f32 0.0, %v3320
        %v3322 = vpop.f32.mrf.mxu0
        %3323 = vmatprep.mubr.bf16.mxu0 0
        %3324 = vmatmul.mubr.bf16.gmra.mxu0 %v3238
        %v3325 = vpop.f32.mrf.mxu0
        %v3326 = vadd.f32 0.0, %v3325
        %v3327 = vpop.f32.mrf.mxu0
        %v3328 = vpop.f32.mrf.mxu0
        %v3329 = vadd.f32 0.0, %v3328
        %v3330 = vpop.f32.mrf.mxu0
        %3331 = vmatprep.mubr.bf16.mxu0 0
        %3332 = vmatmul.mubr.bf16.gmra.mxu0 %v3240
        %v3333 = vpop.f32.mrf.mxu0
        %v3334 = vadd.f32 0.0, %v3333
        %v3335 = vpop.f32.mrf.mxu0
        %v3336 = vpop.f32.mrf.mxu0
        %v3337 = vadd.f32 0.0, %v3336
        %v3338 = vpop.f32.mrf.mxu0
        %3339 = vmatprep.mubr.bf16.mxu0 0
        %3340 = vmatmul.mubr.bf16.gmra.mxu0 %v3242
        %v3341 = vpop.f32.mrf.mxu0
        %v3342 = vadd.f32 0.0, %v3341
        %v3343 = vpop.f32.mrf.mxu0
        %v3344 = vpop.f32.mrf.mxu0
        %v3345 = vadd.f32 0.0, %v3344
        %v3346 = vpop.f32.mrf.mxu0
        %3347 = vmatprep.mubr.bf16.mxu0 0
        %3348 = vmatmul.mubr.bf16.gmra.mxu0 %v3244
        %v3349 = vpop.f32.mrf.mxu0
        %v3350 = vadd.f32 0.0, %v3349
        %v3351 = vpop.f32.mrf.mxu0
        %v3352 = vpop.f32.mrf.mxu0
        %v3353 = vadd.f32 0.0, %v3352
        %v3354 = vpop.f32.mrf.mxu0
        %3355 = vmatprep.mubr.bf16.mxu0 0
        %3356 = vmatmul.mubr.bf16.gmra.mxu0 %v3246
        %v3357 = vpop.f32.mrf.mxu0
        %v3358 = vadd.f32 0.0, %v3357
        %v3359 = vpop.f32.mrf.mxu0
        %v3360 = vpop.f32.mrf.mxu0
        %v3361 = vadd.f32 0.0, %v3360
        %v3362 = vpop.f32.mrf.mxu0
        %3363 = vmatprep.mubr.bf16.mxu0 0
        %3364 = vmatmul.mubr.bf16.gmra.mxu0 %v3248
        %v3365 = vpop.f32.mrf.mxu0
        %v3366 = vadd.f32 0.0, %v3365
        %v3367 = vpop.f32.mrf.mxu0
        %v3368 = vpop.f32.mrf.mxu0
        %v3369 = vadd.f32 0.0, %v3368
        %v3370 = vpop.f32.mrf.mxu0
        %3371 = vmatprep.mubr.bf16.mxu0 0
        %3372 = vmatmul.mubr.bf16.gmra.mxu0 %v3250
        %v3373 = vpop.f32.mrf.mxu0
        %v3374 = vadd.f32 0.0, %v3373
        %v3375 = vpop.f32.mrf.mxu0
        %v3376 = vpop.f32.mrf.mxu0
        %v3377 = vadd.f32 0.0, %v3376
        %v3378 = vpop.f32.mrf.mxu0
        %3379 = vmatprep.mubr.bf16.mxu0 0
        %3380 = vmatmul.mubr.bf16.gmra.mxu0 %v3252
        %v3381 = vpop.f32.mrf.mxu0
        %v3382 = vadd.f32 0.0, %v3381
        %v3383 = vpop.f32.mrf.mxu0
        %v3384 = vpop.f32.mrf.mxu0
        %v3385 = vadd.f32 0.0, %v3384
        %v3386 = vpop.f32.mrf.mxu0
        %3387 = vmatprep.mubr.bf16.mxu0 0
        %3388 = vmatmul.mubr.bf16.gmra.mxu0 %v3254
        %v3389 = vpop.f32.mrf.mxu0
        %v3390 = vadd.f32 0.0, %v3389
        %v3391 = vpop.f32.mrf.mxu0
        %v3392 = vpop.f32.mrf.mxu0
        %v3393 = vadd.f32 0.0, %v3392
        %v3394 = vpop.f32.mrf.mxu0
        %3395 = vmatprep.mubr.bf16.mxu0 0
        %3396 = vmatmul.mubr.bf16.gmra.mxu0 %v3256
        %v3397 = vpop.f32.mrf.mxu0
        %v3398 = vadd.f32 0.0, %v3397
        %v3399 = vpop.f32.mrf.mxu0
        %v3400 = vpop.f32.mrf.mxu0
        %v3401 = vadd.f32 0.0, %v3400
        %v3402 = vpop.f32.mrf.mxu0
        %3403 = vmatprep.mubr.bf16.mxu0 0
        %3404 = vmatmul.mubr.bf16.gmra.mxu0 %v3258
        %v3405 = vpop.f32.mrf.mxu0
        %v3406 = vadd.f32 0.0, %v3405
        %v3407 = vpop.f32.mrf.mxu0
        %v3408 = vpop.f32.mrf.mxu0
        %v3409 = vadd.f32 0.0, %v3408
        %v3410 = vpop.f32.mrf.mxu0
        %3411 = vmatprep.mubr.bf16.mxu0 0
        %3412 = vmatmul.mubr.bf16.gmra.mxu0 %v3260
        %v3413 = vpop.f32.mrf.mxu0
        %v3414 = vadd.f32 0.0, %v3413
        %v3415 = vpop.f32.mrf.mxu0
        %v3416 = vpop.f32.mrf.mxu0
        %v3417 = vadd.f32 0.0, %v3416
        %v3418 = vpop.f32.mrf.mxu0
        %3419 = vmatprep.mubr.bf16.mxu0 0
        %3420 = vmatmul.mubr.bf16.gmra.mxu0 %v3262
        %v3421 = vpop.f32.mrf.mxu0
        %v3422 = vadd.f32 0.0, %v3421
        %v3423 = vpop.f32.mrf.mxu0
        %v3424 = vpop.f32.mrf.mxu0
        %v3425 = vadd.f32 0.0, %v3424
        %v3426 = vpop.f32.mrf.mxu0
        %3427 = vdwg.mxu0
        %v3428 = vsel %vm824, %v3302, 0.0
        %v3429 = vsel %vm824, %v3305, 0.0
        %v3430 = vadd.f32 %v3428, %v3429
        %v3431 = vsel %vm824, %v3310, 0.0
        %v3432 = vadd.f32 %v3430, %v3431
        %v3433 = vsel %vm824, %v3313, 0.0
        %v3434 = vadd.f32 %v3432, %v3433
        %v3435 = vsel %vm824, %v3318, 0.0
        %v3436 = vadd.f32 %v3434, %v3435
        %v3437 = vsel %vm824, %v3321, 0.0
        %v3438 = vadd.f32 %v3436, %v3437
        %v3439 = vsel %vm824, %v3326, 0.0
        %v3440 = vadd.f32 %v3438, %v3439
        %v3441 = vsel %vm824, %v3329, 0.0
        %v3442 = vadd.f32 %v3440, %v3441
        %v3443 = vsel %vm824, %v3334, 0.0
        %v3444 = vadd.f32 %v3442, %v3443
        %v3445 = vsel %vm824, %v3337, 0.0
        %v3446 = vadd.f32 %v3444, %v3445
        %v3447 = vsel %vm824, %v3342, 0.0
        %v3448 = vadd.f32 %v3446, %v3447
        %v3449 = vsel %vm824, %v3345, 0.0
        %v3450 = vadd.f32 %v3448, %v3449
        %v3451 = vsel %vm824, %v3350, 0.0
        %v3452 = vadd.f32 %v3450, %v3451
        %v3453 = vsel %vm824, %v3353, 0.0
        %v3454 = vadd.f32 %v3452, %v3453
        %v3455 = vsel %vm824, %v3358, 0.0
        %v3456 = vadd.f32 %v3454, %v3455
        %v3457 = vsel %vm824, %v3361, 0.0
        %v3458 = vadd.f32 %v3456, %v3457
        %v3459 = vsel %vm824, %v3366, 0.0
        %v3460 = vadd.f32 %v3458, %v3459
        %v3461 = vsel %vm824, %v3369, 0.0
        %v3462 = vadd.f32 %v3460, %v3461
        %v3463 = vsel %vm824, %v3374, 0.0
        %v3464 = vadd.f32 %v3462, %v3463
        %v3465 = vsel %vm824, %v3377, 0.0
        %v3466 = vadd.f32 %v3464, %v3465
        %v3467 = vsel %vm824, %v3382, 0.0
        %v3468 = vadd.f32 %v3466, %v3467
        %v3469 = vsel %vm824, %v3385, 0.0
        %v3470 = vadd.f32 %v3468, %v3469
        %v3471 = vsel %vm824, %v3390, 0.0
        %v3472 = vadd.f32 %v3470, %v3471
        %v3473 = vsel %vm824, %v3393, 0.0
        %v3474 = vadd.f32 %v3472, %v3473
        %v3475 = vsel %vm824, %v3398, 0.0
        %v3476 = vadd.f32 %v3474, %v3475
        %v3477 = vsel %vm824, %v3401, 0.0
        %v3478 = vadd.f32 %v3476, %v3477
        %v3479 = vsel %vm824, %v3406, 0.0
        %v3480 = vadd.f32 %v3478, %v3479
        %v3481 = vsel %vm824, %v3409, 0.0
        %v3482 = vadd.f32 %v3480, %v3481
        %v3483 = vsel %vm824, %v3414, 0.0
        %v3484 = vadd.f32 %v3482, %v3483
        %v3485 = vsel %vm824, %v3417, 0.0
        %v3486 = vadd.f32 %v3484, %v3485
        %v3487 = vsel %vm824, %v3422, 0.0
        %v3488 = vadd.f32 %v3486, %v3487
        %v3489 = vsel %vm824, %v3425, 0.0
        %v3490 = vadd.f32 %v3488, %v3489
        %v3491 = vrot.slane %v3490, 4
        %v3492 = vadd.f32 %v3490, %v3491
        %v3493 = vrot.slane %v3492, 2
        %v3494 = vadd.f32 %v3492, %v3493
        %v3495 = vrot.slane %v3494, 1
        %v3496 = vadd.f32 %v3494, %v3495
        %v3497 = vmul.f32 %v3496, %v1375
        %v3498 = vsub.f32 %v3302, %v3497
        %v3499 = vsub.f32 %v3305, %v3497
        %v3500 = vsub.f32 %v3310, %v3497
        %v3501 = vsub.f32 %v3313, %v3497
        %v3502 = vsub.f32 %v3318, %v3497
        %v3503 = vsub.f32 %v3321, %v3497
        %v3504 = vsub.f32 %v3326, %v3497
        %v3505 = vsub.f32 %v3329, %v3497
        %v3506 = vsub.f32 %v3334, %v3497
        %v3507 = vsub.f32 %v3337, %v3497
        %v3508 = vsub.f32 %v3342, %v3497
        %v3509 = vsub.f32 %v3345, %v3497
        %v3510 = vsub.f32 %v3350, %v3497
        %v3511 = vsub.f32 %v3353, %v3497
        %v3512 = vsub.f32 %v3358, %v3497
        %v3513 = vsub.f32 %v3361, %v3497
        %v3514 = vsub.f32 %v3366, %v3497
        %v3515 = vsub.f32 %v3369, %v3497
        %v3516 = vsub.f32 %v3374, %v3497
        %v3517 = vsub.f32 %v3377, %v3497
        %v3518 = vsub.f32 %v3382, %v3497
        %v3519 = vsub.f32 %v3385, %v3497
        %v3520 = vsub.f32 %v3390, %v3497
        %v3521 = vsub.f32 %v3393, %v3497
        %v3522 = vsub.f32 %v3398, %v3497
        %v3523 = vsub.f32 %v3401, %v3497
        %v3524 = vsub.f32 %v3406, %v3497
        %v3525 = vsub.f32 %v3409, %v3497
        %v3526 = vsub.f32 %v3414, %v3497
        %v3527 = vsub.f32 %v3417, %v3497
        %v3528 = vsub.f32 %v3422, %v3497
        %v3529 = vsub.f32 %v3425, %v3497
        %v3530 = vmul.f32 %v3498, %v3498
        %v3531 = vmul.f32 %v3499, %v3499
        %v3532 = vmul.f32 %v3500, %v3500
        %v3533 = vmul.f32 %v3501, %v3501
        %v3534 = vmul.f32 %v3502, %v3502
        %v3535 = vmul.f32 %v3503, %v3503
        %v3536 = vmul.f32 %v3504, %v3504
        %v3537 = vmul.f32 %v3505, %v3505
        %v3538 = vmul.f32 %v3506, %v3506
        %v3539 = vmul.f32 %v3507, %v3507
        %v3540 = vmul.f32 %v3508, %v3508
        %v3541 = vmul.f32 %v3509, %v3509
        %v3542 = vmul.f32 %v3510, %v3510
        %v3543 = vmul.f32 %v3511, %v3511
        %v3544 = vmul.f32 %v3512, %v3512
        %v3545 = vmul.f32 %v3513, %v3513
        %v3546 = vmul.f32 %v3514, %v3514
        %v3547 = vmul.f32 %v3515, %v3515
        %v3548 = vmul.f32 %v3516, %v3516
        %v3549 = vmul.f32 %v3517, %v3517
        %v3550 = vmul.f32 %v3518, %v3518
        %v3551 = vmul.f32 %v3519, %v3519
        %v3552 = vmul.f32 %v3520, %v3520
        %v3553 = vmul.f32 %v3521, %v3521
        %v3554 = vmul.f32 %v3522, %v3522
        %v3555 = vmul.f32 %v3523, %v3523
        %v3556 = vmul.f32 %v3524, %v3524
        %v3557 = vmul.f32 %v3525, %v3525
        %v3558 = vmul.f32 %v3526, %v3526
        %v3559 = vmul.f32 %v3527, %v3527
        %v3560 = vmul.f32 %v3528, %v3528
        %v3561 = vmul.f32 %v3529, %v3529
        %v3562 = vsel %vm824, %v3530, 0.0
        %v3563 = vsel %vm824, %v3531, 0.0
        %v3564 = vadd.f32 %v3562, %v3563
        %v3565 = vsel %vm824, %v3532, 0.0
        %v3566 = vadd.f32 %v3564, %v3565
        %v3567 = vsel %vm824, %v3533, 0.0
        %v3568 = vadd.f32 %v3566, %v3567
        %v3569 = vsel %vm824, %v3534, 0.0
        %v3570 = vadd.f32 %v3568, %v3569
        %v3571 = vsel %vm824, %v3535, 0.0
        %v3572 = vadd.f32 %v3570, %v3571
        %v3573 = vsel %vm824, %v3536, 0.0
        %v3574 = vadd.f32 %v3572, %v3573
        %v3575 = vsel %vm824, %v3537, 0.0
        %v3576 = vadd.f32 %v3574, %v3575
        %v3577 = vsel %vm824, %v3538, 0.0
        %v3578 = vadd.f32 %v3576, %v3577
        %v3579 = vsel %vm824, %v3539, 0.0
        %v3580 = vadd.f32 %v3578, %v3579
        %v3581 = vsel %vm824, %v3540, 0.0
        %v3582 = vadd.f32 %v3580, %v3581
        %v3583 = vsel %vm824, %v3541, 0.0
        %v3584 = vadd.f32 %v3582, %v3583
        %v3585 = vsel %vm824, %v3542, 0.0
        %v3586 = vadd.f32 %v3584, %v3585
        %v3587 = vsel %vm824, %v3543, 0.0
        %v3588 = vadd.f32 %v3586, %v3587
        %v3589 = vsel %vm824, %v3544, 0.0
        %v3590 = vadd.f32 %v3588, %v3589
        %v3591 = vsel %vm824, %v3545, 0.0
        %v3592 = vadd.f32 %v3590, %v3591
        %v3593 = vsel %vm824, %v3546, 0.0
        %v3594 = vadd.f32 %v3592, %v3593
        %v3595 = vsel %vm824, %v3547, 0.0
        %v3596 = vadd.f32 %v3594, %v3595
        %v3597 = vsel %vm824, %v3548, 0.0
        %v3598 = vadd.f32 %v3596, %v3597
        %v3599 = vsel %vm824, %v3549, 0.0
        %v3600 = vadd.f32 %v3598, %v3599
        %v3601 = vsel %vm824, %v3550, 0.0
        %v3602 = vadd.f32 %v3600, %v3601
        %v3603 = vsel %vm824, %v3551, 0.0
        %v3604 = vadd.f32 %v3602, %v3603
        %v3605 = vsel %vm824, %v3552, 0.0
        %v3606 = vadd.f32 %v3604, %v3605
        %v3607 = vsel %vm824, %v3553, 0.0
        %v3608 = vadd.f32 %v3606, %v3607
        %v3609 = vsel %vm824, %v3554, 0.0
        %v3610 = vadd.f32 %v3608, %v3609
        %v3611 = vsel %vm824, %v3555, 0.0
        %v3612 = vadd.f32 %v3610, %v3611
        %v3613 = vsel %vm824, %v3556, 0.0
        %v3614 = vadd.f32 %v3612, %v3613
        %v3615 = vsel %vm824, %v3557, 0.0
        %v3616 = vadd.f32 %v3614, %v3615
        %v3617 = vsel %vm824, %v3558, 0.0
        %v3618 = vadd.f32 %v3616, %v3617
        %v3619 = vsel %vm824, %v3559, 0.0
        %v3620 = vadd.f32 %v3618, %v3619
        %v3621 = vsel %vm824, %v3560, 0.0
        %v3622 = vadd.f32 %v3620, %v3621
        %v3623 = vsel %vm824, %v3561, 0.0
        %v3624 = vadd.f32 %v3622, %v3623
        %v3625 = vrot.slane %v3624, 4
        %v3626 = vadd.f32 %v3624, %v3625
        %v3627 = vrot.slane %v3626, 2
        %v3628 = vadd.f32 %v3626, %v3627
        %v3629 = vrot.slane %v3628, 1
        %v3630 = vadd.f32 %v3628, %v3629
        %v3631 = vmul.f32 %v3630, %v1375
        %v3632 = vadd.f32 %v3631, 1e-05
        %v3633 = vrsqrt.pop %v3632
        %v3634 = vmul.f32 %v3498, %v3633
        %v3635 = vmul.f32 %v3499, %v3633
        %v3636 = vmul.f32 %v3500, %v3633
        %v3637 = vmul.f32 %v3501, %v3633
        %v3638 = vmul.f32 %v3502, %v3633
        %v3639 = vmul.f32 %v3503, %v3633
        %v3640 = vmul.f32 %v3504, %v3633
        %v3641 = vmul.f32 %v3505, %v3633
        %v3642 = vmul.f32 %v3506, %v3633
        %v3643 = vmul.f32 %v3507, %v3633
        %v3644 = vmul.f32 %v3508, %v3633
        %v3645 = vmul.f32 %v3509, %v3633
        %v3646 = vmul.f32 %v3510, %v3633
        %v3647 = vmul.f32 %v3511, %v3633
        %v3648 = vmul.f32 %v3512, %v3633
        %v3649 = vmul.f32 %v3513, %v3633
        %v3650 = vmul.f32 %v3514, %v3633
        %v3651 = vmul.f32 %v3515, %v3633
        %v3652 = vmul.f32 %v3516, %v3633
        %v3653 = vmul.f32 %v3517, %v3633
        %v3654 = vmul.f32 %v3518, %v3633
        %v3655 = vmul.f32 %v3519, %v3633
        %v3656 = vmul.f32 %v3520, %v3633
        %v3657 = vmul.f32 %v3521, %v3633
        %v3658 = vmul.f32 %v3522, %v3633
        %v3659 = vmul.f32 %v3523, %v3633
        %v3660 = vmul.f32 %v3524, %v3633
        %v3661 = vmul.f32 %v3525, %v3633
        %v3662 = vmul.f32 %v3526, %v3633
        %v3663 = vmul.f32 %v3527, %v3633
        %v3664 = vmul.f32 %v3528, %v3633
        %v3665 = vmul.f32 %v3529, %v3633
        %vm3714 = vcmask 1046528
        %v3715 = vrot.slane %v173, 1
        %v3716 = vrot.slane %v174, 1
        %v3717 = vsel %vm3714, %v3715, %v3716
        %v3718 = vrot.slane %v175, 1
        %v3719 = vsel %vm3714, %v3716, %v3718
        %v3720 = vrot.slane %v176, 1
        %v3721 = vrot.slane %v177, 1
        %v3722 = vsel %vm3714, %v3720, %v3721
        %v3723 = vrot.slane %v178, 1
        %v3724 = vsel %vm3714, %v3721, %v3723
        %v3725 = vrot.slane %v179, 1
        %v3726 = vrot.slane %v180, 1
        %v3727 = vsel %vm3714, %v3725, %v3726
        %v3728 = vrot.slane %v181, 1
        %v3729 = vsel %vm3714, %v3726, %v3728
        %v3730 = vrot.slane %v182, 1
        %v3731 = vrot.slane %v183, 1
        %v3732 = vsel %vm3714, %v3730, %v3731
        %v3733 = vrot.slane %v184, 1
        %v3734 = vsel %vm3714, %v3731, %v3733
        %v3735 = vrot.slane %v185, 1
        %v3736 = vrot.slane %v186, 1
        %v3737 = vsel %vm3714, %v3735, %v3736
        %v3738 = vrot.slane %v187, 1
        %v3739 = vsel %vm3714, %v3736, %v3738
        %v3740 = vrot.slane %v188, 1
        %v3741 = vrot.slane %v189, 1
        %v3742 = vsel %vm3714, %v3740, %v3741
        %v3743 = vrot.slane %v190, 1
        %v3744 = vsel %vm3714, %v3741, %v3743
        %v3745 = vrot.slane %v191, 1
        %v3746 = vrot.slane %v192, 1
        %v3747 = vsel %vm3714, %v3745, %v3746
        %v3748 = vrot.slane %v193, 1
        %v3749 = vsel %vm3714, %v3746, %v3748
        %v3750 = vrot.slane %v194, 1
        %v3751 = vrot.slane %v195, 1
        %v3752 = vsel %vm3714, %v3750, %v3751
        %v3753 = vrot.slane %v196, 1
        %v3754 = vsel %vm3714, %v3751, %v3753
        %v3755 = vrot.slane %v197, 1
        %v3756 = vrot.slane %v198, 1
        %v3757 = vsel %vm3714, %v3755, %v3756
        %v3758 = vrot.slane %v199, 1
        %v3759 = vsel %vm3714, %v3756, %v3758
        %v3760 = vrot.slane %v200, 1
        %v3761 = vrot.slane %v201, 1
        %v3762 = vsel %vm3714, %v3760, %v3761
        %v3763 = vrot.slane %v202, 1
        %v3764 = vsel %vm3714, %v3761, %v3763
        %v3765 = vrot.slane %v203, 1
        %v3766 = vrot.slane %v204, 1
        %v3767 = vsel %vm3714, %v3765, %v3766
        %v3768 = vrot.slane %v205, 1
        %v3769 = vsel %vm3714, %v3766, %v3768
        %v3770 = vrot.slane %v206, 1
        %v3771 = vrot.slane %v207, 1
        %v3772 = vsel %vm3714, %v3770, %v3771
        %v3773 = vrot.slane %v208, 1
        %v3774 = vsel %vm3714, %v3771, %v3773
        %v3775 = vrot.slane %v209, 1
        %v3776 = vrot.slane %v210, 1
        %v3777 = vsel %vm3714, %v3775, %v3776
        %v3778 = vrot.slane %v211, 1
        %v3779 = vsel %vm3714, %v3776, %v3778
        %v3780 = vrot.slane %v212, 1
        %v3781 = vrot.slane %v213, 1
        %v3782 = vsel %vm3714, %v3780, %v3781
        %v3783 = vrot.slane %v214, 1
        %v3784 = vsel %vm3714, %v3781, %v3783
        %v3785 = vrot.slane %v215, 1
        %v3786 = vrot.slane %v216, 1
        %v3787 = vsel %vm3714, %v3785, %v3786
        %v3788 = vrot.slane %v217, 1
        %v3789 = vsel %vm3714, %v3786, %v3788
        %v3790 = vrot.slane %v218, 1
        %v3791 = vrot.slane %v219, 1
        %v3792 = vsel %vm3714, %v3790, %v3791
        %v3793 = vrot.slane %v220, 1
        %v3794 = vsel %vm3714, %v3791, %v3793
        %v3827 = vadd.f32 %v3634, %v3717
        %v3828 = vadd.f32 %v3635, %v3719
        %v3829 = vadd.f32 %v3636, %v3722
        %v3830 = vadd.f32 %v3637, %v3724
        %v3831 = vadd.f32 %v3638, %v3727
        %v3832 = vadd.f32 %v3639, %v3729
        %v3833 = vadd.f32 %v3640, %v3732
        %v3834 = vadd.f32 %v3641, %v3734
        %v3835 = vadd.f32 %v3642, %v3737
        %v3836 = vadd.f32 %v3643, %v3739
        %v3837 = vadd.f32 %v3644, %v3742
        %v3838 = vadd.f32 %v3645, %v3744
        %v3839 = vadd.f32 %v3646, %v3747
        %v3840 = vadd.f32 %v3647, %v3749
        %v3841 = vadd.f32 %v3648, %v3752
        %v3842 = vadd.f32 %v3649, %v3754
        %v3843 = vadd.f32 %v3650, %v3757
        %v3844 = vadd.f32 %v3651, %v3759
        %v3845 = vadd.f32 %v3652, %v3762
        %v3846 = vadd.f32 %v3653, %v3764
        %v3847 = vadd.f32 %v3654, %v3767
        %v3848 = vadd.f32 %v3655, %v3769
        %v3849 = vadd.f32 %v3656, %v3772
        %v3850 = vadd.f32 %v3657, %v3774
        %v3851 = vadd.f32 %v3658, %v3777
        %v3852 = vadd.f32 %v3659, %v3779
        %v3853 = vadd.f32 %v3660, %v3782
        %v3854 = vadd.f32 %v3661, %v3784
        %v3855 = vadd.f32 %v3662, %v3787
        %v3856 = vadd.f32 %v3663, %v3789
        %v3857 = vadd.f32 %v3664, %v3792
        %v3858 = vadd.f32 %v3665, %v3794
        %v3859 = vmax.f32 %v3827, 0.0
        %v3860 = vmax.f32 %v3828, 0.0
        %v3861 = vmax.f32 %v3829, 0.0
        %v3862 = vmax.f32 %v3830, 0.0
        %v3863 = vmax.f32 %v3831, 0.0
        %v3864 = vmax.f32 %v3832, 0.0
        %v3865 = vmax.f32 %v3833, 0.0
        %v3866 = vmax.f32 %v3834, 0.0
        %v3867 = vmax.f32 %v3835, 0.0
        %v3868 = vmax.f32 %v3836, 0.0
        %v3869 = vmax.f32 %v3837, 0.0
        %v3870 = vmax.f32 %v3838, 0.0
        %v3871 = vmax.f32 %v3839, 0.0
        %v3872 = vmax.f32 %v3840, 0.0
        %v3873 = vmax.f32 %v3841, 0.0
        %v3874 = vmax.f32 %v3842, 0.0
        %v3875 = vmax.f32 %v3843, 0.0
        %v3876 = vmax.f32 %v3844, 0.0
        %v3877 = vmax.f32 %v3845, 0.0
        %v3878 = vmax.f32 %v3846, 0.0
        %v3879 = vmax.f32 %v3847, 0.0
        %v3880 = vmax.f32 %v3848, 0.0
        %v3881 = vmax.f32 %v3849, 0.0
        %v3882 = vmax.f32 %v3850, 0.0
        %v3883 = vmax.f32 %v3851, 0.0
        %v3884 = vmax.f32 %v3852, 0.0
        %v3885 = vmax.f32 %v3853, 0.0
        %v3886 = vmax.f32 %v3854, 0.0
        %v3887 = vmax.f32 %v3855, 0.0
        %v3888 = vmax.f32 %v3856, 0.0
        %v3889 = vmax.f32 %v3857, 0.0
        %v3890 = vmax.f32 %v3858, 0.0
        %3891 = vxpose.xlu0.b32.start [1/16] %v3859, 128
        %3892 = vxpose.xlu0.b32.cont [2/16] %v3860, 128
        %3893 = vxpose.xlu0.b32.cont [3/16] %v3861, 128
        %3894 = vxpose.xlu0.b32.cont [4/16] %v3862, 128
        %3895 = vxpose.xlu0.b32.cont [5/16] %v3863, 128
        %3896 = vxpose.xlu0.b32.cont [6/16] %v3864, 128
        %3897 = vxpose.xlu0.b32.cont [7/16] %v3865, 128
        %3898 = vxpose.xlu0.b32.cont [8/16] %v3866, 128
        %3899 = vxpose.xlu0.b32.cont [9/16] %v3867, 128
        %3900 = vxpose.xlu0.b32.cont [10/16] %v3868, 128
        %3901 = vxpose.xlu0.b32.cont [11/16] %v3869, 128
        %3902 = vxpose.xlu0.b32.cont [12/16] %v3870, 128
        %3903 = vxpose.xlu0.b32.cont [13/16] %v3871, 128
        %3904 = vxpose.xlu0.b32.cont [14/16] %v3872, 128
        %3905 = vxpose.xlu0.b32.cont [15/16] %v3873, 128
        %3906 = vxpose.xlu0.b32.end [16/16] %v3874, 128
        %v3907 = vpop.trf.xlu0
        %v3908 = vpop.trf.xlu0
        %v3909 = vpop.trf.xlu0
        %v3910 = vpop.trf.xlu0
        %v3911 = vpop.trf.xlu0
        %v3912 = vpop.trf.xlu0
        %v3913 = vpop.trf.xlu0
        %v3914 = vpop.trf.xlu0
        %v3915 = vpop.trf.xlu0
        %v3916 = vpop.trf.xlu0
        %v3917 = vpop.trf.xlu0
        %v3918 = vpop.trf.xlu0
        %v3919 = vpop.trf.xlu0
        %v3920 = vpop.trf.xlu0
        %v3921 = vpop.trf.xlu0
        %v3922 = vpop.trf.xlu0
        %3923 = vxpose.xlu0.b32.start [1/16] %v3875, 128
        %3924 = vxpose.xlu0.b32.cont [2/16] %v3876, 128
        %3925 = vxpose.xlu0.b32.cont [3/16] %v3877, 128
        %3926 = vxpose.xlu0.b32.cont [4/16] %v3878, 128
        %3927 = vxpose.xlu0.b32.cont [5/16] %v3879, 128
        %3928 = vxpose.xlu0.b32.cont [6/16] %v3880, 128
        %3929 = vxpose.xlu0.b32.cont [7/16] %v3881, 128
        %3930 = vxpose.xlu0.b32.cont [8/16] %v3882, 128
        %3931 = vxpose.xlu0.b32.cont [9/16] %v3883, 128
        %3932 = vxpose.xlu0.b32.cont [10/16] %v3884, 128
        %3933 = vxpose.xlu0.b32.cont [11/16] %v3885, 128
        %3934 = vxpose.xlu0.b32.cont [12/16] %v3886, 128
        %3935 = vxpose.xlu0.b32.cont [13/16] %v3887, 128
        %3936 = vxpose.xlu0.b32.cont [14/16] %v3888, 128
        %3937 = vxpose.xlu0.b32.cont [15/16] %v3889, 128
        %3938 = vxpose.xlu0.b32.end [16/16] %v3890, 128
        %v3939 = vpop.trf.xlu0
        %v3940 = vpop.trf.xlu0
        %v3941 = vpop.trf.xlu0
        %v3942 = vpop.trf.xlu0
        %v3943 = vpop.trf.xlu0
        %v3944 = vpop.trf.xlu0
        %v3945 = vpop.trf.xlu0
        %v3946 = vpop.trf.xlu0
        %v3947 = vpop.trf.xlu0
        %v3948 = vpop.trf.xlu0
        %v3949 = vpop.trf.xlu0
        %v3950 = vpop.trf.xlu0
        %v3951 = vpop.trf.xlu0
        %v3952 = vpop.trf.xlu0
        %v3953 = vpop.trf.xlu0
        %v3954 = vpop.trf.xlu0
        %v3957 = vcombine.low %v3907, %v3939
        %3959 = vst [vmem:[%s163] sm:$0xff] %v3957
        %s3960 = sand.u32 %s93, 1
        %s3961 = scalar_lea.sflag [#allocation4], %s3960
        %s3962 = sand.u32 %s93, 1
        %s3963 = smul.addr %s3962, 8
        %s3964 = scalar_lea.vmem [#allocation3], %s3963
        // Predicated region
        $region33: #{tpu_custom_call.1} parent=31 // pred_check
          %p3965 = pneg %p103
        $region34: #{tpu_custom_call.1} parent=31 // pred_check_branch
          %3967 = sbr.rel (%p3965) target = $region36
        $region35: #{tpu_custom_call.1} parent=31 // pred_region
          %s3969 = ssub.s32 128, 128
          %3970 = vsyncadd %s3961, %s3969
          %s3971 = smul.addr %s17, 2
          %s3972 = smul.addr %s3971, 64
          %s3973 = scalar_lea.hbm %s3, %s3972
          %s3975 = sshll.u32 %s3964, 4
          %s3976 = int_to_ptr.vmem [resolvable:$true] %s3975
          %3978 = dma.vmem_to_hbm [thread:$0]  %s3976, 128, %s3973, %s3961
        $region36: #{tpu_custom_call.1} parent=31 // pred_fallthru
          _
      $region32: #{tpu_custom_call.1} parent=5 // pred_fallthru
        _
      %p3979 = scmp.le.s32.totalorder 2, %s12
      // Predicated region
      $region37: #{tpu_custom_call.1} parent=5 // pred_check
        %p3980 = pneg %p3979
      $region38: #{tpu_custom_call.1} parent=5 // pred_check_branch
        %3982 = sbr.rel (%p3980) target = $region40
      $region39: #{tpu_custom_call.1} parent=5 // pred_region
        %s3983 = ssub.s32 %s12, 2
        // Predicated region
        $region41: #{tpu_custom_call.1} parent=39 // pred_check
          %p3984 = pneg %p109
        $region42: #{tpu_custom_call.1} parent=39 // pred_check_branch
          %3986 = sbr.rel (%p3984) target = $region44
        $region43: #{tpu_custom_call.1} parent=39 // pred_region
          %s3987 = sand.u32 %s94, 1
          %s3988 = scalar_lea.sflag [#allocation4], %s3987
          %s3989 = sand.u32 %s94, 1
          %s3990 = smul.addr %s3989, 8
          %s3991 = scalar_lea.vmem [#allocation3], %s3990
          %3992 = dma.done %s3988, 128
        $region44: #{tpu_custom_call.1} parent=39 // pred_fallthru
          _
      $region40: #{tpu_custom_call.1} parent=5 // pred_fallthru
        _
    $region6: #{tpu_custom_call.1} parent=1 // loop_footer
      %s16 = sadd.s32 1, %s12
    $region7: #{tpu_custom_call.1} parent=1 // loop_footer_branch
      %11 = sbr.rel target = $region3
    $region8: #{tpu_custom_call.1} parent=1 // loop_exit
      _
    %3993 = vsyncpa [#allocation4], 1
    %s3994 = scalar_lea.sflag [#allocation4], 1
    %3995 = vsyncpa %s3994, 1

</llo_original>
